<compile_context>
chip_gen: v7x
topology: tpu7x:2x2x1
jax: 0.10.0
libtpu: 0.0.40
codegen_flags: <defaults>
</compile_context>

<pallas_src>
import jax
import jax.numpy as jnp
from jax.experimental import pallas as pl
from jax.experimental.pallas import tpu as pltpu

IN_FEATURES = 32 * 32    # 1024
OUT_FEATURES = 4
N_PAD = 128              # weight/bias width inside the kernel (clean MXU tile)
TB_MAX = 1024            # batch rows per tile: 4 MiB f32 x-tile, 8 MiB double-buffered
                         # -> fits v5e's 16 MiB scoped-VMEM default; v6e/v7x headroom.


def _cdiv(a, b):
    return -(-a // b)


def _round_up(n, m):
    return ((n + m - 1) // m) * m


def _select_tiling(B):
    """Pick (TB, B_pad, n_tiles): tile count first, then tile size (min pad waste).

    Guarantees >= 2 parallel tiles when B >= 16 so v7x can run both TensorCores.
    Padding waste is at most 7 rows per tile (sublane alignment).
    """
    n_tiles = max(1, _cdiv(B, TB_MAX))
    if B >= 16:
        n_tiles = max(2, n_tiles)
    TB = _round_up(_cdiv(B, n_tiles), 8)
    B_pad = n_tiles * TB
    return TB, B_pad, n_tiles


def bbox_regressor_kernel(x_ref, w_ref, b_ref, o_ref):
    # x_ref: (TB, 1024)  w_ref: (1024, 128)  b_ref: (1, 128)  o_ref: (TB, 4)
    acc = jnp.dot(
        x_ref[...], w_ref[...],
        preferred_element_type=jnp.float32,
        precision=jax.lax.Precision.HIGHEST,
    )
    acc = acc + b_ref[...]                       # broadcast bias over batch
    # Store only the real columns: narrow HBM output (the masked-store epilogue is
    # negligible next to the 4 KiB/row activation stream this kernel is bound by).
    o_ref[...] = jnp.maximum(acc[:, :OUT_FEATURES], 0.0).astype(o_ref.dtype)


def prepare_params(w_t, b):
    """One-time zero-padding of weight/bias N dim 4 -> 128 (hoisted out of forward)."""
    w_pad = jnp.zeros((IN_FEATURES, N_PAD), jnp.float32)
    w_pad = w_pad.at[:, :OUT_FEATURES].set(w_t.astype(jnp.float32))
    b_pad = jnp.zeros((1, N_PAD), jnp.float32)
    b_pad = b_pad.at[:, :OUT_FEATURES].set(b.astype(jnp.float32))
    return w_pad, b_pad


def bbox_regressor(x, w_pad, b_pad):
    """x: (B, 32, 32) float32; w_pad: (1024, 128); b_pad: (1, 128) -> (B, 4)."""
    B = x.shape[0]
    # torch.flatten(x, 1). Keep f32 to match the PyTorch forward exactly.
    x_flat = x.reshape(B, IN_FEATURES).astype(jnp.float32)

    TB, B_pad, n_tiles = _select_tiling(B)
    if B_pad != B:
        x_flat = jnp.pad(x_flat, ((0, B_pad - B), (0, 0)))

    cost = pl.CostEstimate(
        flops=2 * B_pad * IN_FEATURES * OUT_FEATURES,
        transcendentals=0,
        bytes_accessed=(B_pad * IN_FEATURES * 4        # activation stream (dominant)
                        + IN_FEATURES * N_PAD * 4      # resident weight
                        + B_pad * OUT_FEATURES * 4),   # narrow output
    )

    out = pl.pallas_call(
        bbox_regressor_kernel,
        out_shape=jax.ShapeDtypeStruct((B_pad, OUT_FEATURES), jnp.float32),
        grid=(n_tiles,),
        in_specs=[
            pl.BlockSpec((TB, IN_FEATURES), lambda i: (i, 0)),     # x tile (pipelined)
            pl.BlockSpec((IN_FEATURES, N_PAD), lambda i: (0, 0)),  # weight resident
            pl.BlockSpec((1, N_PAD), lambda i: (0, 0)),            # bias resident
        ],
        out_specs=pl.BlockSpec((TB, OUT_FEATURES), lambda i: (i, 0)),
        compiler_params=pltpu.CompilerParams(
            dimension_semantics=("parallel",),   # independent tiles -> megacore shard
        ),
        cost_estimate=cost,
    )(x_flat, w_pad, b_pad)

    return out[:B]


def init_params(key):
    """Deterministic init mimicking nn.Linear default (uniform +/- 1/sqrt(fan_in))."""
    kw, kb = jax.random.split(key)
    bound = 1.0 / jnp.sqrt(jnp.float32(IN_FEATURES))
    # PyTorch stores weight as (out, in); we keep the transposed (in, out) form.
    w_t = jax.random.uniform(
        kw, (IN_FEATURES, OUT_FEATURES), jnp.float32, -bound, bound
    )
    b = jax.random.uniform(kb, (OUT_FEATURES,), jnp.float32, -bound, bound)
    return w_t, b


if __name__ == "__main__":
    key = jax.random.PRNGKey(0)
    k_x, k_p = jax.random.split(key)

    # Small batch; input is (B, 32, 32) -> flattened to (B, 1024) as in the module.
    x = jax.random.normal(k_x, (2, 32, 32), jnp.float32)
    w_t, b = init_params(k_p)
    w_pad, b_pad = prepare_params(w_t, b)   # one-time param padding (hoisted)

    out = bbox_regressor(x, w_pad, b_pad)
    out = jax.block_until_ready(out)

    # Reference check in plain JAX (same math as the PyTorch forward).
    ref = jnp.maximum(x.reshape(2, -1) @ w_t + b[None, :], 0.0)
    assert out.shape == (2, 4)
    assert jnp.allclose(out, ref, atol=1e-5, rtol=1e-5)

    print("KERNEL_OK")
</pallas_src>

<mosaic_0001>
module attributes {stable_mosaic.version = 11 : i64} {
  func.func @bbox_regressor_kernel(%arg0: i32, %arg1: memref<8x1024xf32, #tpu.memory_space<vmem>>, %arg2: memref<1024x128xf32, #tpu.memory_space<vmem>>, %arg3: memref<1x128xf32, #tpu.memory_space<vmem>>, %arg4: memref<8x4xf32, #tpu.memory_space<vmem>>) attributes {dimension_semantics = [#tpu.dimension_semantics<parallel>], iteration_bounds = array<i64: 1>, scalar_prefetch = 0 : i64, scratch_operands = 0 : i64, tpu.core_type = #tpu.core_type<tc>, window_params = [{transform_indices = @transform_0, window_bounds = array<i64: 8, 1024>}, {pipeline_mode = #tpu.pipeline_mode<synchronous>, transform_indices = @transform_1, window_bounds = array<i64: 1024, 128>}, {pipeline_mode = #tpu.pipeline_mode<synchronous>, transform_indices = @transform_2, window_bounds = array<i64: 1, 128>}, {transform_indices = @transform_3, window_bounds = array<i64: 8, 4>}]} {
    %c0 = arith.constant 0 : index
    %c0_0 = arith.constant 0 : index
    %0 = vector.load %arg1[%c0, %c0_0] : memref<8x1024xf32, #tpu.memory_space<vmem>>, vector<8x1024xf32>
    %c0_1 = arith.constant 0 : index
    %c0_2 = arith.constant 0 : index
    %1 = vector.load %arg2[%c0_1, %c0_2] : memref<1024x128xf32, #tpu.memory_space<vmem>>, vector<1024x128xf32>
    %cst = arith.constant dense<0.000000e+00> : vector<8x128xf32>
    %2 = tpu.matmul %0, %1, %cst {dimension_numbers = #tpu.dot_dimension_numbers<[1], [0], [0], [1], [0, 0, 1, 1], [], []>, precision = #tpu.contract_precision<fp32>} : vector<8x1024xf32>, vector<1024x128xf32>, vector<8x128xf32> -> vector<8x128xf32>
    %c0_3 = arith.constant 0 : index
    %c0_4 = arith.constant 0 : index
    %3 = vector.load %arg3[%c0_3, %c0_4] : memref<1x128xf32, #tpu.memory_space<vmem>>, vector<1x128xf32>
    %4 = vector.broadcast %3 : vector<1x128xf32> to vector<8x128xf32>
    %5 = arith.addf %2, %4 : vector<8x128xf32>
    %6 = vector.extract_strided_slice %5 {offsets = [0, 0], sizes = [8, 4], strides = [1, 1]} : vector<8x128xf32> to vector<8x4xf32>
    %cst_5 = arith.constant 0.000000e+00 : f32
    %7 = vector.broadcast %cst_5 : f32 to vector<8x4xf32>
    %8 = arith.maximumf %6, %7 : vector<8x4xf32>
    %c0_6 = arith.constant 0 : index
    %c0_7 = arith.constant 0 : index
    %9 = vector.load %arg4[%c0_6, %c0_7] : memref<8x4xf32, #tpu.memory_space<vmem>>, vector<8x4xf32>
    tpu.vector_store %arg4[%c0_6, %c0_7], %8 {strides = array<i32>} : memref<8x4xf32, #tpu.memory_space<vmem>>, vector<8x4xf32>,
    return
  }
  func.func @transform_0(%arg0: i32) -> (i32, i32) {
    %c0_i32 = arith.constant 0 : i32
    %c0_i32_0 = arith.constant 0 : i32
    return %arg0, %c0_i32 : i32, i32
  }
  func.func @transform_1(%arg0: i32) -> (i32, i32) {
    %c0_i32 = arith.constant 0 : i32
    %c0_i32_0 = arith.constant 0 : i32
    %c0_i32_1 = arith.constant 0 : i32
    return %c0_i32, %c0_i32_0 : i32, i32
  }
  func.func @transform_2(%arg0: i32) -> (i32, i32) {
    %c0_i32 = arith.constant 0 : i32
    %c0_i32_0 = arith.constant 0 : i32
    %c0_i32_1 = arith.constant 0 : i32
    return %c0_i32, %c0_i32_0 : i32, i32
  }
  func.func @transform_3(%arg0: i32) -> (i32, i32) {
    %c0_i32 = arith.constant 0 : i32
    %c0_i32_0 = arith.constant 0 : i32
    return %arg0, %c0_i32 : i32, i32
  }
}

</mosaic_0001>

<llo_original>
// kernel: tpu_custom_call.1
$region0: #{tpu_custom_call.1}
  #allocation0 [shape = 'u32[]', space=smem, size = 0x4, offset = 0x4, fixed_abs, tag = 'smem constant byte address 0x4 - core index']
  #allocation1 [shape = 'u32[144,128]{1,0:T(1,128)}', space=vmem, size = 0x12000, scoped, tag = 'internal scratch']
  %s0 = inlined_call_operand.hbm [shape: f32[8,1024], index: 0, kind: input, shape index: {}]
  %s1 = inlined_call_operand.hbm [shape: f32[1024,128], index: 1, kind: input, shape index: {}]
  %s2 = inlined_call_operand.vmem [shape: f32[1,128], index: 2, kind: input, shape index: {}]
  %s3 = inlined_call_operand.vmem [shape: f32[8,4], index: 3, kind: output, shape index: {}]
  %s4 = sld [smem:[#allocation0]]
  $region30: #{tpu_custom_call.1} parent=0
    _
  %s6 = ssub.s32 1, %s4
  %s7 = scalar_select 0, %s6, %s4
  $region1: #{tpu_custom_call.1} parent=0
    #allocation2 [shape = 'u8[32768]{0}', space=vmem, size = 0x8000, scoped, tag = 'input window, operand 0, single buffered']
    #allocation3 [shape = 's32[1]{0}', space=sflag, size = 0x4, scoped, tag = 'scoped memory for tpu_custom_call.1']
    #allocation4 [shape = 'u8[524288]{0}', space=vmem, size = 0x80000, scoped, tag = 'input window, operand 1, single buffered']
    #allocation5 [shape = 's32[1]{0}', space=sflag, size = 0x4, scoped, tag = 'scoped memory for tpu_custom_call.1']
    %8 = vsyncpa [#allocation3], 0
    %9 = vsyncpa [#allocation5], 0
    // Predicated region
    $region2: #{tpu_custom_call.1} parent=1 // pred_check
      _
    $region3: #{tpu_custom_call.1} parent=1 // pred_check_branch
      %11 = sbr.rel (0) target = $region5
    $region4: #{tpu_custom_call.1} parent=1 // pred_region
      %s13 = ssub.s32 1024, 1024
      %14 = vsyncadd [#allocation3], %s13
      %s16 = sshll.u32 [#allocation2], 4
      %s17 = int_to_ptr.vmem [resolvable:$true] %s16
      %19 = dma.hbm_to_vmem [thread:$0]  %s0, 1024, %s17, [#allocation3]
    $region5: #{tpu_custom_call.1} parent=1 // pred_fallthru
      _
    // Predicated region
    $region6: #{tpu_custom_call.1} parent=1 // pred_check
      _
    $region7: #{tpu_custom_call.1} parent=1 // pred_check_branch
      %21 = sbr.rel (0) target = $region9
    $region8: #{tpu_custom_call.1} parent=1 // pred_region
      %s23 = ssub.s32 16384, 16384
      %24 = vsyncadd [#allocation5], %s23
      %s25 = sshll.u32 [#allocation4], 4
      %s26 = int_to_ptr.vmem [resolvable:$true] %s25
      %31 = dma.hbm_to_vmem [thread:$0]  %s1, 16384, %s26, [#allocation5], 128, 128, 8
    $region9: #{tpu_custom_call.1} parent=1 // pred_fallthru
      _
    // Predicated region
    $region10: #{tpu_custom_call.1} parent=1 // pred_check
      _
    $region11: #{tpu_custom_call.1} parent=1 // pred_check_branch
      %33 = sbr.rel (0) target = $region13
    $region12: #{tpu_custom_call.1} parent=1 // pred_region
      _
    $region13: #{tpu_custom_call.1} parent=1 // pred_fallthru
      _
    // Predicated region
    $region14: #{tpu_custom_call.1} parent=1 // pred_check
      _
    $region15: #{tpu_custom_call.1} parent=1 // pred_check_branch
      %35 = sbr.rel (0) target = $region17
    $region16: #{tpu_custom_call.1} parent=1 // pred_region
      %36 = dma.done [#allocation3], 1024
    $region17: #{tpu_custom_call.1} parent=1 // pred_fallthru
      _
    // Predicated region
    $region18: #{tpu_custom_call.1} parent=1 // pred_check
      _
    $region19: #{tpu_custom_call.1} parent=1 // pred_check_branch
      %38 = sbr.rel (0) target = $region21
    $region20: #{tpu_custom_call.1} parent=1 // pred_region
      %39 = dma.done [#allocation5], 16384
    $region21: #{tpu_custom_call.1} parent=1 // pred_fallthru
      _
    %v40 = vld [vmem:[#allocation2] sm:$0xff]
    %v41 = vld [vmem:[#allocation2 + $0x8] sm:$0xff]
    %v42 = vld [vmem:[#allocation2 + $0x10] sm:$0xff]
    %v43 = vld [vmem:[#allocation2 + $0x18] sm:$0xff]
    %v44 = vld [vmem:[#allocation2 + $0x20] sm:$0xff]
    %v45 = vld [vmem:[#allocation2 + $0x28] sm:$0xff]
    %v46 = vld [vmem:[#allocation2 + $0x30] sm:$0xff]
    %v47 = vld [vmem:[#allocation2 + $0x38] sm:$0xff]
    %v48 = vld [vmem:[#allocation4] sm:$0xff]
    %v49 = vld [vmem:[#allocation4 + $0x8] sm:$0xff]
    %v50 = vld [vmem:[#allocation4 + $0x10] sm:$0xff]
    %v51 = vld [vmem:[#allocation4 + $0x18] sm:$0xff]
    %v52 = vld [vmem:[#allocation4 + $0x20] sm:$0xff]
    %v53 = vld [vmem:[#allocation4 + $0x28] sm:$0xff]
    %v54 = vld [vmem:[#allocation4 + $0x30] sm:$0xff]
    %v55 = vld [vmem:[#allocation4 + $0x38] sm:$0xff]
    %v56 = vld [vmem:[#allocation4 + $0x40] sm:$0xff]
    %v57 = vld [vmem:[#allocation4 + $0x48] sm:$0xff]
    %v58 = vld [vmem:[#allocation4 + $0x50] sm:$0xff]
    %v59 = vld [vmem:[#allocation4 + $0x58] sm:$0xff]
    %v60 = vld [vmem:[#allocation4 + $0x60] sm:$0xff]
    %v61 = vld [vmem:[#allocation4 + $0x68] sm:$0xff]
    %v62 = vld [vmem:[#allocation4 + $0x70] sm:$0xff]
    %v63 = vld [vmem:[#allocation4 + $0x78] sm:$0xff]
    %v64 = vld [vmem:[#allocation4 + $0x80] sm:$0xff]
    %v65 = vld [vmem:[#allocation4 + $0x88] sm:$0xff]
    %v66 = vld [vmem:[#allocation4 + $0x90] sm:$0xff]
    %v67 = vld [vmem:[#allocation4 + $0x98] sm:$0xff]
    %v68 = vld [vmem:[#allocation4 + $0xa0] sm:$0xff]
    %v69 = vld [vmem:[#allocation4 + $0xa8] sm:$0xff]
    %v70 = vld [vmem:[#allocation4 + $0xb0] sm:$0xff]
    %v71 = vld [vmem:[#allocation4 + $0xb8] sm:$0xff]
    %v72 = vld [vmem:[#allocation4 + $0xc0] sm:$0xff]
    %v73 = vld [vmem:[#allocation4 + $0xc8] sm:$0xff]
    %v74 = vld [vmem:[#allocation4 + $0xd0] sm:$0xff]
    %v75 = vld [vmem:[#allocation4 + $0xd8] sm:$0xff]
    %v76 = vld [vmem:[#allocation4 + $0xe0] sm:$0xff]
    %v77 = vld [vmem:[#allocation4 + $0xe8] sm:$0xff]
    %v78 = vld [vmem:[#allocation4 + $0xf0] sm:$0xff]
    %v79 = vld [vmem:[#allocation4 + $0xf8] sm:$0xff]
    %v80 = vld [vmem:[#allocation4 + $0x100] sm:$0xff]
    %v81 = vld [vmem:[#allocation4 + $0x108] sm:$0xff]
    %v82 = vld [vmem:[#allocation4 + $0x110] sm:$0xff]
    %v83 = vld [vmem:[#allocation4 + $0x118] sm:$0xff]
    %v84 = vld [vmem:[#allocation4 + $0x120] sm:$0xff]
    %v85 = vld [vmem:[#allocation4 + $0x128] sm:$0xff]
    %v86 = vld [vmem:[#allocation4 + $0x130] sm:$0xff]
    %v87 = vld [vmem:[#allocation4 + $0x138] sm:$0xff]
    %v88 = vld [vmem:[#allocation4 + $0x140] sm:$0xff]
    %v89 = vld [vmem:[#allocation4 + $0x148] sm:$0xff]
    %v90 = vld [vmem:[#allocation4 + $0x150] sm:$0xff]
    %v91 = vld [vmem:[#allocation4 + $0x158] sm:$0xff]
    %v92 = vld [vmem:[#allocation4 + $0x160] sm:$0xff]
    %v93 = vld [vmem:[#allocation4 + $0x168] sm:$0xff]
    %v94 = vld [vmem:[#allocation4 + $0x170] sm:$0xff]
    %v95 = vld [vmem:[#allocation4 + $0x178] sm:$0xff]
    %v96 = vld [vmem:[#allocation4 + $0x180] sm:$0xff]
    %v97 = vld [vmem:[#allocation4 + $0x188] sm:$0xff]
    %v98 = vld [vmem:[#allocation4 + $0x190] sm:$0xff]
    %v99 = vld [vmem:[#allocation4 + $0x198] sm:$0xff]
    %v100 = vld [vmem:[#allocation4 + $0x1a0] sm:$0xff]
    %v101 = vld [vmem:[#allocation4 + $0x1a8] sm:$0xff]
    %v102 = vld [vmem:[#allocation4 + $0x1b0] sm:$0xff]
    %v103 = vld [vmem:[#allocation4 + $0x1b8] sm:$0xff]
    %v104 = vld [vmem:[#allocation4 + $0x1c0] sm:$0xff]
    %v105 = vld [vmem:[#allocation4 + $0x1c8] sm:$0xff]
    %v106 = vld [vmem:[#allocation4 + $0x1d0] sm:$0xff]
    %v107 = vld [vmem:[#allocation4 + $0x1d8] sm:$0xff]
    %v108 = vld [vmem:[#allocation4 + $0x1e0] sm:$0xff]
    %v109 = vld [vmem:[#allocation4 + $0x1e8] sm:$0xff]
    %v110 = vld [vmem:[#allocation4 + $0x1f0] sm:$0xff]
    %v111 = vld [vmem:[#allocation4 + $0x1f8] sm:$0xff]
    %v112 = vld [vmem:[#allocation4 + $0x200] sm:$0xff]
    %v113 = vld [vmem:[#allocation4 + $0x208] sm:$0xff]
    %v114 = vld [vmem:[#allocation4 + $0x210] sm:$0xff]
    %v115 = vld [vmem:[#allocation4 + $0x218] sm:$0xff]
    %v116 = vld [vmem:[#allocation4 + $0x220] sm:$0xff]
    %v117 = vld [vmem:[#allocation4 + $0x228] sm:$0xff]
    %v118 = vld [vmem:[#allocation4 + $0x230] sm:$0xff]
    %v119 = vld [vmem:[#allocation4 + $0x238] sm:$0xff]
    %v120 = vld [vmem:[#allocation4 + $0x240] sm:$0xff]
    %v121 = vld [vmem:[#allocation4 + $0x248] sm:$0xff]
    %v122 = vld [vmem:[#allocation4 + $0x250] sm:$0xff]
    %v123 = vld [vmem:[#allocation4 + $0x258] sm:$0xff]
    %v124 = vld [vmem:[#allocation4 + $0x260] sm:$0xff]
    %v125 = vld [vmem:[#allocation4 + $0x268] sm:$0xff]
    %v126 = vld [vmem:[#allocation4 + $0x270] sm:$0xff]
    %v127 = vld [vmem:[#allocation4 + $0x278] sm:$0xff]
    %v128 = vld [vmem:[#allocation4 + $0x280] sm:$0xff]
    %v129 = vld [vmem:[#allocation4 + $0x288] sm:$0xff]
    %v130 = vld [vmem:[#allocation4 + $0x290] sm:$0xff]
    %v131 = vld [vmem:[#allocation4 + $0x298] sm:$0xff]
    %v132 = vld [vmem:[#allocation4 + $0x2a0] sm:$0xff]
    %v133 = vld [vmem:[#allocation4 + $0x2a8] sm:$0xff]
    %v134 = vld [vmem:[#allocation4 + $0x2b0] sm:$0xff]
    %v135 = vld [vmem:[#allocation4 + $0x2b8] sm:$0xff]
    %v136 = vld [vmem:[#allocation4 + $0x2c0] sm:$0xff]
    %v137 = vld [vmem:[#allocation4 + $0x2c8] sm:$0xff]
    %v138 = vld [vmem:[#allocation4 + $0x2d0] sm:$0xff]
    %v139 = vld [vmem:[#allocation4 + $0x2d8] sm:$0xff]
    %v140 = vld [vmem:[#allocation4 + $0x2e0] sm:$0xff]
    %v141 = vld [vmem:[#allocation4 + $0x2e8] sm:$0xff]
    %v142 = vld [vmem:[#allocation4 + $0x2f0] sm:$0xff]
    %v143 = vld [vmem:[#allocation4 + $0x2f8] sm:$0xff]
    %v144 = vld [vmem:[#allocation4 + $0x300] sm:$0xff]
    %v145 = vld [vmem:[#allocation4 + $0x308] sm:$0xff]
    %v146 = vld [vmem:[#allocation4 + $0x310] sm:$0xff]
    %v147 = vld [vmem:[#allocation4 + $0x318] sm:$0xff]
    %v148 = vld [vmem:[#allocation4 + $0x320] sm:$0xff]
    %v149 = vld [vmem:[#allocation4 + $0x328] sm:$0xff]
    %v150 = vld [vmem:[#allocation4 + $0x330] sm:$0xff]
    %v151 = vld [vmem:[#allocation4 + $0x338] sm:$0xff]
    %v152 = vld [vmem:[#allocation4 + $0x340] sm:$0xff]
    %v153 = vld [vmem:[#allocation4 + $0x348] sm:$0xff]
    %v154 = vld [vmem:[#allocation4 + $0x350] sm:$0xff]
    %v155 = vld [vmem:[#allocation4 + $0x358] sm:$0xff]
    %v156 = vld [vmem:[#allocation4 + $0x360] sm:$0xff]
    %v157 = vld [vmem:[#allocation4 + $0x368] sm:$0xff]
    %v158 = vld [vmem:[#allocation4 + $0x370] sm:$0xff]
    %v159 = vld [vmem:[#allocation4 + $0x378] sm:$0xff]
    %v160 = vld [vmem:[#allocation4 + $0x380] sm:$0xff]
    %v161 = vld [vmem:[#allocation4 + $0x388] sm:$0xff]
    %v162 = vld [vmem:[#allocation4 + $0x390] sm:$0xff]
    %v163 = vld [vmem:[#allocation4 + $0x398] sm:$0xff]
    %v164 = vld [vmem:[#allocation4 + $0x3a0] sm:$0xff]
    %v165 = vld [vmem:[#allocation4 + $0x3a8] sm:$0xff]
    %v166 = vld [vmem:[#allocation4 + $0x3b0] sm:$0xff]
    %v167 = vld [vmem:[#allocation4 + $0x3b8] sm:$0xff]
    %v168 = vld [vmem:[#allocation4 + $0x3c0] sm:$0xff]
    %v169 = vld [vmem:[#allocation4 + $0x3c8] sm:$0xff]
    %v170 = vld [vmem:[#allocation4 + $0x3d0] sm:$0xff]
    %v171 = vld [vmem:[#allocation4 + $0x3d8] sm:$0xff]
    %v172 = vld [vmem:[#allocation4 + $0x3e0] sm:$0xff]
    %v173 = vld [vmem:[#allocation4 + $0x3e8] sm:$0xff]
    %v174 = vld [vmem:[#allocation4 + $0x3f0] sm:$0xff]
    %v175 = vld [vmem:[#allocation4 + $0x3f8] sm:$0xff]
    %v176 = vld [vmem:[%s2] sm:$0x1]
    %v178 = vlaneseq
    %v179 = vshrl.u32 %v178, 7
    %v180 = vsub.s32 0, %v179
    %v181 = vrot.slane %v176, %v180
    %183 = vmatprep.subr.mxu0 0.0
    %v184 = vand.u32 %v48, 4294901760
    %185 = vmatpush1.msra.mxu0 %v184
    %186 = vmatprep.subr.mxu0 0.0
    %v187 = vand.u32 %v49, 4294901760
    %188 = vmatpush1.msra.mxu0 %v187
    %189 = vmatprep.subr.mxu0 0.0
    %v190 = vand.u32 %v50, 4294901760
    %191 = vmatpush1.msra.mxu0 %v190
    %192 = vmatprep.subr.mxu0 0.0
    %v193 = vand.u32 %v51, 4294901760
    %194 = vmatpush1.msra.mxu0 %v193
    %195 = vmatprep.subr.mxu0 0.0
    %v196 = vand.u32 %v52, 4294901760
    %197 = vmatpush1.msra.mxu0 %v196
    %198 = vmatprep.subr.mxu0 0.0
    %v199 = vand.u32 %v53, 4294901760
    %200 = vmatpush1.msra.mxu0 %v199
    %201 = vmatprep.subr.mxu0 0.0
    %v202 = vand.u32 %v54, 4294901760
    %203 = vmatpush1.msra.mxu0 %v202
    %204 = vmatprep.subr.mxu0 0.0
    %v205 = vand.u32 %v55, 4294901760
    %206 = vmatpush1.msra.mxu0 %v205
    %207 = vmatprep.subr.mxu0 0.0
    %v208 = vand.u32 %v56, 4294901760
    %209 = vmatpush1.msra.mxu0 %v208
    %210 = vmatprep.subr.mxu0 0.0
    %v211 = vand.u32 %v57, 4294901760
    %212 = vmatpush1.msra.mxu0 %v211
    %213 = vmatprep.subr.mxu0 0.0
    %v214 = vand.u32 %v58, 4294901760
    %215 = vmatpush1.msra.mxu0 %v214
    %216 = vmatprep.subr.mxu0 0.0
    %v217 = vand.u32 %v59, 4294901760
    %218 = vmatpush1.msra.mxu0 %v217
    %219 = vmatprep.subr.mxu0 0.0
    %v220 = vand.u32 %v60, 4294901760
    %221 = vmatpush1.msra.mxu0 %v220
    %222 = vmatprep.subr.mxu0 0.0
    %v223 = vand.u32 %v61, 4294901760
    %224 = vmatpush1.msra.mxu0 %v223
    %225 = vmatprep.subr.mxu0 0.0
    %v226 = vand.u32 %v62, 4294901760
    %227 = vmatpush1.msra.mxu0 %v226
    %228 = vmatprep.subr.mxu0 0.0
    %v229 = vand.u32 %v63, 4294901760
    %230 = vmatpush1.msra.mxu0 %v229
    %231 = vmatprep.subr.mxu0 0.0
    %v232 = vand.u32 %v64, 4294901760
    %233 = vmatpush1.msra.mxu0 %v232
    %234 = vmatprep.subr.mxu0 0.0
    %v235 = vand.u32 %v65, 4294901760
    %236 = vmatpush1.msra.mxu0 %v235
    %237 = vmatprep.subr.mxu0 0.0
    %v238 = vand.u32 %v66, 4294901760
    %239 = vmatpush1.msra.mxu0 %v238
    %240 = vmatprep.subr.mxu0 0.0
    %v241 = vand.u32 %v67, 4294901760
    %242 = vmatpush1.msra.mxu0 %v241
    %243 = vmatprep.subr.mxu0 0.0
    %v244 = vand.u32 %v68, 4294901760
    %245 = vmatpush1.msra.mxu0 %v244
    %246 = vmatprep.subr.mxu0 0.0
    %v247 = vand.u32 %v69, 4294901760
    %248 = vmatpush1.msra.mxu0 %v247
    %249 = vmatprep.subr.mxu0 0.0
    %v250 = vand.u32 %v70, 4294901760
    %251 = vmatpush1.msra.mxu0 %v250
    %252 = vmatprep.subr.mxu0 0.0
    %v253 = vand.u32 %v71, 4294901760
    %254 = vmatpush1.msra.mxu0 %v253
    %255 = vmatprep.subr.mxu0 0.0
    %v256 = vand.u32 %v72, 4294901760
    %257 = vmatpush1.msra.mxu0 %v256
    %258 = vmatprep.subr.mxu0 0.0
    %v259 = vand.u32 %v73, 4294901760
    %260 = vmatpush1.msra.mxu0 %v259
    %261 = vmatprep.subr.mxu0 0.0
    %v262 = vand.u32 %v74, 4294901760
    %263 = vmatpush1.msra.mxu0 %v262
    %264 = vmatprep.subr.mxu0 0.0
    %v265 = vand.u32 %v75, 4294901760
    %266 = vmatpush1.msra.mxu0 %v265
    %267 = vmatprep.subr.mxu0 0.0
    %v268 = vand.u32 %v76, 4294901760
    %269 = vmatpush1.msra.mxu0 %v268
    %270 = vmatprep.subr.mxu0 0.0
    %v271 = vand.u32 %v77, 4294901760
    %272 = vmatpush1.msra.mxu0 %v271
    %273 = vmatprep.subr.mxu0 0.0
    %v274 = vand.u32 %v78, 4294901760
    %275 = vmatpush1.msra.mxu0 %v274
    %276 = vmatprep.subr.mxu0 0.0
    %v277 = vand.u32 %v79, 4294901760
    %278 = vmatpush1.msra.mxu0 %v277
    %v279 = vand.u32 %v41, 4294901760
    %v280 = vsub.f32 %v41, %v279
    %v281 = vand.u32 %v280, 4294901760
    %v282 = vsub.f32 %v280, %v281
    %v283 = vand.u32 %v282, 4294901760
    %284 = vmatprep.mubr.f32.mxu0 %v283
    %v285 = vand.u32 %v40, 4294901760
    %v286 = vsub.f32 %v40, %v285
    %v287 = vand.u32 %v286, 4294901760
    %v288 = vsub.f32 %v286, %v287
    %v289 = vand.u32 %v288, 4294901760
    %290 = vmatmul.mubr.f32.gmra.mrb[0].mxu0 %v289
    %v291 = vpop.f32.mrb[0].mxu0
    %v292 = vadd.f32 %v181, %v291
    %v293 = vpop.f32.mrb[0].mxu0
    %294 = vdwg.mxu0
    %295 = vmatprep.subr.mxu0 0.0
    %v296 = vand.u32 %v48, 4294901760
    %v297 = vsub.f32 %v48, %v296
    %v298 = vand.u32 %v297, 4294901760
    %v299 = vsub.f32 %v297, %v298
    %v300 = vand.u32 %v299, 4294901760
    %301 = vmatpush1.msra.mxu0 %v300
    %302 = vmatprep.subr.mxu0 0.0
    %v303 = vand.u32 %v49, 4294901760
    %v304 = vsub.f32 %v49, %v303
    %v305 = vand.u32 %v304, 4294901760
    %v306 = vsub.f32 %v304, %v305
    %v307 = vand.u32 %v306, 4294901760
    %308 = vmatpush1.msra.mxu0 %v307
    %309 = vmatprep.subr.mxu0 0.0
    %v310 = vand.u32 %v50, 4294901760
    %v311 = vsub.f32 %v50, %v310
    %v312 = vand.u32 %v311, 4294901760
    %v313 = vsub.f32 %v311, %v312
    %v314 = vand.u32 %v313, 4294901760
    %315 = vmatpush1.msra.mxu0 %v314
    %316 = vmatprep.subr.mxu0 0.0
    %v317 = vand.u32 %v51, 4294901760
    %v318 = vsub.f32 %v51, %v317
    %v319 = vand.u32 %v318, 4294901760
    %v320 = vsub.f32 %v318, %v319
    %v321 = vand.u32 %v320, 4294901760
    %322 = vmatpush1.msra.mxu0 %v321
    %323 = vmatprep.subr.mxu0 0.0
    %v324 = vand.u32 %v52, 4294901760
    %v325 = vsub.f32 %v52, %v324
    %v326 = vand.u32 %v325, 4294901760
    %v327 = vsub.f32 %v325, %v326
    %v328 = vand.u32 %v327, 4294901760
    %329 = vmatpush1.msra.mxu0 %v328
    %330 = vmatprep.subr.mxu0 0.0
    %v331 = vand.u32 %v53, 4294901760
    %v332 = vsub.f32 %v53, %v331
    %v333 = vand.u32 %v332, 4294901760
    %v334 = vsub.f32 %v332, %v333
    %v335 = vand.u32 %v334, 4294901760
    %336 = vmatpush1.msra.mxu0 %v335
    %337 = vmatprep.subr.mxu0 0.0
    %v338 = vand.u32 %v54, 4294901760
    %v339 = vsub.f32 %v54, %v338
    %v340 = vand.u32 %v339, 4294901760
    %v341 = vsub.f32 %v339, %v340
    %v342 = vand.u32 %v341, 4294901760
    %343 = vmatpush1.msra.mxu0 %v342
    %344 = vmatprep.subr.mxu0 0.0
    %v345 = vand.u32 %v55, 4294901760
    %v346 = vsub.f32 %v55, %v345
    %v347 = vand.u32 %v346, 4294901760
    %v348 = vsub.f32 %v346, %v347
    %v349 = vand.u32 %v348, 4294901760
    %350 = vmatpush1.msra.mxu0 %v349
    %351 = vmatprep.subr.mxu0 0.0
    %v352 = vand.u32 %v56, 4294901760
    %v353 = vsub.f32 %v56, %v352
    %v354 = vand.u32 %v353, 4294901760
    %v355 = vsub.f32 %v353, %v354
    %v356 = vand.u32 %v355, 4294901760
    %357 = vmatpush1.msra.mxu0 %v356
    %358 = vmatprep.subr.mxu0 0.0
    %v359 = vand.u32 %v57, 4294901760
    %v360 = vsub.f32 %v57, %v359
    %v361 = vand.u32 %v360, 4294901760
    %v362 = vsub.f32 %v360, %v361
    %v363 = vand.u32 %v362, 4294901760
    %364 = vmatpush1.msra.mxu0 %v363
    %365 = vmatprep.subr.mxu0 0.0
    %v366 = vand.u32 %v58, 4294901760
    %v367 = vsub.f32 %v58, %v366
    %v368 = vand.u32 %v367, 4294901760
    %v369 = vsub.f32 %v367, %v368
    %v370 = vand.u32 %v369, 4294901760
    %371 = vmatpush1.msra.mxu0 %v370
    %372 = vmatprep.subr.mxu0 0.0
    %v373 = vand.u32 %v59, 4294901760
    %v374 = vsub.f32 %v59, %v373
    %v375 = vand.u32 %v374, 4294901760
    %v376 = vsub.f32 %v374, %v375
    %v377 = vand.u32 %v376, 4294901760
    %378 = vmatpush1.msra.mxu0 %v377
    %379 = vmatprep.subr.mxu0 0.0
    %v380 = vand.u32 %v60, 4294901760
    %v381 = vsub.f32 %v60, %v380
    %v382 = vand.u32 %v381, 4294901760
    %v383 = vsub.f32 %v381, %v382
    %v384 = vand.u32 %v383, 4294901760
    %385 = vmatpush1.msra.mxu0 %v384
    %386 = vmatprep.subr.mxu0 0.0
    %v387 = vand.u32 %v61, 4294901760
    %v388 = vsub.f32 %v61, %v387
    %v389 = vand.u32 %v388, 4294901760
    %v390 = vsub.f32 %v388, %v389
    %v391 = vand.u32 %v390, 4294901760
    %392 = vmatpush1.msra.mxu0 %v391
    %393 = vmatprep.subr.mxu0 0.0
    %v394 = vand.u32 %v62, 4294901760
    %v395 = vsub.f32 %v62, %v394
    %v396 = vand.u32 %v395, 4294901760
    %v397 = vsub.f32 %v395, %v396
    %v398 = vand.u32 %v397, 4294901760
    %399 = vmatpush1.msra.mxu0 %v398
    %400 = vmatprep.subr.mxu0 0.0
    %v401 = vand.u32 %v63, 4294901760
    %v402 = vsub.f32 %v63, %v401
    %v403 = vand.u32 %v402, 4294901760
    %v404 = vsub.f32 %v402, %v403
    %v405 = vand.u32 %v404, 4294901760
    %406 = vmatpush1.msra.mxu0 %v405
    %407 = vmatprep.subr.mxu0 0.0
    %v408 = vand.u32 %v64, 4294901760
    %v409 = vsub.f32 %v64, %v408
    %v410 = vand.u32 %v409, 4294901760
    %v411 = vsub.f32 %v409, %v410
    %v412 = vand.u32 %v411, 4294901760
    %413 = vmatpush1.msra.mxu0 %v412
    %414 = vmatprep.subr.mxu0 0.0
    %v415 = vand.u32 %v65, 4294901760
    %v416 = vsub.f32 %v65, %v415
    %v417 = vand.u32 %v416, 4294901760
    %v418 = vsub.f32 %v416, %v417
    %v419 = vand.u32 %v418, 4294901760
    %420 = vmatpush1.msra.mxu0 %v419
    %421 = vmatprep.subr.mxu0 0.0
    %v422 = vand.u32 %v66, 4294901760
    %v423 = vsub.f32 %v66, %v422
    %v424 = vand.u32 %v423, 4294901760
    %v425 = vsub.f32 %v423, %v424
    %v426 = vand.u32 %v425, 4294901760
    %427 = vmatpush1.msra.mxu0 %v426
    %428 = vmatprep.subr.mxu0 0.0
    %v429 = vand.u32 %v67, 4294901760
    %v430 = vsub.f32 %v67, %v429
    %v431 = vand.u32 %v430, 4294901760
    %v432 = vsub.f32 %v430, %v431
    %v433 = vand.u32 %v432, 4294901760
    %434 = vmatpush1.msra.mxu0 %v433
    %435 = vmatprep.subr.mxu0 0.0
    %v436 = vand.u32 %v68, 4294901760
    %v437 = vsub.f32 %v68, %v436
    %v438 = vand.u32 %v437, 4294901760
    %v439 = vsub.f32 %v437, %v438
    %v440 = vand.u32 %v439, 4294901760
    %441 = vmatpush1.msra.mxu0 %v440
    %442 = vmatprep.subr.mxu0 0.0
    %v443 = vand.u32 %v69, 4294901760
    %v444 = vsub.f32 %v69, %v443
    %v445 = vand.u32 %v444, 4294901760
    %v446 = vsub.f32 %v444, %v445
    %v447 = vand.u32 %v446, 4294901760
    %448 = vmatpush1.msra.mxu0 %v447
    %449 = vmatprep.subr.mxu0 0.0
    %v450 = vand.u32 %v70, 4294901760
    %v451 = vsub.f32 %v70, %v450
    %v452 = vand.u32 %v451, 4294901760
    %v453 = vsub.f32 %v451, %v452
    %v454 = vand.u32 %v453, 4294901760
    %455 = vmatpush1.msra.mxu0 %v454
    %456 = vmatprep.subr.mxu0 0.0
    %v457 = vand.u32 %v71, 4294901760
    %v458 = vsub.f32 %v71, %v457
    %v459 = vand.u32 %v458, 4294901760
    %v460 = vsub.f32 %v458, %v459
    %v461 = vand.u32 %v460, 4294901760
    %462 = vmatpush1.msra.mxu0 %v461
    %463 = vmatprep.subr.mxu0 0.0
    %v464 = vand.u32 %v72, 4294901760
    %v465 = vsub.f32 %v72, %v464
    %v466 = vand.u32 %v465, 4294901760
    %v467 = vsub.f32 %v465, %v466
    %v468 = vand.u32 %v467, 4294901760
    %469 = vmatpush1.msra.mxu0 %v468
    %470 = vmatprep.subr.mxu0 0.0
    %v471 = vand.u32 %v73, 4294901760
    %v472 = vsub.f32 %v73, %v471
    %v473 = vand.u32 %v472, 4294901760
    %v474 = vsub.f32 %v472, %v473
    %v475 = vand.u32 %v474, 4294901760
    %476 = vmatpush1.msra.mxu0 %v475
    %477 = vmatprep.subr.mxu0 0.0
    %v478 = vand.u32 %v74, 4294901760
    %v479 = vsub.f32 %v74, %v478
    %v480 = vand.u32 %v479, 4294901760
    %v481 = vsub.f32 %v479, %v480
    %v482 = vand.u32 %v481, 4294901760
    %483 = vmatpush1.msra.mxu0 %v482
    %484 = vmatprep.subr.mxu0 0.0
    %v485 = vand.u32 %v75, 4294901760
    %v486 = vsub.f32 %v75, %v485
    %v487 = vand.u32 %v486, 4294901760
    %v488 = vsub.f32 %v486, %v487
    %v489 = vand.u32 %v488, 4294901760
    %490 = vmatpush1.msra.mxu0 %v489
    %491 = vmatprep.subr.mxu0 0.0
    %v492 = vand.u32 %v76, 4294901760
    %v493 = vsub.f32 %v76, %v492
    %v494 = vand.u32 %v493, 4294901760
    %v495 = vsub.f32 %v493, %v494
    %v496 = vand.u32 %v495, 4294901760
    %497 = vmatpush1.msra.mxu0 %v496
    %498 = vmatprep.subr.mxu0 0.0
    %v499 = vand.u32 %v77, 4294901760
    %v500 = vsub.f32 %v77, %v499
    %v501 = vand.u32 %v500, 4294901760
    %v502 = vsub.f32 %v500, %v501
    %v503 = vand.u32 %v502, 4294901760
    %504 = vmatpush1.msra.mxu0 %v503
    %505 = vmatprep.subr.mxu0 0.0
    %v506 = vand.u32 %v78, 4294901760
    %v507 = vsub.f32 %v78, %v506
    %v508 = vand.u32 %v507, 4294901760
    %v509 = vsub.f32 %v507, %v508
    %v510 = vand.u32 %v509, 4294901760
    %511 = vmatpush1.msra.mxu0 %v510
    %512 = vmatprep.subr.mxu0 0.0
    %v513 = vand.u32 %v79, 4294901760
    %v514 = vsub.f32 %v79, %v513
    %v515 = vand.u32 %v514, 4294901760
    %v516 = vsub.f32 %v514, %v515
    %v517 = vand.u32 %v516, 4294901760
    %518 = vmatpush1.msra.mxu0 %v517
    %v519 = vand.u32 %v41, 4294901760
    %520 = vmatprep.mubr.f32.mxu0 %v519
    %v521 = vand.u32 %v40, 4294901760
    %522 = vmatmul.mubr.f32.gmra.mrb[0].mxu0 %v521
    %v523 = vpop.f32.mrb[0].mxu0
    %v524 = vadd.f32 %v292, %v523
    %v525 = vpop.f32.mrb[0].mxu0
    %526 = vdwg.mxu0
    %527 = vmatprep.subr.mxu0 0.0
    %v528 = vand.u32 %v48, 4294901760
    %v529 = vsub.f32 %v48, %v528
    %530 = vmatpush1.msra.mxu0 %v529
    %531 = vmatprep.subr.mxu0 0.0
    %v532 = vand.u32 %v49, 4294901760
    %v533 = vsub.f32 %v49, %v532
    %534 = vmatpush1.msra.mxu0 %v533
    %535 = vmatprep.subr.mxu0 0.0
    %v536 = vand.u32 %v50, 4294901760
    %v537 = vsub.f32 %v50, %v536
    %538 = vmatpush1.msra.mxu0 %v537
    %539 = vmatprep.subr.mxu0 0.0
    %v540 = vand.u32 %v51, 4294901760
    %v541 = vsub.f32 %v51, %v540
    %542 = vmatpush1.msra.mxu0 %v541
    %543 = vmatprep.subr.mxu0 0.0
    %v544 = vand.u32 %v52, 4294901760
    %v545 = vsub.f32 %v52, %v544
    %546 = vmatpush1.msra.mxu0 %v545
    %547 = vmatprep.subr.mxu0 0.0
    %v548 = vand.u32 %v53, 4294901760
    %v549 = vsub.f32 %v53, %v548
    %550 = vmatpush1.msra.mxu0 %v549
    %551 = vmatprep.subr.mxu0 0.0
    %v552 = vand.u32 %v54, 4294901760
    %v553 = vsub.f32 %v54, %v552
    %554 = vmatpush1.msra.mxu0 %v553
    %555 = vmatprep.subr.mxu0 0.0
    %v556 = vand.u32 %v55, 4294901760
    %v557 = vsub.f32 %v55, %v556
    %558 = vmatpush1.msra.mxu0 %v557
    %559 = vmatprep.subr.mxu0 0.0
    %v560 = vand.u32 %v56, 4294901760
    %v561 = vsub.f32 %v56, %v560
    %562 = vmatpush1.msra.mxu0 %v561
    %563 = vmatprep.subr.mxu0 0.0
    %v564 = vand.u32 %v57, 4294901760
    %v565 = vsub.f32 %v57, %v564
    %566 = vmatpush1.msra.mxu0 %v565
    %567 = vmatprep.subr.mxu0 0.0
    %v568 = vand.u32 %v58, 4294901760
    %v569 = vsub.f32 %v58, %v568
    %570 = vmatpush1.msra.mxu0 %v569
    %571 = vmatprep.subr.mxu0 0.0
    %v572 = vand.u32 %v59, 4294901760
    %v573 = vsub.f32 %v59, %v572
    %574 = vmatpush1.msra.mxu0 %v573
    %575 = vmatprep.subr.mxu0 0.0
    %v576 = vand.u32 %v60, 4294901760
    %v577 = vsub.f32 %v60, %v576
    %578 = vmatpush1.msra.mxu0 %v577
    %579 = vmatprep.subr.mxu0 0.0
    %v580 = vand.u32 %v61, 4294901760
    %v581 = vsub.f32 %v61, %v580
    %582 = vmatpush1.msra.mxu0 %v581
    %583 = vmatprep.subr.mxu0 0.0
    %v584 = vand.u32 %v62, 4294901760
    %v585 = vsub.f32 %v62, %v584
    %586 = vmatpush1.msra.mxu0 %v585
    %587 = vmatprep.subr.mxu0 0.0
    %v588 = vand.u32 %v63, 4294901760
    %v589 = vsub.f32 %v63, %v588
    %590 = vmatpush1.msra.mxu0 %v589
    %591 = vmatprep.subr.mxu0 0.0
    %v592 = vand.u32 %v64, 4294901760
    %v593 = vsub.f32 %v64, %v592
    %594 = vmatpush1.msra.mxu0 %v593
    %595 = vmatprep.subr.mxu0 0.0
    %v596 = vand.u32 %v65, 4294901760
    %v597 = vsub.f32 %v65, %v596
    %598 = vmatpush1.msra.mxu0 %v597
    %599 = vmatprep.subr.mxu0 0.0
    %v600 = vand.u32 %v66, 4294901760
    %v601 = vsub.f32 %v66, %v600
    %602 = vmatpush1.msra.mxu0 %v601
    %603 = vmatprep.subr.mxu0 0.0
    %v604 = vand.u32 %v67, 4294901760
    %v605 = vsub.f32 %v67, %v604
    %606 = vmatpush1.msra.mxu0 %v605
    %607 = vmatprep.subr.mxu0 0.0
    %v608 = vand.u32 %v68, 4294901760
    %v609 = vsub.f32 %v68, %v608
    %610 = vmatpush1.msra.mxu0 %v609
    %611 = vmatprep.subr.mxu0 0.0
    %v612 = vand.u32 %v69, 4294901760
    %v613 = vsub.f32 %v69, %v612
    %614 = vmatpush1.msra.mxu0 %v613
    %615 = vmatprep.subr.mxu0 0.0
    %v616 = vand.u32 %v70, 4294901760
    %v617 = vsub.f32 %v70, %v616
    %618 = vmatpush1.msra.mxu0 %v617
    %619 = vmatprep.subr.mxu0 0.0
    %v620 = vand.u32 %v71, 4294901760
    %v621 = vsub.f32 %v71, %v620
    %622 = vmatpush1.msra.mxu0 %v621
    %623 = vmatprep.subr.mxu0 0.0
    %v624 = vand.u32 %v72, 4294901760
    %v625 = vsub.f32 %v72, %v624
    %626 = vmatpush1.msra.mxu0 %v625
    %627 = vmatprep.subr.mxu0 0.0
    %v628 = vand.u32 %v73, 4294901760
    %v629 = vsub.f32 %v73, %v628
    %630 = vmatpush1.msra.mxu0 %v629
    %631 = vmatprep.subr.mxu0 0.0
    %v632 = vand.u32 %v74, 4294901760
    %v633 = vsub.f32 %v74, %v632
    %634 = vmatpush1.msra.mxu0 %v633
    %635 = vmatprep.subr.mxu0 0.0
    %v636 = vand.u32 %v75, 4294901760
    %v637 = vsub.f32 %v75, %v636
    %638 = vmatpush1.msra.mxu0 %v637
    %639 = vmatprep.subr.mxu0 0.0
    %v640 = vand.u32 %v76, 4294901760
    %v641 = vsub.f32 %v76, %v640
    %642 = vmatpush1.msra.mxu0 %v641
    %643 = vmatprep.subr.mxu0 0.0
    %v644 = vand.u32 %v77, 4294901760
    %v645 = vsub.f32 %v77, %v644
    %646 = vmatpush1.msra.mxu0 %v645
    %647 = vmatprep.subr.mxu0 0.0
    %v648 = vand.u32 %v78, 4294901760
    %v649 = vsub.f32 %v78, %v648
    %650 = vmatpush1.msra.mxu0 %v649
    %651 = vmatprep.subr.mxu0 0.0
    %v652 = vand.u32 %v79, 4294901760
    %v653 = vsub.f32 %v79, %v652
    %654 = vmatpush1.msra.mxu0 %v653
    %v655 = vand.u32 %v41, 4294901760
    %v656 = vsub.f32 %v41, %v655
    %657 = vmatprep.mubr.f32.mxu0 %v656
    %v658 = vand.u32 %v40, 4294901760
    %v659 = vsub.f32 %v40, %v658
    %660 = vmatmul.mubr.f32.gmra.mrb[0].mxu0 %v659
    %v661 = vpop.f32.mrb[0].mxu0
    %v662 = vadd.f32 %v524, %v661
    %v663 = vpop.f32.mrb[0].mxu0
    %664 = vdwg.mxu0
    %665 = vmatprep.subr.mxu0 0.0
    %v666 = vand.u32 %v48, 4294901760
    %667 = vmatpush1.msra.mxu0 %v666
    %668 = vmatprep.subr.mxu0 0.0
    %v669 = vand.u32 %v49, 4294901760
    %670 = vmatpush1.msra.mxu0 %v669
    %671 = vmatprep.subr.mxu0 0.0
    %v672 = vand.u32 %v50, 4294901760
    %673 = vmatpush1.msra.mxu0 %v672
    %674 = vmatprep.subr.mxu0 0.0
    %v675 = vand.u32 %v51, 4294901760
    %676 = vmatpush1.msra.mxu0 %v675
    %677 = vmatprep.subr.mxu0 0.0
    %v678 = vand.u32 %v52, 4294901760
    %679 = vmatpush1.msra.mxu0 %v678
    %680 = vmatprep.subr.mxu0 0.0
    %v681 = vand.u32 %v53, 4294901760
    %682 = vmatpush1.msra.mxu0 %v681
    %683 = vmatprep.subr.mxu0 0.0
    %v684 = vand.u32 %v54, 4294901760
    %685 = vmatpush1.msra.mxu0 %v684
    %686 = vmatprep.subr.mxu0 0.0
    %v687 = vand.u32 %v55, 4294901760
    %688 = vmatpush1.msra.mxu0 %v687
    %689 = vmatprep.subr.mxu0 0.0
    %v690 = vand.u32 %v56, 4294901760
    %691 = vmatpush1.msra.mxu0 %v690
    %692 = vmatprep.subr.mxu0 0.0
    %v693 = vand.u32 %v57, 4294901760
    %694 = vmatpush1.msra.mxu0 %v693
    %695 = vmatprep.subr.mxu0 0.0
    %v696 = vand.u32 %v58, 4294901760
    %697 = vmatpush1.msra.mxu0 %v696
    %698 = vmatprep.subr.mxu0 0.0
    %v699 = vand.u32 %v59, 4294901760
    %700 = vmatpush1.msra.mxu0 %v699
    %701 = vmatprep.subr.mxu0 0.0
    %v702 = vand.u32 %v60, 4294901760
    %703 = vmatpush1.msra.mxu0 %v702
    %704 = vmatprep.subr.mxu0 0.0
    %v705 = vand.u32 %v61, 4294901760
    %706 = vmatpush1.msra.mxu0 %v705
    %707 = vmatprep.subr.mxu0 0.0
    %v708 = vand.u32 %v62, 4294901760
    %709 = vmatpush1.msra.mxu0 %v708
    %710 = vmatprep.subr.mxu0 0.0
    %v711 = vand.u32 %v63, 4294901760
    %712 = vmatpush1.msra.mxu0 %v711
    %713 = vmatprep.subr.mxu0 0.0
    %v714 = vand.u32 %v64, 4294901760
    %715 = vmatpush1.msra.mxu0 %v714
    %716 = vmatprep.subr.mxu0 0.0
    %v717 = vand.u32 %v65, 4294901760
    %718 = vmatpush1.msra.mxu0 %v717
    %719 = vmatprep.subr.mxu0 0.0
    %v720 = vand.u32 %v66, 4294901760
    %721 = vmatpush1.msra.mxu0 %v720
    %722 = vmatprep.subr.mxu0 0.0
    %v723 = vand.u32 %v67, 4294901760
    %724 = vmatpush1.msra.mxu0 %v723
    %725 = vmatprep.subr.mxu0 0.0
    %v726 = vand.u32 %v68, 4294901760
    %727 = vmatpush1.msra.mxu0 %v726
    %728 = vmatprep.subr.mxu0 0.0
    %v729 = vand.u32 %v69, 4294901760
    %730 = vmatpush1.msra.mxu0 %v729
    %731 = vmatprep.subr.mxu0 0.0
    %v732 = vand.u32 %v70, 4294901760
    %733 = vmatpush1.msra.mxu0 %v732
    %734 = vmatprep.subr.mxu0 0.0
    %v735 = vand.u32 %v71, 4294901760
    %736 = vmatpush1.msra.mxu0 %v735
    %737 = vmatprep.subr.mxu0 0.0
    %v738 = vand.u32 %v72, 4294901760
    %739 = vmatpush1.msra.mxu0 %v738
    %740 = vmatprep.subr.mxu0 0.0
    %v741 = vand.u32 %v73, 4294901760
    %742 = vmatpush1.msra.mxu0 %v741
    %743 = vmatprep.subr.mxu0 0.0
    %v744 = vand.u32 %v74, 4294901760
    %745 = vmatpush1.msra.mxu0 %v744
    %746 = vmatprep.subr.mxu0 0.0
    %v747 = vand.u32 %v75, 4294901760
    %748 = vmatpush1.msra.mxu0 %v747
    %749 = vmatprep.subr.mxu0 0.0
    %v750 = vand.u32 %v76, 4294901760
    %751 = vmatpush1.msra.mxu0 %v750
    %752 = vmatprep.subr.mxu0 0.0
    %v753 = vand.u32 %v77, 4294901760
    %754 = vmatpush1.msra.mxu0 %v753
    %755 = vmatprep.subr.mxu0 0.0
    %v756 = vand.u32 %v78, 4294901760
    %757 = vmatpush1.msra.mxu0 %v756
    %758 = vmatprep.subr.mxu0 0.0
    %v759 = vand.u32 %v79, 4294901760
    %760 = vmatpush1.msra.mxu0 %v759
    %v761 = vand.u32 %v41, 4294901760
    %v762 = vsub.f32 %v41, %v761
    %v763 = vand.u32 %v762, 4294901760
    %764 = vmatprep.mubr.f32.mxu0 %v763
    %v765 = vand.u32 %v40, 4294901760
    %v766 = vsub.f32 %v40, %v765
    %v767 = vand.u32 %v766, 4294901760
    %768 = vmatmul.mubr.f32.gmra.mrb[0].mxu0 %v767
    %v769 = vpop.f32.mrb[0].mxu0
    %v770 = vadd.f32 %v662, %v769
    %v771 = vpop.f32.mrb[0].mxu0
    %772 = vdwg.mxu0
    %773 = vmatprep.subr.mxu0 0.0
    %v774 = vand.u32 %v48, 4294901760
    %v775 = vsub.f32 %v48, %v774
    %v776 = vand.u32 %v775, 4294901760
    %777 = vmatpush1.msra.mxu0 %v776
    %778 = vmatprep.subr.mxu0 0.0
    %v779 = vand.u32 %v49, 4294901760
    %v780 = vsub.f32 %v49, %v779
    %v781 = vand.u32 %v780, 4294901760
    %782 = vmatpush1.msra.mxu0 %v781
    %783 = vmatprep.subr.mxu0 0.0
    %v784 = vand.u32 %v50, 4294901760
    %v785 = vsub.f32 %v50, %v784
    %v786 = vand.u32 %v785, 4294901760
    %787 = vmatpush1.msra.mxu0 %v786
    %788 = vmatprep.subr.mxu0 0.0
    %v789 = vand.u32 %v51, 4294901760
    %v790 = vsub.f32 %v51, %v789
    %v791 = vand.u32 %v790, 4294901760
    %792 = vmatpush1.msra.mxu0 %v791
    %793 = vmatprep.subr.mxu0 0.0
    %v794 = vand.u32 %v52, 4294901760
    %v795 = vsub.f32 %v52, %v794
    %v796 = vand.u32 %v795, 4294901760
    %797 = vmatpush1.msra.mxu0 %v796
    %798 = vmatprep.subr.mxu0 0.0
    %v799 = vand.u32 %v53, 4294901760
    %v800 = vsub.f32 %v53, %v799
    %v801 = vand.u32 %v800, 4294901760
    %802 = vmatpush1.msra.mxu0 %v801
    %803 = vmatprep.subr.mxu0 0.0
    %v804 = vand.u32 %v54, 4294901760
    %v805 = vsub.f32 %v54, %v804
    %v806 = vand.u32 %v805, 4294901760
    %807 = vmatpush1.msra.mxu0 %v806
    %808 = vmatprep.subr.mxu0 0.0
    %v809 = vand.u32 %v55, 4294901760
    %v810 = vsub.f32 %v55, %v809
    %v811 = vand.u32 %v810, 4294901760
    %812 = vmatpush1.msra.mxu0 %v811
    %813 = vmatprep.subr.mxu0 0.0
    %v814 = vand.u32 %v56, 4294901760
    %v815 = vsub.f32 %v56, %v814
    %v816 = vand.u32 %v815, 4294901760
    %817 = vmatpush1.msra.mxu0 %v816
    %818 = vmatprep.subr.mxu0 0.0
    %v819 = vand.u32 %v57, 4294901760
    %v820 = vsub.f32 %v57, %v819
    %v821 = vand.u32 %v820, 4294901760
    %822 = vmatpush1.msra.mxu0 %v821
    %823 = vmatprep.subr.mxu0 0.0
    %v824 = vand.u32 %v58, 4294901760
    %v825 = vsub.f32 %v58, %v824
    %v826 = vand.u32 %v825, 4294901760
    %827 = vmatpush1.msra.mxu0 %v826
    %828 = vmatprep.subr.mxu0 0.0
    %v829 = vand.u32 %v59, 4294901760
    %v830 = vsub.f32 %v59, %v829
    %v831 = vand.u32 %v830, 4294901760
    %832 = vmatpush1.msra.mxu0 %v831
    %833 = vmatprep.subr.mxu0 0.0
    %v834 = vand.u32 %v60, 4294901760
    %v835 = vsub.f32 %v60, %v834
    %v836 = vand.u32 %v835, 4294901760
    %837 = vmatpush1.msra.mxu0 %v836
    %838 = vmatprep.subr.mxu0 0.0
    %v839 = vand.u32 %v61, 4294901760
    %v840 = vsub.f32 %v61, %v839
    %v841 = vand.u32 %v840, 4294901760
    %842 = vmatpush1.msra.mxu0 %v841
    %843 = vmatprep.subr.mxu0 0.0
    %v844 = vand.u32 %v62, 4294901760
    %v845 = vsub.f32 %v62, %v844
    %v846 = vand.u32 %v845, 4294901760
    %847 = vmatpush1.msra.mxu0 %v846
    %848 = vmatprep.subr.mxu0 0.0
    %v849 = vand.u32 %v63, 4294901760
    %v850 = vsub.f32 %v63, %v849
    %v851 = vand.u32 %v850, 4294901760
    %852 = vmatpush1.msra.mxu0 %v851
    %853 = vmatprep.subr.mxu0 0.0
    %v854 = vand.u32 %v64, 4294901760
    %v855 = vsub.f32 %v64, %v854
    %v856 = vand.u32 %v855, 4294901760
    %857 = vmatpush1.msra.mxu0 %v856
    %858 = vmatprep.subr.mxu0 0.0
    %v859 = vand.u32 %v65, 4294901760
    %v860 = vsub.f32 %v65, %v859
    %v861 = vand.u32 %v860, 4294901760
    %862 = vmatpush1.msra.mxu0 %v861
    %863 = vmatprep.subr.mxu0 0.0
    %v864 = vand.u32 %v66, 4294901760
    %v865 = vsub.f32 %v66, %v864
    %v866 = vand.u32 %v865, 4294901760
    %867 = vmatpush1.msra.mxu0 %v866
    %868 = vmatprep.subr.mxu0 0.0
    %v869 = vand.u32 %v67, 4294901760
    %v870 = vsub.f32 %v67, %v869
    %v871 = vand.u32 %v870, 4294901760
    %872 = vmatpush1.msra.mxu0 %v871
    %873 = vmatprep.subr.mxu0 0.0
    %v874 = vand.u32 %v68, 4294901760
    %v875 = vsub.f32 %v68, %v874
    %v876 = vand.u32 %v875, 4294901760
    %877 = vmatpush1.msra.mxu0 %v876
    %878 = vmatprep.subr.mxu0 0.0
    %v879 = vand.u32 %v69, 4294901760
    %v880 = vsub.f32 %v69, %v879
    %v881 = vand.u32 %v880, 4294901760
    %882 = vmatpush1.msra.mxu0 %v881
    %883 = vmatprep.subr.mxu0 0.0
    %v884 = vand.u32 %v70, 4294901760
    %v885 = vsub.f32 %v70, %v884
    %v886 = vand.u32 %v885, 4294901760
    %887 = vmatpush1.msra.mxu0 %v886
    %888 = vmatprep.subr.mxu0 0.0
    %v889 = vand.u32 %v71, 4294901760
    %v890 = vsub.f32 %v71, %v889
    %v891 = vand.u32 %v890, 4294901760
    %892 = vmatpush1.msra.mxu0 %v891
    %893 = vmatprep.subr.mxu0 0.0
    %v894 = vand.u32 %v72, 4294901760
    %v895 = vsub.f32 %v72, %v894
    %v896 = vand.u32 %v895, 4294901760
    %897 = vmatpush1.msra.mxu0 %v896
    %898 = vmatprep.subr.mxu0 0.0
    %v899 = vand.u32 %v73, 4294901760
    %v900 = vsub.f32 %v73, %v899
    %v901 = vand.u32 %v900, 4294901760
    %902 = vmatpush1.msra.mxu0 %v901
    %903 = vmatprep.subr.mxu0 0.0
    %v904 = vand.u32 %v74, 4294901760
    %v905 = vsub.f32 %v74, %v904
    %v906 = vand.u32 %v905, 4294901760
    %907 = vmatpush1.msra.mxu0 %v906
    %908 = vmatprep.subr.mxu0 0.0
    %v909 = vand.u32 %v75, 4294901760
    %v910 = vsub.f32 %v75, %v909
    %v911 = vand.u32 %v910, 4294901760
    %912 = vmatpush1.msra.mxu0 %v911
    %913 = vmatprep.subr.mxu0 0.0
    %v914 = vand.u32 %v76, 4294901760
    %v915 = vsub.f32 %v76, %v914
    %v916 = vand.u32 %v915, 4294901760
    %917 = vmatpush1.msra.mxu0 %v916
    %918 = vmatprep.subr.mxu0 0.0
    %v919 = vand.u32 %v77, 4294901760
    %v920 = vsub.f32 %v77, %v919
    %v921 = vand.u32 %v920, 4294901760
    %922 = vmatpush1.msra.mxu0 %v921
    %923 = vmatprep.subr.mxu0 0.0
    %v924 = vand.u32 %v78, 4294901760
    %v925 = vsub.f32 %v78, %v924
    %v926 = vand.u32 %v925, 4294901760
    %927 = vmatpush1.msra.mxu0 %v926
    %928 = vmatprep.subr.mxu0 0.0
    %v929 = vand.u32 %v79, 4294901760
    %v930 = vsub.f32 %v79, %v929
    %v931 = vand.u32 %v930, 4294901760
    %932 = vmatpush1.msra.mxu0 %v931
    %v933 = vand.u32 %v41, 4294901760
    %934 = vmatprep.mubr.f32.mxu0 %v933
    %v935 = vand.u32 %v40, 4294901760
    %936 = vmatmul.mubr.f32.gmra.mrb[0].mxu0 %v935
    %v937 = vpop.f32.mrb[0].mxu0
    %v938 = vadd.f32 %v770, %v937
    %v939 = vpop.f32.mrb[0].mxu0
    %940 = vdwg.mxu0
    %941 = vmatprep.subr.mxu0 0.0
    %v942 = vand.u32 %v48, 4294901760
    %943 = vmatpush1.msra.mxu0 %v942
    %944 = vmatprep.subr.mxu0 0.0
    %v945 = vand.u32 %v49, 4294901760
    %946 = vmatpush1.msra.mxu0 %v945
    %947 = vmatprep.subr.mxu0 0.0
    %v948 = vand.u32 %v50, 4294901760
    %949 = vmatpush1.msra.mxu0 %v948
    %950 = vmatprep.subr.mxu0 0.0
    %v951 = vand.u32 %v51, 4294901760
    %952 = vmatpush1.msra.mxu0 %v951
    %953 = vmatprep.subr.mxu0 0.0
    %v954 = vand.u32 %v52, 4294901760
    %955 = vmatpush1.msra.mxu0 %v954
    %956 = vmatprep.subr.mxu0 0.0
    %v957 = vand.u32 %v53, 4294901760
    %958 = vmatpush1.msra.mxu0 %v957
    %959 = vmatprep.subr.mxu0 0.0
    %v960 = vand.u32 %v54, 4294901760
    %961 = vmatpush1.msra.mxu0 %v960
    %962 = vmatprep.subr.mxu0 0.0
    %v963 = vand.u32 %v55, 4294901760
    %964 = vmatpush1.msra.mxu0 %v963
    %965 = vmatprep.subr.mxu0 0.0
    %v966 = vand.u32 %v56, 4294901760
    %967 = vmatpush1.msra.mxu0 %v966
    %968 = vmatprep.subr.mxu0 0.0
    %v969 = vand.u32 %v57, 4294901760
    %970 = vmatpush1.msra.mxu0 %v969
    %971 = vmatprep.subr.mxu0 0.0
    %v972 = vand.u32 %v58, 4294901760
    %973 = vmatpush1.msra.mxu0 %v972
    %974 = vmatprep.subr.mxu0 0.0
    %v975 = vand.u32 %v59, 4294901760
    %976 = vmatpush1.msra.mxu0 %v975
    %977 = vmatprep.subr.mxu0 0.0
    %v978 = vand.u32 %v60, 4294901760
    %979 = vmatpush1.msra.mxu0 %v978
    %980 = vmatprep.subr.mxu0 0.0
    %v981 = vand.u32 %v61, 4294901760
    %982 = vmatpush1.msra.mxu0 %v981
    %983 = vmatprep.subr.mxu0 0.0
    %v984 = vand.u32 %v62, 4294901760
    %985 = vmatpush1.msra.mxu0 %v984
    %986 = vmatprep.subr.mxu0 0.0
    %v987 = vand.u32 %v63, 4294901760
    %988 = vmatpush1.msra.mxu0 %v987
    %989 = vmatprep.subr.mxu0 0.0
    %v990 = vand.u32 %v64, 4294901760
    %991 = vmatpush1.msra.mxu0 %v990
    %992 = vmatprep.subr.mxu0 0.0
    %v993 = vand.u32 %v65, 4294901760
    %994 = vmatpush1.msra.mxu0 %v993
    %995 = vmatprep.subr.mxu0 0.0
    %v996 = vand.u32 %v66, 4294901760
    %997 = vmatpush1.msra.mxu0 %v996
    %998 = vmatprep.subr.mxu0 0.0
    %v999 = vand.u32 %v67, 4294901760
    %1000 = vmatpush1.msra.mxu0 %v999
    %1001 = vmatprep.subr.mxu0 0.0
    %v1002 = vand.u32 %v68, 4294901760
    %1003 = vmatpush1.msra.mxu0 %v1002
    %1004 = vmatprep.subr.mxu0 0.0
    %v1005 = vand.u32 %v69, 4294901760
    %1006 = vmatpush1.msra.mxu0 %v1005
    %1007 = vmatprep.subr.mxu0 0.0
    %v1008 = vand.u32 %v70, 4294901760
    %1009 = vmatpush1.msra.mxu0 %v1008
    %1010 = vmatprep.subr.mxu0 0.0
    %v1011 = vand.u32 %v71, 4294901760
    %1012 = vmatpush1.msra.mxu0 %v1011
    %1013 = vmatprep.subr.mxu0 0.0
    %v1014 = vand.u32 %v72, 4294901760
    %1015 = vmatpush1.msra.mxu0 %v1014
    %1016 = vmatprep.subr.mxu0 0.0
    %v1017 = vand.u32 %v73, 4294901760
    %1018 = vmatpush1.msra.mxu0 %v1017
    %1019 = vmatprep.subr.mxu0 0.0
    %v1020 = vand.u32 %v74, 4294901760
    %1021 = vmatpush1.msra.mxu0 %v1020
    %1022 = vmatprep.subr.mxu0 0.0
    %v1023 = vand.u32 %v75, 4294901760
    %1024 = vmatpush1.msra.mxu0 %v1023
    %1025 = vmatprep.subr.mxu0 0.0
    %v1026 = vand.u32 %v76, 4294901760
    %1027 = vmatpush1.msra.mxu0 %v1026
    %1028 = vmatprep.subr.mxu0 0.0
    %v1029 = vand.u32 %v77, 4294901760
    %1030 = vmatpush1.msra.mxu0 %v1029
    %1031 = vmatprep.subr.mxu0 0.0
    %v1032 = vand.u32 %v78, 4294901760
    %1033 = vmatpush1.msra.mxu0 %v1032
    %1034 = vmatprep.subr.mxu0 0.0
    %v1035 = vand.u32 %v79, 4294901760
    %1036 = vmatpush1.msra.mxu0 %v1035
    %v1037 = vand.u32 %v41, 4294901760
    %1038 = vmatprep.mubr.f32.mxu0 %v1037
    %v1039 = vand.u32 %v40, 4294901760
    %1040 = vmatmul.mubr.f32.gmra.mrb[0].mxu0 %v1039
    %v1041 = vpop.f32.mrb[0].mxu0
    %v1042 = vadd.f32 %v938, %v1041
    %v1043 = vpop.f32.mrb[0].mxu0
    %1044 = vdwg.mxu0
    %1045 = vmatprep.subr.mxu0 0.0
    %v1046 = vand.u32 %v80, 4294901760
    %1047 = vmatpush1.msra.mxu0 %v1046
    %1048 = vmatprep.subr.mxu0 0.0
    %v1049 = vand.u32 %v81, 4294901760
    %1050 = vmatpush1.msra.mxu0 %v1049
    %1051 = vmatprep.subr.mxu0 0.0
    %v1052 = vand.u32 %v82, 4294901760
    %1053 = vmatpush1.msra.mxu0 %v1052
    %1054 = vmatprep.subr.mxu0 0.0
    %v1055 = vand.u32 %v83, 4294901760
    %1056 = vmatpush1.msra.mxu0 %v1055
    %1057 = vmatprep.subr.mxu0 0.0
    %v1058 = vand.u32 %v84, 4294901760
    %1059 = vmatpush1.msra.mxu0 %v1058
    %1060 = vmatprep.subr.mxu0 0.0
    %v1061 = vand.u32 %v85, 4294901760
    %1062 = vmatpush1.msra.mxu0 %v1061
    %1063 = vmatprep.subr.mxu0 0.0
    %v1064 = vand.u32 %v86, 4294901760
    %1065 = vmatpush1.msra.mxu0 %v1064
    %1066 = vmatprep.subr.mxu0 0.0
    %v1067 = vand.u32 %v87, 4294901760
    %1068 = vmatpush1.msra.mxu0 %v1067
    %1069 = vmatprep.subr.mxu0 0.0
    %v1070 = vand.u32 %v88, 4294901760
    %1071 = vmatpush1.msra.mxu0 %v1070
    %1072 = vmatprep.subr.mxu0 0.0
    %v1073 = vand.u32 %v89, 4294901760
    %1074 = vmatpush1.msra.mxu0 %v1073
    %1075 = vmatprep.subr.mxu0 0.0
    %v1076 = vand.u32 %v90, 4294901760
    %1077 = vmatpush1.msra.mxu0 %v1076
    %1078 = vmatprep.subr.mxu0 0.0
    %v1079 = vand.u32 %v91, 4294901760
    %1080 = vmatpush1.msra.mxu0 %v1079
    %1081 = vmatprep.subr.mxu0 0.0
    %v1082 = vand.u32 %v92, 4294901760
    %1083 = vmatpush1.msra.mxu0 %v1082
    %1084 = vmatprep.subr.mxu0 0.0
    %v1085 = vand.u32 %v93, 4294901760
    %1086 = vmatpush1.msra.mxu0 %v1085
    %1087 = vmatprep.subr.mxu0 0.0
    %v1088 = vand.u32 %v94, 4294901760
    %1089 = vmatpush1.msra.mxu0 %v1088
    %1090 = vmatprep.subr.mxu0 0.0
    %v1091 = vand.u32 %v95, 4294901760
    %1092 = vmatpush1.msra.mxu0 %v1091
    %1093 = vmatprep.subr.mxu0 0.0
    %v1094 = vand.u32 %v96, 4294901760
    %1095 = vmatpush1.msra.mxu0 %v1094
    %1096 = vmatprep.subr.mxu0 0.0
    %v1097 = vand.u32 %v97, 4294901760
    %1098 = vmatpush1.msra.mxu0 %v1097
    %1099 = vmatprep.subr.mxu0 0.0
    %v1100 = vand.u32 %v98, 4294901760
    %1101 = vmatpush1.msra.mxu0 %v1100
    %1102 = vmatprep.subr.mxu0 0.0
    %v1103 = vand.u32 %v99, 4294901760
    %1104 = vmatpush1.msra.mxu0 %v1103
    %1105 = vmatprep.subr.mxu0 0.0
    %v1106 = vand.u32 %v100, 4294901760
    %1107 = vmatpush1.msra.mxu0 %v1106
    %1108 = vmatprep.subr.mxu0 0.0
    %v1109 = vand.u32 %v101, 4294901760
    %1110 = vmatpush1.msra.mxu0 %v1109
    %1111 = vmatprep.subr.mxu0 0.0
    %v1112 = vand.u32 %v102, 4294901760
    %1113 = vmatpush1.msra.mxu0 %v1112
    %1114 = vmatprep.subr.mxu0 0.0
    %v1115 = vand.u32 %v103, 4294901760
    %1116 = vmatpush1.msra.mxu0 %v1115
    %1117 = vmatprep.subr.mxu0 0.0
    %v1118 = vand.u32 %v104, 4294901760
    %1119 = vmatpush1.msra.mxu0 %v1118
    %1120 = vmatprep.subr.mxu0 0.0
    %v1121 = vand.u32 %v105, 4294901760
    %1122 = vmatpush1.msra.mxu0 %v1121
    %1123 = vmatprep.subr.mxu0 0.0
    %v1124 = vand.u32 %v106, 4294901760
    %1125 = vmatpush1.msra.mxu0 %v1124
    %1126 = vmatprep.subr.mxu0 0.0
    %v1127 = vand.u32 %v107, 4294901760
    %1128 = vmatpush1.msra.mxu0 %v1127
    %1129 = vmatprep.subr.mxu0 0.0
    %v1130 = vand.u32 %v108, 4294901760
    %1131 = vmatpush1.msra.mxu0 %v1130
    %1132 = vmatprep.subr.mxu0 0.0
    %v1133 = vand.u32 %v109, 4294901760
    %1134 = vmatpush1.msra.mxu0 %v1133
    %1135 = vmatprep.subr.mxu0 0.0
    %v1136 = vand.u32 %v110, 4294901760
    %1137 = vmatpush1.msra.mxu0 %v1136
    %1138 = vmatprep.subr.mxu0 0.0
    %v1139 = vand.u32 %v111, 4294901760
    %1140 = vmatpush1.msra.mxu0 %v1139
    %v1141 = vand.u32 %v43, 4294901760
    %v1142 = vsub.f32 %v43, %v1141
    %v1143 = vand.u32 %v1142, 4294901760
    %v1144 = vsub.f32 %v1142, %v1143
    %v1145 = vand.u32 %v1144, 4294901760
    %1146 = vmatprep.mubr.f32.mxu0 %v1145
    %v1147 = vand.u32 %v42, 4294901760
    %v1148 = vsub.f32 %v42, %v1147
    %v1149 = vand.u32 %v1148, 4294901760
    %v1150 = vsub.f32 %v1148, %v1149
    %v1151 = vand.u32 %v1150, 4294901760
    %1152 = vmatmul.mubr.f32.gmra.mrb[0].mxu0 %v1151
    %v1153 = vpop.f32.mrb[0].mxu0
    %v1154 = vadd.f32 %v1042, %v1153
    %v1155 = vpop.f32.mrb[0].mxu0
    %1156 = vdwg.mxu0
    %1157 = vmatprep.subr.mxu0 0.0
    %v1158 = vand.u32 %v80, 4294901760
    %v1159 = vsub.f32 %v80, %v1158
    %v1160 = vand.u32 %v1159, 4294901760
    %v1161 = vsub.f32 %v1159, %v1160
    %v1162 = vand.u32 %v1161, 4294901760
    %1163 = vmatpush1.msra.mxu0 %v1162
    %1164 = vmatprep.subr.mxu0 0.0
    %v1165 = vand.u32 %v81, 4294901760
    %v1166 = vsub.f32 %v81, %v1165
    %v1167 = vand.u32 %v1166, 4294901760
    %v1168 = vsub.f32 %v1166, %v1167
    %v1169 = vand.u32 %v1168, 4294901760
    %1170 = vmatpush1.msra.mxu0 %v1169
    %1171 = vmatprep.subr.mxu0 0.0
    %v1172 = vand.u32 %v82, 4294901760
    %v1173 = vsub.f32 %v82, %v1172
    %v1174 = vand.u32 %v1173, 4294901760
    %v1175 = vsub.f32 %v1173, %v1174
    %v1176 = vand.u32 %v1175, 4294901760
    %1177 = vmatpush1.msra.mxu0 %v1176
    %1178 = vmatprep.subr.mxu0 0.0
    %v1179 = vand.u32 %v83, 4294901760
    %v1180 = vsub.f32 %v83, %v1179
    %v1181 = vand.u32 %v1180, 4294901760
    %v1182 = vsub.f32 %v1180, %v1181
    %v1183 = vand.u32 %v1182, 4294901760
    %1184 = vmatpush1.msra.mxu0 %v1183
    %1185 = vmatprep.subr.mxu0 0.0
    %v1186 = vand.u32 %v84, 4294901760
    %v1187 = vsub.f32 %v84, %v1186
    %v1188 = vand.u32 %v1187, 4294901760
    %v1189 = vsub.f32 %v1187, %v1188
    %v1190 = vand.u32 %v1189, 4294901760
    %1191 = vmatpush1.msra.mxu0 %v1190
    %1192 = vmatprep.subr.mxu0 0.0
    %v1193 = vand.u32 %v85, 4294901760
    %v1194 = vsub.f32 %v85, %v1193
    %v1195 = vand.u32 %v1194, 4294901760
    %v1196 = vsub.f32 %v1194, %v1195
    %v1197 = vand.u32 %v1196, 4294901760
    %1198 = vmatpush1.msra.mxu0 %v1197
    %1199 = vmatprep.subr.mxu0 0.0
    %v1200 = vand.u32 %v86, 4294901760
    %v1201 = vsub.f32 %v86, %v1200
    %v1202 = vand.u32 %v1201, 4294901760
    %v1203 = vsub.f32 %v1201, %v1202
    %v1204 = vand.u32 %v1203, 4294901760
    %1205 = vmatpush1.msra.mxu0 %v1204
    %1206 = vmatprep.subr.mxu0 0.0
    %v1207 = vand.u32 %v87, 4294901760
    %v1208 = vsub.f32 %v87, %v1207
    %v1209 = vand.u32 %v1208, 4294901760
    %v1210 = vsub.f32 %v1208, %v1209
    %v1211 = vand.u32 %v1210, 4294901760
    %1212 = vmatpush1.msra.mxu0 %v1211
    %1213 = vmatprep.subr.mxu0 0.0
    %v1214 = vand.u32 %v88, 4294901760
    %v1215 = vsub.f32 %v88, %v1214
    %v1216 = vand.u32 %v1215, 4294901760
    %v1217 = vsub.f32 %v1215, %v1216
    %v1218 = vand.u32 %v1217, 4294901760
    %1219 = vmatpush1.msra.mxu0 %v1218
    %1220 = vmatprep.subr.mxu0 0.0
    %v1221 = vand.u32 %v89, 4294901760
    %v1222 = vsub.f32 %v89, %v1221
    %v1223 = vand.u32 %v1222, 4294901760
    %v1224 = vsub.f32 %v1222, %v1223
    %v1225 = vand.u32 %v1224, 4294901760
    %1226 = vmatpush1.msra.mxu0 %v1225
    %1227 = vmatprep.subr.mxu0 0.0
    %v1228 = vand.u32 %v90, 4294901760
    %v1229 = vsub.f32 %v90, %v1228
    %v1230 = vand.u32 %v1229, 4294901760
    %v1231 = vsub.f32 %v1229, %v1230
    %v1232 = vand.u32 %v1231, 4294901760
    %1233 = vmatpush1.msra.mxu0 %v1232
    %1234 = vmatprep.subr.mxu0 0.0
    %v1235 = vand.u32 %v91, 4294901760
    %v1236 = vsub.f32 %v91, %v1235
    %v1237 = vand.u32 %v1236, 4294901760
    %v1238 = vsub.f32 %v1236, %v1237
    %v1239 = vand.u32 %v1238, 4294901760
    %1240 = vmatpush1.msra.mxu0 %v1239
    %1241 = vmatprep.subr.mxu0 0.0
    %v1242 = vand.u32 %v92, 4294901760
    %v1243 = vsub.f32 %v92, %v1242
    %v1244 = vand.u32 %v1243, 4294901760
    %v1245 = vsub.f32 %v1243, %v1244
    %v1246 = vand.u32 %v1245, 4294901760
    %1247 = vmatpush1.msra.mxu0 %v1246
    %1248 = vmatprep.subr.mxu0 0.0
    %v1249 = vand.u32 %v93, 4294901760
    %v1250 = vsub.f32 %v93, %v1249
    %v1251 = vand.u32 %v1250, 4294901760
    %v1252 = vsub.f32 %v1250, %v1251
    %v1253 = vand.u32 %v1252, 4294901760
    %1254 = vmatpush1.msra.mxu0 %v1253
    %1255 = vmatprep.subr.mxu0 0.0
    %v1256 = vand.u32 %v94, 4294901760
    %v1257 = vsub.f32 %v94, %v1256
    %v1258 = vand.u32 %v1257, 4294901760
    %v1259 = vsub.f32 %v1257, %v1258
    %v1260 = vand.u32 %v1259, 4294901760
    %1261 = vmatpush1.msra.mxu0 %v1260
    %1262 = vmatprep.subr.mxu0 0.0
    %v1263 = vand.u32 %v95, 4294901760
    %v1264 = vsub.f32 %v95, %v1263
    %v1265 = vand.u32 %v1264, 4294901760
    %v1266 = vsub.f32 %v1264, %v1265
    %v1267 = vand.u32 %v1266, 4294901760
    %1268 = vmatpush1.msra.mxu0 %v1267
    %1269 = vmatprep.subr.mxu0 0.0
    %v1270 = vand.u32 %v96, 4294901760
    %v1271 = vsub.f32 %v96, %v1270
    %v1272 = vand.u32 %v1271, 4294901760
    %v1273 = vsub.f32 %v1271, %v1272
    %v1274 = vand.u32 %v1273, 4294901760
    %1275 = vmatpush1.msra.mxu0 %v1274
    %1276 = vmatprep.subr.mxu0 0.0
    %v1277 = vand.u32 %v97, 4294901760
    %v1278 = vsub.f32 %v97, %v1277
    %v1279 = vand.u32 %v1278, 4294901760
    %v1280 = vsub.f32 %v1278, %v1279
    %v1281 = vand.u32 %v1280, 4294901760
    %1282 = vmatpush1.msra.mxu0 %v1281
    %1283 = vmatprep.subr.mxu0 0.0
    %v1284 = vand.u32 %v98, 4294901760
    %v1285 = vsub.f32 %v98, %v1284
    %v1286 = vand.u32 %v1285, 4294901760
    %v1287 = vsub.f32 %v1285, %v1286
    %v1288 = vand.u32 %v1287, 4294901760
    %1289 = vmatpush1.msra.mxu0 %v1288
    %1290 = vmatprep.subr.mxu0 0.0
    %v1291 = vand.u32 %v99, 4294901760
    %v1292 = vsub.f32 %v99, %v1291
    %v1293 = vand.u32 %v1292, 4294901760
    %v1294 = vsub.f32 %v1292, %v1293
    %v1295 = vand.u32 %v1294, 4294901760
    %1296 = vmatpush1.msra.mxu0 %v1295
    %1297 = vmatprep.subr.mxu0 0.0
    %v1298 = vand.u32 %v100, 4294901760
    %v1299 = vsub.f32 %v100, %v1298
    %v1300 = vand.u32 %v1299, 4294901760
    %v1301 = vsub.f32 %v1299, %v1300
    %v1302 = vand.u32 %v1301, 4294901760
    %1303 = vmatpush1.msra.mxu0 %v1302
    %1304 = vmatprep.subr.mxu0 0.0
    %v1305 = vand.u32 %v101, 4294901760
    %v1306 = vsub.f32 %v101, %v1305
    %v1307 = vand.u32 %v1306, 4294901760
    %v1308 = vsub.f32 %v1306, %v1307
    %v1309 = vand.u32 %v1308, 4294901760
    %1310 = vmatpush1.msra.mxu0 %v1309
    %1311 = vmatprep.subr.mxu0 0.0
    %v1312 = vand.u32 %v102, 4294901760
    %v1313 = vsub.f32 %v102, %v1312
    %v1314 = vand.u32 %v1313, 4294901760
    %v1315 = vsub.f32 %v1313, %v1314
    %v1316 = vand.u32 %v1315, 4294901760
    %1317 = vmatpush1.msra.mxu0 %v1316
    %1318 = vmatprep.subr.mxu0 0.0
    %v1319 = vand.u32 %v103, 4294901760
    %v1320 = vsub.f32 %v103, %v1319
    %v1321 = vand.u32 %v1320, 4294901760
    %v1322 = vsub.f32 %v1320, %v1321
    %v1323 = vand.u32 %v1322, 4294901760
    %1324 = vmatpush1.msra.mxu0 %v1323
    %1325 = vmatprep.subr.mxu0 0.0
    %v1326 = vand.u32 %v104, 4294901760
    %v1327 = vsub.f32 %v104, %v1326
    %v1328 = vand.u32 %v1327, 4294901760
    %v1329 = vsub.f32 %v1327, %v1328
    %v1330 = vand.u32 %v1329, 4294901760
    %1331 = vmatpush1.msra.mxu0 %v1330
    %1332 = vmatprep.subr.mxu0 0.0
    %v1333 = vand.u32 %v105, 4294901760
    %v1334 = vsub.f32 %v105, %v1333
    %v1335 = vand.u32 %v1334, 4294901760
    %v1336 = vsub.f32 %v1334, %v1335
    %v1337 = vand.u32 %v1336, 4294901760
    %1338 = vmatpush1.msra.mxu0 %v1337
    %1339 = vmatprep.subr.mxu0 0.0
    %v1340 = vand.u32 %v106, 4294901760
    %v1341 = vsub.f32 %v106, %v1340
    %v1342 = vand.u32 %v1341, 4294901760
    %v1343 = vsub.f32 %v1341, %v1342
    %v1344 = vand.u32 %v1343, 4294901760
    %1345 = vmatpush1.msra.mxu0 %v1344
    %1346 = vmatprep.subr.mxu0 0.0
    %v1347 = vand.u32 %v107, 4294901760
    %v1348 = vsub.f32 %v107, %v1347
    %v1349 = vand.u32 %v1348, 4294901760
    %v1350 = vsub.f32 %v1348, %v1349
    %v1351 = vand.u32 %v1350, 4294901760
    %1352 = vmatpush1.msra.mxu0 %v1351
    %1353 = vmatprep.subr.mxu0 0.0
    %v1354 = vand.u32 %v108, 4294901760
    %v1355 = vsub.f32 %v108, %v1354
    %v1356 = vand.u32 %v1355, 4294901760
    %v1357 = vsub.f32 %v1355, %v1356
    %v1358 = vand.u32 %v1357, 4294901760
    %1359 = vmatpush1.msra.mxu0 %v1358
    %1360 = vmatprep.subr.mxu0 0.0
    %v1361 = vand.u32 %v109, 4294901760
    %v1362 = vsub.f32 %v109, %v1361
    %v1363 = vand.u32 %v1362, 4294901760
    %v1364 = vsub.f32 %v1362, %v1363
    %v1365 = vand.u32 %v1364, 4294901760
    %1366 = vmatpush1.msra.mxu0 %v1365
    %1367 = vmatprep.subr.mxu0 0.0
    %v1368 = vand.u32 %v110, 4294901760
    %v1369 = vsub.f32 %v110, %v1368
    %v1370 = vand.u32 %v1369, 4294901760
    %v1371 = vsub.f32 %v1369, %v1370
    %v1372 = vand.u32 %v1371, 4294901760
    %1373 = vmatpush1.msra.mxu0 %v1372
    %1374 = vmatprep.subr.mxu0 0.0
    %v1375 = vand.u32 %v111, 4294901760
    %v1376 = vsub.f32 %v111, %v1375
    %v1377 = vand.u32 %v1376, 4294901760
    %v1378 = vsub.f32 %v1376, %v1377
    %v1379 = vand.u32 %v1378, 4294901760
    %1380 = vmatpush1.msra.mxu0 %v1379
    %v1381 = vand.u32 %v43, 4294901760
    %1382 = vmatprep.mubr.f32.mxu0 %v1381
    %v1383 = vand.u32 %v42, 4294901760
    %1384 = vmatmul.mubr.f32.gmra.mrb[0].mxu0 %v1383
    %v1385 = vpop.f32.mrb[0].mxu0
    %v1386 = vadd.f32 %v1154, %v1385
    %v1387 = vpop.f32.mrb[0].mxu0
    %1388 = vdwg.mxu0
    %1389 = vmatprep.subr.mxu0 0.0
    %v1390 = vand.u32 %v80, 4294901760
    %v1391 = vsub.f32 %v80, %v1390
    %1392 = vmatpush1.msra.mxu0 %v1391
    %1393 = vmatprep.subr.mxu0 0.0
    %v1394 = vand.u32 %v81, 4294901760
    %v1395 = vsub.f32 %v81, %v1394
    %1396 = vmatpush1.msra.mxu0 %v1395
    %1397 = vmatprep.subr.mxu0 0.0
    %v1398 = vand.u32 %v82, 4294901760
    %v1399 = vsub.f32 %v82, %v1398
    %1400 = vmatpush1.msra.mxu0 %v1399
    %1401 = vmatprep.subr.mxu0 0.0
    %v1402 = vand.u32 %v83, 4294901760
    %v1403 = vsub.f32 %v83, %v1402
    %1404 = vmatpush1.msra.mxu0 %v1403
    %1405 = vmatprep.subr.mxu0 0.0
    %v1406 = vand.u32 %v84, 4294901760
    %v1407 = vsub.f32 %v84, %v1406
    %1408 = vmatpush1.msra.mxu0 %v1407
    %1409 = vmatprep.subr.mxu0 0.0
    %v1410 = vand.u32 %v85, 4294901760
    %v1411 = vsub.f32 %v85, %v1410
    %1412 = vmatpush1.msra.mxu0 %v1411
    %1413 = vmatprep.subr.mxu0 0.0
    %v1414 = vand.u32 %v86, 4294901760
    %v1415 = vsub.f32 %v86, %v1414
    %1416 = vmatpush1.msra.mxu0 %v1415
    %1417 = vmatprep.subr.mxu0 0.0
    %v1418 = vand.u32 %v87, 4294901760
    %v1419 = vsub.f32 %v87, %v1418
    %1420 = vmatpush1.msra.mxu0 %v1419
    %1421 = vmatprep.subr.mxu0 0.0
    %v1422 = vand.u32 %v88, 4294901760
    %v1423 = vsub.f32 %v88, %v1422
    %1424 = vmatpush1.msra.mxu0 %v1423
    %1425 = vmatprep.subr.mxu0 0.0
    %v1426 = vand.u32 %v89, 4294901760
    %v1427 = vsub.f32 %v89, %v1426
    %1428 = vmatpush1.msra.mxu0 %v1427
    %1429 = vmatprep.subr.mxu0 0.0
    %v1430 = vand.u32 %v90, 4294901760
    %v1431 = vsub.f32 %v90, %v1430
    %1432 = vmatpush1.msra.mxu0 %v1431
    %1433 = vmatprep.subr.mxu0 0.0
    %v1434 = vand.u32 %v91, 4294901760
    %v1435 = vsub.f32 %v91, %v1434
    %1436 = vmatpush1.msra.mxu0 %v1435
    %1437 = vmatprep.subr.mxu0 0.0
    %v1438 = vand.u32 %v92, 4294901760
    %v1439 = vsub.f32 %v92, %v1438
    %1440 = vmatpush1.msra.mxu0 %v1439
    %1441 = vmatprep.subr.mxu0 0.0
    %v1442 = vand.u32 %v93, 4294901760
    %v1443 = vsub.f32 %v93, %v1442
    %1444 = vmatpush1.msra.mxu0 %v1443
    %1445 = vmatprep.subr.mxu0 0.0
    %v1446 = vand.u32 %v94, 4294901760
    %v1447 = vsub.f32 %v94, %v1446
    %1448 = vmatpush1.msra.mxu0 %v1447
    %1449 = vmatprep.subr.mxu0 0.0
    %v1450 = vand.u32 %v95, 4294901760
    %v1451 = vsub.f32 %v95, %v1450
    %1452 = vmatpush1.msra.mxu0 %v1451
    %1453 = vmatprep.subr.mxu0 0.0
    %v1454 = vand.u32 %v96, 4294901760
    %v1455 = vsub.f32 %v96, %v1454
    %1456 = vmatpush1.msra.mxu0 %v1455
    %1457 = vmatprep.subr.mxu0 0.0
    %v1458 = vand.u32 %v97, 4294901760
    %v1459 = vsub.f32 %v97, %v1458
    %1460 = vmatpush1.msra.mxu0 %v1459
    %1461 = vmatprep.subr.mxu0 0.0
    %v1462 = vand.u32 %v98, 4294901760
    %v1463 = vsub.f32 %v98, %v1462
    %1464 = vmatpush1.msra.mxu0 %v1463
    %1465 = vmatprep.subr.mxu0 0.0
    %v1466 = vand.u32 %v99, 4294901760
    %v1467 = vsub.f32 %v99, %v1466
    %1468 = vmatpush1.msra.mxu0 %v1467
    %1469 = vmatprep.subr.mxu0 0.0
    %v1470 = vand.u32 %v100, 4294901760
    %v1471 = vsub.f32 %v100, %v1470
    %1472 = vmatpush1.msra.mxu0 %v1471
    %1473 = vmatprep.subr.mxu0 0.0
    %v1474 = vand.u32 %v101, 4294901760
    %v1475 = vsub.f32 %v101, %v1474
    %1476 = vmatpush1.msra.mxu0 %v1475
    %1477 = vmatprep.subr.mxu0 0.0
    %v1478 = vand.u32 %v102, 4294901760
    %v1479 = vsub.f32 %v102, %v1478
    %1480 = vmatpush1.msra.mxu0 %v1479
    %1481 = vmatprep.subr.mxu0 0.0
    %v1482 = vand.u32 %v103, 4294901760
    %v1483 = vsub.f32 %v103, %v1482
    %1484 = vmatpush1.msra.mxu0 %v1483
    %1485 = vmatprep.subr.mxu0 0.0
    %v1486 = vand.u32 %v104, 4294901760
    %v1487 = vsub.f32 %v104, %v1486
    %1488 = vmatpush1.msra.mxu0 %v1487
    %1489 = vmatprep.subr.mxu0 0.0
    %v1490 = vand.u32 %v105, 4294901760
    %v1491 = vsub.f32 %v105, %v1490
    %1492 = vmatpush1.msra.mxu0 %v1491
    %1493 = vmatprep.subr.mxu0 0.0
    %v1494 = vand.u32 %v106, 4294901760
    %v1495 = vsub.f32 %v106, %v1494
    %1496 = vmatpush1.msra.mxu0 %v1495
    %1497 = vmatprep.subr.mxu0 0.0
    %v1498 = vand.u32 %v107, 4294901760
    %v1499 = vsub.f32 %v107, %v1498
    %1500 = vmatpush1.msra.mxu0 %v1499
    %1501 = vmatprep.subr.mxu0 0.0
    %v1502 = vand.u32 %v108, 4294901760
    %v1503 = vsub.f32 %v108, %v1502
    %1504 = vmatpush1.msra.mxu0 %v1503
    %1505 = vmatprep.subr.mxu0 0.0
    %v1506 = vand.u32 %v109, 4294901760
    %v1507 = vsub.f32 %v109, %v1506
    %1508 = vmatpush1.msra.mxu0 %v1507
    %1509 = vmatprep.subr.mxu0 0.0
    %v1510 = vand.u32 %v110, 4294901760
    %v1511 = vsub.f32 %v110, %v1510
    %1512 = vmatpush1.msra.mxu0 %v1511
    %1513 = vmatprep.subr.mxu0 0.0
    %v1514 = vand.u32 %v111, 4294901760
    %v1515 = vsub.f32 %v111, %v1514
    %1516 = vmatpush1.msra.mxu0 %v1515
    %v1517 = vand.u32 %v43, 4294901760
    %v1518 = vsub.f32 %v43, %v1517
    %1519 = vmatprep.mubr.f32.mxu0 %v1518
    %v1520 = vand.u32 %v42, 4294901760
    %v1521 = vsub.f32 %v42, %v1520
    %1522 = vmatmul.mubr.f32.gmra.mrb[0].mxu0 %v1521
    %v1523 = vpop.f32.mrb[0].mxu0
    %v1524 = vadd.f32 %v1386, %v1523
    %v1525 = vpop.f32.mrb[0].mxu0
    %1526 = vdwg.mxu0
    %1527 = vmatprep.subr.mxu0 0.0
    %v1528 = vand.u32 %v80, 4294901760
    %1529 = vmatpush1.msra.mxu0 %v1528
    %1530 = vmatprep.subr.mxu0 0.0
    %v1531 = vand.u32 %v81, 4294901760
    %1532 = vmatpush1.msra.mxu0 %v1531
    %1533 = vmatprep.subr.mxu0 0.0
    %v1534 = vand.u32 %v82, 4294901760
    %1535 = vmatpush1.msra.mxu0 %v1534
    %1536 = vmatprep.subr.mxu0 0.0
    %v1537 = vand.u32 %v83, 4294901760
    %1538 = vmatpush1.msra.mxu0 %v1537
    %1539 = vmatprep.subr.mxu0 0.0
    %v1540 = vand.u32 %v84, 4294901760
    %1541 = vmatpush1.msra.mxu0 %v1540
    %1542 = vmatprep.subr.mxu0 0.0
    %v1543 = vand.u32 %v85, 4294901760
    %1544 = vmatpush1.msra.mxu0 %v1543
    %1545 = vmatprep.subr.mxu0 0.0
    %v1546 = vand.u32 %v86, 4294901760
    %1547 = vmatpush1.msra.mxu0 %v1546
    %1548 = vmatprep.subr.mxu0 0.0
    %v1549 = vand.u32 %v87, 4294901760
    %1550 = vmatpush1.msra.mxu0 %v1549
    %1551 = vmatprep.subr.mxu0 0.0
    %v1552 = vand.u32 %v88, 4294901760
    %1553 = vmatpush1.msra.mxu0 %v1552
    %1554 = vmatprep.subr.mxu0 0.0
    %v1555 = vand.u32 %v89, 4294901760
    %1556 = vmatpush1.msra.mxu0 %v1555
    %1557 = vmatprep.subr.mxu0 0.0
    %v1558 = vand.u32 %v90, 4294901760
    %1559 = vmatpush1.msra.mxu0 %v1558
    %1560 = vmatprep.subr.mxu0 0.0
    %v1561 = vand.u32 %v91, 4294901760
    %1562 = vmatpush1.msra.mxu0 %v1561
    %1563 = vmatprep.subr.mxu0 0.0
    %v1564 = vand.u32 %v92, 4294901760
    %1565 = vmatpush1.msra.mxu0 %v1564
    %1566 = vmatprep.subr.mxu0 0.0
    %v1567 = vand.u32 %v93, 4294901760
    %1568 = vmatpush1.msra.mxu0 %v1567
    %1569 = vmatprep.subr.mxu0 0.0
    %v1570 = vand.u32 %v94, 4294901760
    %1571 = vmatpush1.msra.mxu0 %v1570
    %1572 = vmatprep.subr.mxu0 0.0
    %v1573 = vand.u32 %v95, 4294901760
    %1574 = vmatpush1.msra.mxu0 %v1573
    %1575 = vmatprep.subr.mxu0 0.0
    %v1576 = vand.u32 %v96, 4294901760
    %1577 = vmatpush1.msra.mxu0 %v1576
    %1578 = vmatprep.subr.mxu0 0.0
    %v1579 = vand.u32 %v97, 4294901760
    %1580 = vmatpush1.msra.mxu0 %v1579
    %1581 = vmatprep.subr.mxu0 0.0
    %v1582 = vand.u32 %v98, 4294901760
    %1583 = vmatpush1.msra.mxu0 %v1582
    %1584 = vmatprep.subr.mxu0 0.0
    %v1585 = vand.u32 %v99, 4294901760
    %1586 = vmatpush1.msra.mxu0 %v1585
    %1587 = vmatprep.subr.mxu0 0.0
    %v1588 = vand.u32 %v100, 4294901760
    %1589 = vmatpush1.msra.mxu0 %v1588
    %1590 = vmatprep.subr.mxu0 0.0
    %v1591 = vand.u32 %v101, 4294901760
    %1592 = vmatpush1.msra.mxu0 %v1591
    %1593 = vmatprep.subr.mxu0 0.0
    %v1594 = vand.u32 %v102, 4294901760
    %1595 = vmatpush1.msra.mxu0 %v1594
    %1596 = vmatprep.subr.mxu0 0.0
    %v1597 = vand.u32 %v103, 4294901760
    %1598 = vmatpush1.msra.mxu0 %v1597
    %1599 = vmatprep.subr.mxu0 0.0
    %v1600 = vand.u32 %v104, 4294901760
    %1601 = vmatpush1.msra.mxu0 %v1600
    %1602 = vmatprep.subr.mxu0 0.0
    %v1603 = vand.u32 %v105, 4294901760
    %1604 = vmatpush1.msra.mxu0 %v1603
    %1605 = vmatprep.subr.mxu0 0.0
    %v1606 = vand.u32 %v106, 4294901760
    %1607 = vmatpush1.msra.mxu0 %v1606
    %1608 = vmatprep.subr.mxu0 0.0
    %v1609 = vand.u32 %v107, 4294901760
    %1610 = vmatpush1.msra.mxu0 %v1609
    %1611 = vmatprep.subr.mxu0 0.0
    %v1612 = vand.u32 %v108, 4294901760
    %1613 = vmatpush1.msra.mxu0 %v1612
    %1614 = vmatprep.subr.mxu0 0.0
    %v1615 = vand.u32 %v109, 4294901760
    %1616 = vmatpush1.msra.mxu0 %v1615
    %1617 = vmatprep.subr.mxu0 0.0
    %v1618 = vand.u32 %v110, 4294901760
    %1619 = vmatpush1.msra.mxu0 %v1618
    %1620 = vmatprep.subr.mxu0 0.0
    %v1621 = vand.u32 %v111, 4294901760
    %1622 = vmatpush1.msra.mxu0 %v1621
    %v1623 = vand.u32 %v43, 4294901760
    %v1624 = vsub.f32 %v43, %v1623
    %v1625 = vand.u32 %v1624, 4294901760
    %1626 = vmatprep.mubr.f32.mxu0 %v1625
    %v1627 = vand.u32 %v42, 4294901760
    %v1628 = vsub.f32 %v42, %v1627
    %v1629 = vand.u32 %v1628, 4294901760
    %1630 = vmatmul.mubr.f32.gmra.mrb[0].mxu0 %v1629
    %v1631 = vpop.f32.mrb[0].mxu0
    %v1632 = vadd.f32 %v1524, %v1631
    %v1633 = vpop.f32.mrb[0].mxu0
    %1634 = vdwg.mxu0
    %1635 = vmatprep.subr.mxu0 0.0
    %v1636 = vand.u32 %v80, 4294901760
    %v1637 = vsub.f32 %v80, %v1636
    %v1638 = vand.u32 %v1637, 4294901760
    %1639 = vmatpush1.msra.mxu0 %v1638
    %1640 = vmatprep.subr.mxu0 0.0
    %v1641 = vand.u32 %v81, 4294901760
    %v1642 = vsub.f32 %v81, %v1641
    %v1643 = vand.u32 %v1642, 4294901760
    %1644 = vmatpush1.msra.mxu0 %v1643
    %1645 = vmatprep.subr.mxu0 0.0
    %v1646 = vand.u32 %v82, 4294901760
    %v1647 = vsub.f32 %v82, %v1646
    %v1648 = vand.u32 %v1647, 4294901760
    %1649 = vmatpush1.msra.mxu0 %v1648
    %1650 = vmatprep.subr.mxu0 0.0
    %v1651 = vand.u32 %v83, 4294901760
    %v1652 = vsub.f32 %v83, %v1651
    %v1653 = vand.u32 %v1652, 4294901760
    %1654 = vmatpush1.msra.mxu0 %v1653
    %1655 = vmatprep.subr.mxu0 0.0
    %v1656 = vand.u32 %v84, 4294901760
    %v1657 = vsub.f32 %v84, %v1656
    %v1658 = vand.u32 %v1657, 4294901760
    %1659 = vmatpush1.msra.mxu0 %v1658
    %1660 = vmatprep.subr.mxu0 0.0
    %v1661 = vand.u32 %v85, 4294901760
    %v1662 = vsub.f32 %v85, %v1661
    %v1663 = vand.u32 %v1662, 4294901760
    %1664 = vmatpush1.msra.mxu0 %v1663
    %1665 = vmatprep.subr.mxu0 0.0
    %v1666 = vand.u32 %v86, 4294901760
    %v1667 = vsub.f32 %v86, %v1666
    %v1668 = vand.u32 %v1667, 4294901760
    %1669 = vmatpush1.msra.mxu0 %v1668
    %1670 = vmatprep.subr.mxu0 0.0
    %v1671 = vand.u32 %v87, 4294901760
    %v1672 = vsub.f32 %v87, %v1671
    %v1673 = vand.u32 %v1672, 4294901760
    %1674 = vmatpush1.msra.mxu0 %v1673
    %1675 = vmatprep.subr.mxu0 0.0
    %v1676 = vand.u32 %v88, 4294901760
    %v1677 = vsub.f32 %v88, %v1676
    %v1678 = vand.u32 %v1677, 4294901760
    %1679 = vmatpush1.msra.mxu0 %v1678
    %1680 = vmatprep.subr.mxu0 0.0
    %v1681 = vand.u32 %v89, 4294901760
    %v1682 = vsub.f32 %v89, %v1681
    %v1683 = vand.u32 %v1682, 4294901760
    %1684 = vmatpush1.msra.mxu0 %v1683
    %1685 = vmatprep.subr.mxu0 0.0
    %v1686 = vand.u32 %v90, 4294901760
    %v1687 = vsub.f32 %v90, %v1686
    %v1688 = vand.u32 %v1687, 4294901760
    %1689 = vmatpush1.msra.mxu0 %v1688
    %1690 = vmatprep.subr.mxu0 0.0
    %v1691 = vand.u32 %v91, 4294901760
    %v1692 = vsub.f32 %v91, %v1691
    %v1693 = vand.u32 %v1692, 4294901760
    %1694 = vmatpush1.msra.mxu0 %v1693
    %1695 = vmatprep.subr.mxu0 0.0
    %v1696 = vand.u32 %v92, 4294901760
    %v1697 = vsub.f32 %v92, %v1696
    %v1698 = vand.u32 %v1697, 4294901760
    %1699 = vmatpush1.msra.mxu0 %v1698
    %1700 = vmatprep.subr.mxu0 0.0
    %v1701 = vand.u32 %v93, 4294901760
    %v1702 = vsub.f32 %v93, %v1701
    %v1703 = vand.u32 %v1702, 4294901760
    %1704 = vmatpush1.msra.mxu0 %v1703
    %1705 = vmatprep.subr.mxu0 0.0
    %v1706 = vand.u32 %v94, 4294901760
    %v1707 = vsub.f32 %v94, %v1706
    %v1708 = vand.u32 %v1707, 4294901760
    %1709 = vmatpush1.msra.mxu0 %v1708
    %1710 = vmatprep.subr.mxu0 0.0
    %v1711 = vand.u32 %v95, 4294901760
    %v1712 = vsub.f32 %v95, %v1711
    %v1713 = vand.u32 %v1712, 4294901760
    %1714 = vmatpush1.msra.mxu0 %v1713
    %1715 = vmatprep.subr.mxu0 0.0
    %v1716 = vand.u32 %v96, 4294901760
    %v1717 = vsub.f32 %v96, %v1716
    %v1718 = vand.u32 %v1717, 4294901760
    %1719 = vmatpush1.msra.mxu0 %v1718
    %1720 = vmatprep.subr.mxu0 0.0
    %v1721 = vand.u32 %v97, 4294901760
    %v1722 = vsub.f32 %v97, %v1721
    %v1723 = vand.u32 %v1722, 4294901760
    %1724 = vmatpush1.msra.mxu0 %v1723
    %1725 = vmatprep.subr.mxu0 0.0
    %v1726 = vand.u32 %v98, 4294901760
    %v1727 = vsub.f32 %v98, %v1726
    %v1728 = vand.u32 %v1727, 4294901760
    %1729 = vmatpush1.msra.mxu0 %v1728
    %1730 = vmatprep.subr.mxu0 0.0
    %v1731 = vand.u32 %v99, 4294901760
    %v1732 = vsub.f32 %v99, %v1731
    %v1733 = vand.u32 %v1732, 4294901760
    %1734 = vmatpush1.msra.mxu0 %v1733
    %1735 = vmatprep.subr.mxu0 0.0
    %v1736 = vand.u32 %v100, 4294901760
    %v1737 = vsub.f32 %v100, %v1736
    %v1738 = vand.u32 %v1737, 4294901760
    %1739 = vmatpush1.msra.mxu0 %v1738
    %1740 = vmatprep.subr.mxu0 0.0
    %v1741 = vand.u32 %v101, 4294901760
    %v1742 = vsub.f32 %v101, %v1741
    %v1743 = vand.u32 %v1742, 4294901760
    %1744 = vmatpush1.msra.mxu0 %v1743
    %1745 = vmatprep.subr.mxu0 0.0
    %v1746 = vand.u32 %v102, 4294901760
    %v1747 = vsub.f32 %v102, %v1746
    %v1748 = vand.u32 %v1747, 4294901760
    %1749 = vmatpush1.msra.mxu0 %v1748
    %1750 = vmatprep.subr.mxu0 0.0
    %v1751 = vand.u32 %v103, 4294901760
    %v1752 = vsub.f32 %v103, %v1751
    %v1753 = vand.u32 %v1752, 4294901760
    %1754 = vmatpush1.msra.mxu0 %v1753
    %1755 = vmatprep.subr.mxu0 0.0
    %v1756 = vand.u32 %v104, 4294901760
    %v1757 = vsub.f32 %v104, %v1756
    %v1758 = vand.u32 %v1757, 4294901760
    %1759 = vmatpush1.msra.mxu0 %v1758
    %1760 = vmatprep.subr.mxu0 0.0
    %v1761 = vand.u32 %v105, 4294901760
    %v1762 = vsub.f32 %v105, %v1761
    %v1763 = vand.u32 %v1762, 4294901760
    %1764 = vmatpush1.msra.mxu0 %v1763
    %1765 = vmatprep.subr.mxu0 0.0
    %v1766 = vand.u32 %v106, 4294901760
    %v1767 = vsub.f32 %v106, %v1766
    %v1768 = vand.u32 %v1767, 4294901760
    %1769 = vmatpush1.msra.mxu0 %v1768
    %1770 = vmatprep.subr.mxu0 0.0
    %v1771 = vand.u32 %v107, 4294901760
    %v1772 = vsub.f32 %v107, %v1771
    %v1773 = vand.u32 %v1772, 4294901760
    %1774 = vmatpush1.msra.mxu0 %v1773
    %1775 = vmatprep.subr.mxu0 0.0
    %v1776 = vand.u32 %v108, 4294901760
    %v1777 = vsub.f32 %v108, %v1776
    %v1778 = vand.u32 %v1777, 4294901760
    %1779 = vmatpush1.msra.mxu0 %v1778
    %1780 = vmatprep.subr.mxu0 0.0
    %v1781 = vand.u32 %v109, 4294901760
    %v1782 = vsub.f32 %v109, %v1781
    %v1783 = vand.u32 %v1782, 4294901760
    %1784 = vmatpush1.msra.mxu0 %v1783
    %1785 = vmatprep.subr.mxu0 0.0
    %v1786 = vand.u32 %v110, 4294901760
    %v1787 = vsub.f32 %v110, %v1786
    %v1788 = vand.u32 %v1787, 4294901760
    %1789 = vmatpush1.msra.mxu0 %v1788
    %1790 = vmatprep.subr.mxu0 0.0
    %v1791 = vand.u32 %v111, 4294901760
    %v1792 = vsub.f32 %v111, %v1791
    %v1793 = vand.u32 %v1792, 4294901760
    %1794 = vmatpush1.msra.mxu0 %v1793
    %v1795 = vand.u32 %v43, 4294901760
    %1796 = vmatprep.mubr.f32.mxu0 %v1795
    %v1797 = vand.u32 %v42, 4294901760
    %1798 = vmatmul.mubr.f32.gmra.mrb[0].mxu0 %v1797
    %v1799 = vpop.f32.mrb[0].mxu0
    %v1800 = vadd.f32 %v1632, %v1799
    %v1801 = vpop.f32.mrb[0].mxu0
    %1802 = vdwg.mxu0
    %1803 = vmatprep.subr.mxu0 0.0
    %v1804 = vand.u32 %v80, 4294901760
    %1805 = vmatpush1.msra.mxu0 %v1804
    %1806 = vmatprep.subr.mxu0 0.0
    %v1807 = vand.u32 %v81, 4294901760
    %1808 = vmatpush1.msra.mxu0 %v1807
    %1809 = vmatprep.subr.mxu0 0.0
    %v1810 = vand.u32 %v82, 4294901760
    %1811 = vmatpush1.msra.mxu0 %v1810
    %1812 = vmatprep.subr.mxu0 0.0
    %v1813 = vand.u32 %v83, 4294901760
    %1814 = vmatpush1.msra.mxu0 %v1813
    %1815 = vmatprep.subr.mxu0 0.0
    %v1816 = vand.u32 %v84, 4294901760
    %1817 = vmatpush1.msra.mxu0 %v1816
    %1818 = vmatprep.subr.mxu0 0.0
    %v1819 = vand.u32 %v85, 4294901760
    %1820 = vmatpush1.msra.mxu0 %v1819
    %1821 = vmatprep.subr.mxu0 0.0
    %v1822 = vand.u32 %v86, 4294901760
    %1823 = vmatpush1.msra.mxu0 %v1822
    %1824 = vmatprep.subr.mxu0 0.0
    %v1825 = vand.u32 %v87, 4294901760
    %1826 = vmatpush1.msra.mxu0 %v1825
    %1827 = vmatprep.subr.mxu0 0.0
    %v1828 = vand.u32 %v88, 4294901760
    %1829 = vmatpush1.msra.mxu0 %v1828
    %1830 = vmatprep.subr.mxu0 0.0
    %v1831 = vand.u32 %v89, 4294901760
    %1832 = vmatpush1.msra.mxu0 %v1831
    %1833 = vmatprep.subr.mxu0 0.0
    %v1834 = vand.u32 %v90, 4294901760
    %1835 = vmatpush1.msra.mxu0 %v1834
    %1836 = vmatprep.subr.mxu0 0.0
    %v1837 = vand.u32 %v91, 4294901760
    %1838 = vmatpush1.msra.mxu0 %v1837
    %1839 = vmatprep.subr.mxu0 0.0
    %v1840 = vand.u32 %v92, 4294901760
    %1841 = vmatpush1.msra.mxu0 %v1840
    %1842 = vmatprep.subr.mxu0 0.0
    %v1843 = vand.u32 %v93, 4294901760
    %1844 = vmatpush1.msra.mxu0 %v1843
    %1845 = vmatprep.subr.mxu0 0.0
    %v1846 = vand.u32 %v94, 4294901760
    %1847 = vmatpush1.msra.mxu0 %v1846
    %1848 = vmatprep.subr.mxu0 0.0
    %v1849 = vand.u32 %v95, 4294901760
    %1850 = vmatpush1.msra.mxu0 %v1849
    %1851 = vmatprep.subr.mxu0 0.0
    %v1852 = vand.u32 %v96, 4294901760
    %1853 = vmatpush1.msra.mxu0 %v1852
    %1854 = vmatprep.subr.mxu0 0.0
    %v1855 = vand.u32 %v97, 4294901760
    %1856 = vmatpush1.msra.mxu0 %v1855
    %1857 = vmatprep.subr.mxu0 0.0
    %v1858 = vand.u32 %v98, 4294901760
    %1859 = vmatpush1.msra.mxu0 %v1858
    %1860 = vmatprep.subr.mxu0 0.0
    %v1861 = vand.u32 %v99, 4294901760
    %1862 = vmatpush1.msra.mxu0 %v1861
    %1863 = vmatprep.subr.mxu0 0.0
    %v1864 = vand.u32 %v100, 4294901760
    %1865 = vmatpush1.msra.mxu0 %v1864
    %1866 = vmatprep.subr.mxu0 0.0
    %v1867 = vand.u32 %v101, 4294901760
    %1868 = vmatpush1.msra.mxu0 %v1867
    %1869 = vmatprep.subr.mxu0 0.0
    %v1870 = vand.u32 %v102, 4294901760
    %1871 = vmatpush1.msra.mxu0 %v1870
    %1872 = vmatprep.subr.mxu0 0.0
    %v1873 = vand.u32 %v103, 4294901760
    %1874 = vmatpush1.msra.mxu0 %v1873
    %1875 = vmatprep.subr.mxu0 0.0
    %v1876 = vand.u32 %v104, 4294901760
    %1877 = vmatpush1.msra.mxu0 %v1876
    %1878 = vmatprep.subr.mxu0 0.0
    %v1879 = vand.u32 %v105, 4294901760
    %1880 = vmatpush1.msra.mxu0 %v1879
    %1881 = vmatprep.subr.mxu0 0.0
    %v1882 = vand.u32 %v106, 4294901760
    %1883 = vmatpush1.msra.mxu0 %v1882
    %1884 = vmatprep.subr.mxu0 0.0
    %v1885 = vand.u32 %v107, 4294901760
    %1886 = vmatpush1.msra.mxu0 %v1885
    %1887 = vmatprep.subr.mxu0 0.0
    %v1888 = vand.u32 %v108, 4294901760
    %1889 = vmatpush1.msra.mxu0 %v1888
    %1890 = vmatprep.subr.mxu0 0.0
    %v1891 = vand.u32 %v109, 4294901760
    %1892 = vmatpush1.msra.mxu0 %v1891
    %1893 = vmatprep.subr.mxu0 0.0
    %v1894 = vand.u32 %v110, 4294901760
    %1895 = vmatpush1.msra.mxu0 %v1894
    %1896 = vmatprep.subr.mxu0 0.0
    %v1897 = vand.u32 %v111, 4294901760
    %1898 = vmatpush1.msra.mxu0 %v1897
    %v1899 = vand.u32 %v43, 4294901760
    %1900 = vmatprep.mubr.f32.mxu0 %v1899
    %v1901 = vand.u32 %v42, 4294901760
    %1902 = vmatmul.mubr.f32.gmra.mrb[0].mxu0 %v1901
    %v1903 = vpop.f32.mrb[0].mxu0
    %v1904 = vadd.f32 %v1800, %v1903
    %v1905 = vpop.f32.mrb[0].mxu0
    %1906 = vdwg.mxu0
    %1907 = vmatprep.subr.mxu0 0.0
    %v1908 = vand.u32 %v112, 4294901760
    %1909 = vmatpush1.msra.mxu0 %v1908
    %1910 = vmatprep.subr.mxu0 0.0
    %v1911 = vand.u32 %v113, 4294901760
    %1912 = vmatpush1.msra.mxu0 %v1911
    %1913 = vmatprep.subr.mxu0 0.0
    %v1914 = vand.u32 %v114, 4294901760
    %1915 = vmatpush1.msra.mxu0 %v1914
    %1916 = vmatprep.subr.mxu0 0.0
    %v1917 = vand.u32 %v115, 4294901760
    %1918 = vmatpush1.msra.mxu0 %v1917
    %1919 = vmatprep.subr.mxu0 0.0
    %v1920 = vand.u32 %v116, 4294901760
    %1921 = vmatpush1.msra.mxu0 %v1920
    %1922 = vmatprep.subr.mxu0 0.0
    %v1923 = vand.u32 %v117, 4294901760
    %1924 = vmatpush1.msra.mxu0 %v1923
    %1925 = vmatprep.subr.mxu0 0.0
    %v1926 = vand.u32 %v118, 4294901760
    %1927 = vmatpush1.msra.mxu0 %v1926
    %1928 = vmatprep.subr.mxu0 0.0
    %v1929 = vand.u32 %v119, 4294901760
    %1930 = vmatpush1.msra.mxu0 %v1929
    %1931 = vmatprep.subr.mxu0 0.0
    %v1932 = vand.u32 %v120, 4294901760
    %1933 = vmatpush1.msra.mxu0 %v1932
    %1934 = vmatprep.subr.mxu0 0.0
    %v1935 = vand.u32 %v121, 4294901760
    %1936 = vmatpush1.msra.mxu0 %v1935
    %1937 = vmatprep.subr.mxu0 0.0
    %v1938 = vand.u32 %v122, 4294901760
    %1939 = vmatpush1.msra.mxu0 %v1938
    %1940 = vmatprep.subr.mxu0 0.0
    %v1941 = vand.u32 %v123, 4294901760
    %1942 = vmatpush1.msra.mxu0 %v1941
    %1943 = vmatprep.subr.mxu0 0.0
    %v1944 = vand.u32 %v124, 4294901760
    %1945 = vmatpush1.msra.mxu0 %v1944
    %1946 = vmatprep.subr.mxu0 0.0
    %v1947 = vand.u32 %v125, 4294901760
    %1948 = vmatpush1.msra.mxu0 %v1947
    %1949 = vmatprep.subr.mxu0 0.0
    %v1950 = vand.u32 %v126, 4294901760
    %1951 = vmatpush1.msra.mxu0 %v1950
    %1952 = vmatprep.subr.mxu0 0.0
    %v1953 = vand.u32 %v127, 4294901760
    %1954 = vmatpush1.msra.mxu0 %v1953
    %1955 = vmatprep.subr.mxu0 0.0
    %v1956 = vand.u32 %v128, 4294901760
    %1957 = vmatpush1.msra.mxu0 %v1956
    %1958 = vmatprep.subr.mxu0 0.0
    %v1959 = vand.u32 %v129, 4294901760
    %1960 = vmatpush1.msra.mxu0 %v1959
    %1961 = vmatprep.subr.mxu0 0.0
    %v1962 = vand.u32 %v130, 4294901760
    %1963 = vmatpush1.msra.mxu0 %v1962
    %1964 = vmatprep.subr.mxu0 0.0
    %v1965 = vand.u32 %v131, 4294901760
    %1966 = vmatpush1.msra.mxu0 %v1965
    %1967 = vmatprep.subr.mxu0 0.0
    %v1968 = vand.u32 %v132, 4294901760
    %1969 = vmatpush1.msra.mxu0 %v1968
    %1970 = vmatprep.subr.mxu0 0.0
    %v1971 = vand.u32 %v133, 4294901760
    %1972 = vmatpush1.msra.mxu0 %v1971
    %1973 = vmatprep.subr.mxu0 0.0
    %v1974 = vand.u32 %v134, 4294901760
    %1975 = vmatpush1.msra.mxu0 %v1974
    %1976 = vmatprep.subr.mxu0 0.0
    %v1977 = vand.u32 %v135, 4294901760
    %1978 = vmatpush1.msra.mxu0 %v1977
    %1979 = vmatprep.subr.mxu0 0.0
    %v1980 = vand.u32 %v136, 4294901760
    %1981 = vmatpush1.msra.mxu0 %v1980
    %1982 = vmatprep.subr.mxu0 0.0
    %v1983 = vand.u32 %v137, 4294901760
    %1984 = vmatpush1.msra.mxu0 %v1983
    %1985 = vmatprep.subr.mxu0 0.0
    %v1986 = vand.u32 %v138, 4294901760
    %1987 = vmatpush1.msra.mxu0 %v1986
    %1988 = vmatprep.subr.mxu0 0.0
    %v1989 = vand.u32 %v139, 4294901760
    %1990 = vmatpush1.msra.mxu0 %v1989
    %1991 = vmatprep.subr.mxu0 0.0
    %v1992 = vand.u32 %v140, 4294901760
    %1993 = vmatpush1.msra.mxu0 %v1992
    %1994 = vmatprep.subr.mxu0 0.0
    %v1995 = vand.u32 %v141, 4294901760
    %1996 = vmatpush1.msra.mxu0 %v1995
    %1997 = vmatprep.subr.mxu0 0.0
    %v1998 = vand.u32 %v142, 4294901760
    %1999 = vmatpush1.msra.mxu0 %v1998
    %2000 = vmatprep.subr.mxu0 0.0
    %v2001 = vand.u32 %v143, 4294901760
    %2002 = vmatpush1.msra.mxu0 %v2001
    %v2003 = vand.u32 %v45, 4294901760
    %v2004 = vsub.f32 %v45, %v2003
    %v2005 = vand.u32 %v2004, 4294901760
    %v2006 = vsub.f32 %v2004, %v2005
    %v2007 = vand.u32 %v2006, 4294901760
    %2008 = vmatprep.mubr.f32.mxu0 %v2007
    %v2009 = vand.u32 %v44, 4294901760
    %v2010 = vsub.f32 %v44, %v2009
    %v2011 = vand.u32 %v2010, 4294901760
    %v2012 = vsub.f32 %v2010, %v2011
    %v2013 = vand.u32 %v2012, 4294901760
    %2014 = vmatmul.mubr.f32.gmra.mrb[0].mxu0 %v2013
    %v2015 = vpop.f32.mrb[0].mxu0
    %v2016 = vadd.f32 %v1904, %v2015
    %v2017 = vpop.f32.mrb[0].mxu0
    %2018 = vdwg.mxu0
    %2019 = vmatprep.subr.mxu0 0.0
    %v2020 = vand.u32 %v112, 4294901760
    %v2021 = vsub.f32 %v112, %v2020
    %v2022 = vand.u32 %v2021, 4294901760
    %v2023 = vsub.f32 %v2021, %v2022
    %v2024 = vand.u32 %v2023, 4294901760
    %2025 = vmatpush1.msra.mxu0 %v2024
    %2026 = vmatprep.subr.mxu0 0.0
    %v2027 = vand.u32 %v113, 4294901760
    %v2028 = vsub.f32 %v113, %v2027
    %v2029 = vand.u32 %v2028, 4294901760
    %v2030 = vsub.f32 %v2028, %v2029
    %v2031 = vand.u32 %v2030, 4294901760
    %2032 = vmatpush1.msra.mxu0 %v2031
    %2033 = vmatprep.subr.mxu0 0.0
    %v2034 = vand.u32 %v114, 4294901760
    %v2035 = vsub.f32 %v114, %v2034
    %v2036 = vand.u32 %v2035, 4294901760
    %v2037 = vsub.f32 %v2035, %v2036
    %v2038 = vand.u32 %v2037, 4294901760
    %2039 = vmatpush1.msra.mxu0 %v2038
    %2040 = vmatprep.subr.mxu0 0.0
    %v2041 = vand.u32 %v115, 4294901760
    %v2042 = vsub.f32 %v115, %v2041
    %v2043 = vand.u32 %v2042, 4294901760
    %v2044 = vsub.f32 %v2042, %v2043
    %v2045 = vand.u32 %v2044, 4294901760
    %2046 = vmatpush1.msra.mxu0 %v2045
    %2047 = vmatprep.subr.mxu0 0.0
    %v2048 = vand.u32 %v116, 4294901760
    %v2049 = vsub.f32 %v116, %v2048
    %v2050 = vand.u32 %v2049, 4294901760
    %v2051 = vsub.f32 %v2049, %v2050
    %v2052 = vand.u32 %v2051, 4294901760
    %2053 = vmatpush1.msra.mxu0 %v2052
    %2054 = vmatprep.subr.mxu0 0.0
    %v2055 = vand.u32 %v117, 4294901760
    %v2056 = vsub.f32 %v117, %v2055
    %v2057 = vand.u32 %v2056, 4294901760
    %v2058 = vsub.f32 %v2056, %v2057
    %v2059 = vand.u32 %v2058, 4294901760
    %2060 = vmatpush1.msra.mxu0 %v2059
    %2061 = vmatprep.subr.mxu0 0.0
    %v2062 = vand.u32 %v118, 4294901760
    %v2063 = vsub.f32 %v118, %v2062
    %v2064 = vand.u32 %v2063, 4294901760
    %v2065 = vsub.f32 %v2063, %v2064
    %v2066 = vand.u32 %v2065, 4294901760
    %2067 = vmatpush1.msra.mxu0 %v2066
    %2068 = vmatprep.subr.mxu0 0.0
    %v2069 = vand.u32 %v119, 4294901760
    %v2070 = vsub.f32 %v119, %v2069
    %v2071 = vand.u32 %v2070, 4294901760
    %v2072 = vsub.f32 %v2070, %v2071
    %v2073 = vand.u32 %v2072, 4294901760
    %2074 = vmatpush1.msra.mxu0 %v2073
    %2075 = vmatprep.subr.mxu0 0.0
    %v2076 = vand.u32 %v120, 4294901760
    %v2077 = vsub.f32 %v120, %v2076
    %v2078 = vand.u32 %v2077, 4294901760
    %v2079 = vsub.f32 %v2077, %v2078
    %v2080 = vand.u32 %v2079, 4294901760
    %2081 = vmatpush1.msra.mxu0 %v2080
    %2082 = vmatprep.subr.mxu0 0.0
    %v2083 = vand.u32 %v121, 4294901760
    %v2084 = vsub.f32 %v121, %v2083
    %v2085 = vand.u32 %v2084, 4294901760
    %v2086 = vsub.f32 %v2084, %v2085
    %v2087 = vand.u32 %v2086, 4294901760
    %2088 = vmatpush1.msra.mxu0 %v2087
    %2089 = vmatprep.subr.mxu0 0.0
    %v2090 = vand.u32 %v122, 4294901760
    %v2091 = vsub.f32 %v122, %v2090
    %v2092 = vand.u32 %v2091, 4294901760
    %v2093 = vsub.f32 %v2091, %v2092
    %v2094 = vand.u32 %v2093, 4294901760
    %2095 = vmatpush1.msra.mxu0 %v2094
    %2096 = vmatprep.subr.mxu0 0.0
    %v2097 = vand.u32 %v123, 4294901760
    %v2098 = vsub.f32 %v123, %v2097
    %v2099 = vand.u32 %v2098, 4294901760
    %v2100 = vsub.f32 %v2098, %v2099
    %v2101 = vand.u32 %v2100, 4294901760
    %2102 = vmatpush1.msra.mxu0 %v2101
    %2103 = vmatprep.subr.mxu0 0.0
    %v2104 = vand.u32 %v124, 4294901760
    %v2105 = vsub.f32 %v124, %v2104
    %v2106 = vand.u32 %v2105, 4294901760
    %v2107 = vsub.f32 %v2105, %v2106
    %v2108 = vand.u32 %v2107, 4294901760
    %2109 = vmatpush1.msra.mxu0 %v2108
    %2110 = vmatprep.subr.mxu0 0.0
    %v2111 = vand.u32 %v125, 4294901760
    %v2112 = vsub.f32 %v125, %v2111
    %v2113 = vand.u32 %v2112, 4294901760
    %v2114 = vsub.f32 %v2112, %v2113
    %v2115 = vand.u32 %v2114, 4294901760
    %2116 = vmatpush1.msra.mxu0 %v2115
    %2117 = vmatprep.subr.mxu0 0.0
    %v2118 = vand.u32 %v126, 4294901760
    %v2119 = vsub.f32 %v126, %v2118
    %v2120 = vand.u32 %v2119, 4294901760
    %v2121 = vsub.f32 %v2119, %v2120
    %v2122 = vand.u32 %v2121, 4294901760
    %2123 = vmatpush1.msra.mxu0 %v2122
    %2124 = vmatprep.subr.mxu0 0.0
    %v2125 = vand.u32 %v127, 4294901760
    %v2126 = vsub.f32 %v127, %v2125
    %v2127 = vand.u32 %v2126, 4294901760
    %v2128 = vsub.f32 %v2126, %v2127
    %v2129 = vand.u32 %v2128, 4294901760
    %2130 = vmatpush1.msra.mxu0 %v2129
    %2131 = vmatprep.subr.mxu0 0.0
    %v2132 = vand.u32 %v128, 4294901760
    %v2133 = vsub.f32 %v128, %v2132
    %v2134 = vand.u32 %v2133, 4294901760
    %v2135 = vsub.f32 %v2133, %v2134
    %v2136 = vand.u32 %v2135, 4294901760
    %2137 = vmatpush1.msra.mxu0 %v2136
    %2138 = vmatprep.subr.mxu0 0.0
    %v2139 = vand.u32 %v129, 4294901760
    %v2140 = vsub.f32 %v129, %v2139
    %v2141 = vand.u32 %v2140, 4294901760
    %v2142 = vsub.f32 %v2140, %v2141
    %v2143 = vand.u32 %v2142, 4294901760
    %2144 = vmatpush1.msra.mxu0 %v2143
    %2145 = vmatprep.subr.mxu0 0.0
    %v2146 = vand.u32 %v130, 4294901760
    %v2147 = vsub.f32 %v130, %v2146
    %v2148 = vand.u32 %v2147, 4294901760
    %v2149 = vsub.f32 %v2147, %v2148
    %v2150 = vand.u32 %v2149, 4294901760
    %2151 = vmatpush1.msra.mxu0 %v2150
    %2152 = vmatprep.subr.mxu0 0.0
    %v2153 = vand.u32 %v131, 4294901760
    %v2154 = vsub.f32 %v131, %v2153
    %v2155 = vand.u32 %v2154, 4294901760
    %v2156 = vsub.f32 %v2154, %v2155
    %v2157 = vand.u32 %v2156, 4294901760
    %2158 = vmatpush1.msra.mxu0 %v2157
    %2159 = vmatprep.subr.mxu0 0.0
    %v2160 = vand.u32 %v132, 4294901760
    %v2161 = vsub.f32 %v132, %v2160
    %v2162 = vand.u32 %v2161, 4294901760
    %v2163 = vsub.f32 %v2161, %v2162
    %v2164 = vand.u32 %v2163, 4294901760
    %2165 = vmatpush1.msra.mxu0 %v2164
    %2166 = vmatprep.subr.mxu0 0.0
    %v2167 = vand.u32 %v133, 4294901760
    %v2168 = vsub.f32 %v133, %v2167
    %v2169 = vand.u32 %v2168, 4294901760
    %v2170 = vsub.f32 %v2168, %v2169
    %v2171 = vand.u32 %v2170, 4294901760
    %2172 = vmatpush1.msra.mxu0 %v2171
    %2173 = vmatprep.subr.mxu0 0.0
    %v2174 = vand.u32 %v134, 4294901760
    %v2175 = vsub.f32 %v134, %v2174
    %v2176 = vand.u32 %v2175, 4294901760
    %v2177 = vsub.f32 %v2175, %v2176
    %v2178 = vand.u32 %v2177, 4294901760
    %2179 = vmatpush1.msra.mxu0 %v2178
    %2180 = vmatprep.subr.mxu0 0.0
    %v2181 = vand.u32 %v135, 4294901760
    %v2182 = vsub.f32 %v135, %v2181
    %v2183 = vand.u32 %v2182, 4294901760
    %v2184 = vsub.f32 %v2182, %v2183
    %v2185 = vand.u32 %v2184, 4294901760
    %2186 = vmatpush1.msra.mxu0 %v2185
    %2187 = vmatprep.subr.mxu0 0.0
    %v2188 = vand.u32 %v136, 4294901760
    %v2189 = vsub.f32 %v136, %v2188
    %v2190 = vand.u32 %v2189, 4294901760
    %v2191 = vsub.f32 %v2189, %v2190
    %v2192 = vand.u32 %v2191, 4294901760
    %2193 = vmatpush1.msra.mxu0 %v2192
    %2194 = vmatprep.subr.mxu0 0.0
    %v2195 = vand.u32 %v137, 4294901760
    %v2196 = vsub.f32 %v137, %v2195
    %v2197 = vand.u32 %v2196, 4294901760
    %v2198 = vsub.f32 %v2196, %v2197
    %v2199 = vand.u32 %v2198, 4294901760
    %2200 = vmatpush1.msra.mxu0 %v2199
    %2201 = vmatprep.subr.mxu0 0.0
    %v2202 = vand.u32 %v138, 4294901760
    %v2203 = vsub.f32 %v138, %v2202
    %v2204 = vand.u32 %v2203, 4294901760
    %v2205 = vsub.f32 %v2203, %v2204
    %v2206 = vand.u32 %v2205, 4294901760
    %2207 = vmatpush1.msra.mxu0 %v2206
    %2208 = vmatprep.subr.mxu0 0.0
    %v2209 = vand.u32 %v139, 4294901760
    %v2210 = vsub.f32 %v139, %v2209
    %v2211 = vand.u32 %v2210, 4294901760
    %v2212 = vsub.f32 %v2210, %v2211
    %v2213 = vand.u32 %v2212, 4294901760
    %2214 = vmatpush1.msra.mxu0 %v2213
    %2215 = vmatprep.subr.mxu0 0.0
    %v2216 = vand.u32 %v140, 4294901760
    %v2217 = vsub.f32 %v140, %v2216
    %v2218 = vand.u32 %v2217, 4294901760
    %v2219 = vsub.f32 %v2217, %v2218
    %v2220 = vand.u32 %v2219, 4294901760
    %2221 = vmatpush1.msra.mxu0 %v2220
    %2222 = vmatprep.subr.mxu0 0.0
    %v2223 = vand.u32 %v141, 4294901760
    %v2224 = vsub.f32 %v141, %v2223
    %v2225 = vand.u32 %v2224, 4294901760
    %v2226 = vsub.f32 %v2224, %v2225
    %v2227 = vand.u32 %v2226, 4294901760
    %2228 = vmatpush1.msra.mxu0 %v2227
    %2229 = vmatprep.subr.mxu0 0.0
    %v2230 = vand.u32 %v142, 4294901760
    %v2231 = vsub.f32 %v142, %v2230
    %v2232 = vand.u32 %v2231, 4294901760
    %v2233 = vsub.f32 %v2231, %v2232
    %v2234 = vand.u32 %v2233, 4294901760
    %2235 = vmatpush1.msra.mxu0 %v2234
    %2236 = vmatprep.subr.mxu0 0.0
    %v2237 = vand.u32 %v143, 4294901760
    %v2238 = vsub.f32 %v143, %v2237
    %v2239 = vand.u32 %v2238, 4294901760
    %v2240 = vsub.f32 %v2238, %v2239
    %v2241 = vand.u32 %v2240, 4294901760
    %2242 = vmatpush1.msra.mxu0 %v2241
    %v2243 = vand.u32 %v45, 4294901760
    %2244 = vmatprep.mubr.f32.mxu0 %v2243
    %v2245 = vand.u32 %v44, 4294901760
    %2246 = vmatmul.mubr.f32.gmra.mrb[0].mxu0 %v2245
    %v2247 = vpop.f32.mrb[0].mxu0
    %v2248 = vadd.f32 %v2016, %v2247
    %v2249 = vpop.f32.mrb[0].mxu0
    %2250 = vdwg.mxu0
    %2251 = vmatprep.subr.mxu0 0.0
    %v2252 = vand.u32 %v112, 4294901760
    %v2253 = vsub.f32 %v112, %v2252
    %2254 = vmatpush1.msra.mxu0 %v2253
    %2255 = vmatprep.subr.mxu0 0.0
    %v2256 = vand.u32 %v113, 4294901760
    %v2257 = vsub.f32 %v113, %v2256
    %2258 = vmatpush1.msra.mxu0 %v2257
    %2259 = vmatprep.subr.mxu0 0.0
    %v2260 = vand.u32 %v114, 4294901760
    %v2261 = vsub.f32 %v114, %v2260
    %2262 = vmatpush1.msra.mxu0 %v2261
    %2263 = vmatprep.subr.mxu0 0.0
    %v2264 = vand.u32 %v115, 4294901760
    %v2265 = vsub.f32 %v115, %v2264
    %2266 = vmatpush1.msra.mxu0 %v2265
    %2267 = vmatprep.subr.mxu0 0.0
    %v2268 = vand.u32 %v116, 4294901760
    %v2269 = vsub.f32 %v116, %v2268
    %2270 = vmatpush1.msra.mxu0 %v2269
    %2271 = vmatprep.subr.mxu0 0.0
    %v2272 = vand.u32 %v117, 4294901760
    %v2273 = vsub.f32 %v117, %v2272
    %2274 = vmatpush1.msra.mxu0 %v2273
    %2275 = vmatprep.subr.mxu0 0.0
    %v2276 = vand.u32 %v118, 4294901760
    %v2277 = vsub.f32 %v118, %v2276
    %2278 = vmatpush1.msra.mxu0 %v2277
    %2279 = vmatprep.subr.mxu0 0.0
    %v2280 = vand.u32 %v119, 4294901760
    %v2281 = vsub.f32 %v119, %v2280
    %2282 = vmatpush1.msra.mxu0 %v2281
    %2283 = vmatprep.subr.mxu0 0.0
    %v2284 = vand.u32 %v120, 4294901760
    %v2285 = vsub.f32 %v120, %v2284
    %2286 = vmatpush1.msra.mxu0 %v2285
    %2287 = vmatprep.subr.mxu0 0.0
    %v2288 = vand.u32 %v121, 4294901760
    %v2289 = vsub.f32 %v121, %v2288
    %2290 = vmatpush1.msra.mxu0 %v2289
    %2291 = vmatprep.subr.mxu0 0.0
    %v2292 = vand.u32 %v122, 4294901760
    %v2293 = vsub.f32 %v122, %v2292
    %2294 = vmatpush1.msra.mxu0 %v2293
    %2295 = vmatprep.subr.mxu0 0.0
    %v2296 = vand.u32 %v123, 4294901760
    %v2297 = vsub.f32 %v123, %v2296
    %2298 = vmatpush1.msra.mxu0 %v2297
    %2299 = vmatprep.subr.mxu0 0.0
    %v2300 = vand.u32 %v124, 4294901760
    %v2301 = vsub.f32 %v124, %v2300
    %2302 = vmatpush1.msra.mxu0 %v2301
    %2303 = vmatprep.subr.mxu0 0.0
    %v2304 = vand.u32 %v125, 4294901760
    %v2305 = vsub.f32 %v125, %v2304
    %2306 = vmatpush1.msra.mxu0 %v2305
    %2307 = vmatprep.subr.mxu0 0.0
    %v2308 = vand.u32 %v126, 4294901760
    %v2309 = vsub.f32 %v126, %v2308
    %2310 = vmatpush1.msra.mxu0 %v2309
    %2311 = vmatprep.subr.mxu0 0.0
    %v2312 = vand.u32 %v127, 4294901760
    %v2313 = vsub.f32 %v127, %v2312
    %2314 = vmatpush1.msra.mxu0 %v2313
    %2315 = vmatprep.subr.mxu0 0.0
    %v2316 = vand.u32 %v128, 4294901760
    %v2317 = vsub.f32 %v128, %v2316
    %2318 = vmatpush1.msra.mxu0 %v2317
    %2319 = vmatprep.subr.mxu0 0.0
    %v2320 = vand.u32 %v129, 4294901760
    %v2321 = vsub.f32 %v129, %v2320
    %2322 = vmatpush1.msra.mxu0 %v2321
    %2323 = vmatprep.subr.mxu0 0.0
    %v2324 = vand.u32 %v130, 4294901760
    %v2325 = vsub.f32 %v130, %v2324
    %2326 = vmatpush1.msra.mxu0 %v2325
    %2327 = vmatprep.subr.mxu0 0.0
    %v2328 = vand.u32 %v131, 4294901760
    %v2329 = vsub.f32 %v131, %v2328
    %2330 = vmatpush1.msra.mxu0 %v2329
    %2331 = vmatprep.subr.mxu0 0.0
    %v2332 = vand.u32 %v132, 4294901760
    %v2333 = vsub.f32 %v132, %v2332
    %2334 = vmatpush1.msra.mxu0 %v2333
    %2335 = vmatprep.subr.mxu0 0.0
    %v2336 = vand.u32 %v133, 4294901760
    %v2337 = vsub.f32 %v133, %v2336
    %2338 = vmatpush1.msra.mxu0 %v2337
    %2339 = vmatprep.subr.mxu0 0.0
    %v2340 = vand.u32 %v134, 4294901760
    %v2341 = vsub.f32 %v134, %v2340
    %2342 = vmatpush1.msra.mxu0 %v2341
    %2343 = vmatprep.subr.mxu0 0.0
    %v2344 = vand.u32 %v135, 4294901760
    %v2345 = vsub.f32 %v135, %v2344
    %2346 = vmatpush1.msra.mxu0 %v2345
    %2347 = vmatprep.subr.mxu0 0.0
    %v2348 = vand.u32 %v136, 4294901760
    %v2349 = vsub.f32 %v136, %v2348
    %2350 = vmatpush1.msra.mxu0 %v2349
    %2351 = vmatprep.subr.mxu0 0.0
    %v2352 = vand.u32 %v137, 4294901760
    %v2353 = vsub.f32 %v137, %v2352
    %2354 = vmatpush1.msra.mxu0 %v2353
    %2355 = vmatprep.subr.mxu0 0.0
    %v2356 = vand.u32 %v138, 4294901760
    %v2357 = vsub.f32 %v138, %v2356
    %2358 = vmatpush1.msra.mxu0 %v2357
    %2359 = vmatprep.subr.mxu0 0.0
    %v2360 = vand.u32 %v139, 4294901760
    %v2361 = vsub.f32 %v139, %v2360
    %2362 = vmatpush1.msra.mxu0 %v2361
    %2363 = vmatprep.subr.mxu0 0.0
    %v2364 = vand.u32 %v140, 4294901760
    %v2365 = vsub.f32 %v140, %v2364
    %2366 = vmatpush1.msra.mxu0 %v2365
    %2367 = vmatprep.subr.mxu0 0.0
    %v2368 = vand.u32 %v141, 4294901760
    %v2369 = vsub.f32 %v141, %v2368
    %2370 = vmatpush1.msra.mxu0 %v2369
    %2371 = vmatprep.subr.mxu0 0.0
    %v2372 = vand.u32 %v142, 4294901760
    %v2373 = vsub.f32 %v142, %v2372
    %2374 = vmatpush1.msra.mxu0 %v2373
    %2375 = vmatprep.subr.mxu0 0.0
    %v2376 = vand.u32 %v143, 4294901760
    %v2377 = vsub.f32 %v143, %v2376
    %2378 = vmatpush1.msra.mxu0 %v2377
    %v2379 = vand.u32 %v45, 4294901760
    %v2380 = vsub.f32 %v45, %v2379
    %2381 = vmatprep.mubr.f32.mxu0 %v2380
    %v2382 = vand.u32 %v44, 4294901760
    %v2383 = vsub.f32 %v44, %v2382
    %2384 = vmatmul.mubr.f32.gmra.mrb[0].mxu0 %v2383
    %v2385 = vpop.f32.mrb[0].mxu0
    %v2386 = vadd.f32 %v2248, %v2385
    %v2387 = vpop.f32.mrb[0].mxu0
    %2388 = vdwg.mxu0
    %2389 = vmatprep.subr.mxu0 0.0
    %v2390 = vand.u32 %v112, 4294901760
    %2391 = vmatpush1.msra.mxu0 %v2390
    %2392 = vmatprep.subr.mxu0 0.0
    %v2393 = vand.u32 %v113, 4294901760
    %2394 = vmatpush1.msra.mxu0 %v2393
    %2395 = vmatprep.subr.mxu0 0.0
    %v2396 = vand.u32 %v114, 4294901760
    %2397 = vmatpush1.msra.mxu0 %v2396
    %2398 = vmatprep.subr.mxu0 0.0
    %v2399 = vand.u32 %v115, 4294901760
    %2400 = vmatpush1.msra.mxu0 %v2399
    %2401 = vmatprep.subr.mxu0 0.0
    %v2402 = vand.u32 %v116, 4294901760
    %2403 = vmatpush1.msra.mxu0 %v2402
    %2404 = vmatprep.subr.mxu0 0.0
    %v2405 = vand.u32 %v117, 4294901760
    %2406 = vmatpush1.msra.mxu0 %v2405
    %2407 = vmatprep.subr.mxu0 0.0
    %v2408 = vand.u32 %v118, 4294901760
    %2409 = vmatpush1.msra.mxu0 %v2408
    %2410 = vmatprep.subr.mxu0 0.0
    %v2411 = vand.u32 %v119, 4294901760
    %2412 = vmatpush1.msra.mxu0 %v2411
    %2413 = vmatprep.subr.mxu0 0.0
    %v2414 = vand.u32 %v120, 4294901760
    %2415 = vmatpush1.msra.mxu0 %v2414
    %2416 = vmatprep.subr.mxu0 0.0
    %v2417 = vand.u32 %v121, 4294901760
    %2418 = vmatpush1.msra.mxu0 %v2417
    %2419 = vmatprep.subr.mxu0 0.0
    %v2420 = vand.u32 %v122, 4294901760
    %2421 = vmatpush1.msra.mxu0 %v2420
    %2422 = vmatprep.subr.mxu0 0.0
    %v2423 = vand.u32 %v123, 4294901760
    %2424 = vmatpush1.msra.mxu0 %v2423
    %2425 = vmatprep.subr.mxu0 0.0
    %v2426 = vand.u32 %v124, 4294901760
    %2427 = vmatpush1.msra.mxu0 %v2426
    %2428 = vmatprep.subr.mxu0 0.0
    %v2429 = vand.u32 %v125, 4294901760
    %2430 = vmatpush1.msra.mxu0 %v2429
    %2431 = vmatprep.subr.mxu0 0.0
    %v2432 = vand.u32 %v126, 4294901760
    %2433 = vmatpush1.msra.mxu0 %v2432
    %2434 = vmatprep.subr.mxu0 0.0
    %v2435 = vand.u32 %v127, 4294901760
    %2436 = vmatpush1.msra.mxu0 %v2435
    %2437 = vmatprep.subr.mxu0 0.0
    %v2438 = vand.u32 %v128, 4294901760
    %2439 = vmatpush1.msra.mxu0 %v2438
    %2440 = vmatprep.subr.mxu0 0.0
    %v2441 = vand.u32 %v129, 4294901760
    %2442 = vmatpush1.msra.mxu0 %v2441
    %2443 = vmatprep.subr.mxu0 0.0
    %v2444 = vand.u32 %v130, 4294901760
    %2445 = vmatpush1.msra.mxu0 %v2444
    %2446 = vmatprep.subr.mxu0 0.0
    %v2447 = vand.u32 %v131, 4294901760
    %2448 = vmatpush1.msra.mxu0 %v2447
    %2449 = vmatprep.subr.mxu0 0.0
    %v2450 = vand.u32 %v132, 4294901760
    %2451 = vmatpush1.msra.mxu0 %v2450
    %2452 = vmatprep.subr.mxu0 0.0
    %v2453 = vand.u32 %v133, 4294901760
    %2454 = vmatpush1.msra.mxu0 %v2453
    %2455 = vmatprep.subr.mxu0 0.0
    %v2456 = vand.u32 %v134, 4294901760
    %2457 = vmatpush1.msra.mxu0 %v2456
    %2458 = vmatprep.subr.mxu0 0.0
    %v2459 = vand.u32 %v135, 4294901760
    %2460 = vmatpush1.msra.mxu0 %v2459
    %2461 = vmatprep.subr.mxu0 0.0
    %v2462 = vand.u32 %v136, 4294901760
    %2463 = vmatpush1.msra.mxu0 %v2462
    %2464 = vmatprep.subr.mxu0 0.0
    %v2465 = vand.u32 %v137, 4294901760
    %2466 = vmatpush1.msra.mxu0 %v2465
    %2467 = vmatprep.subr.mxu0 0.0
    %v2468 = vand.u32 %v138, 4294901760
    %2469 = vmatpush1.msra.mxu0 %v2468
    %2470 = vmatprep.subr.mxu0 0.0
    %v2471 = vand.u32 %v139, 4294901760
    %2472 = vmatpush1.msra.mxu0 %v2471
    %2473 = vmatprep.subr.mxu0 0.0
    %v2474 = vand.u32 %v140, 4294901760
    %2475 = vmatpush1.msra.mxu0 %v2474
    %2476 = vmatprep.subr.mxu0 0.0
    %v2477 = vand.u32 %v141, 4294901760
    %2478 = vmatpush1.msra.mxu0 %v2477
    %2479 = vmatprep.subr.mxu0 0.0
    %v2480 = vand.u32 %v142, 4294901760
    %2481 = vmatpush1.msra.mxu0 %v2480
    %2482 = vmatprep.subr.mxu0 0.0
    %v2483 = vand.u32 %v143, 4294901760
    %2484 = vmatpush1.msra.mxu0 %v2483
    %v2485 = vand.u32 %v45, 4294901760
    %v2486 = vsub.f32 %v45, %v2485
    %v2487 = vand.u32 %v2486, 4294901760
    %2488 = vmatprep.mubr.f32.mxu0 %v2487
    %v2489 = vand.u32 %v44, 4294901760
    %v2490 = vsub.f32 %v44, %v2489
    %v2491 = vand.u32 %v2490, 4294901760
    %2492 = vmatmul.mubr.f32.gmra.mrb[0].mxu0 %v2491
    %v2493 = vpop.f32.mrb[0].mxu0
    %v2494 = vadd.f32 %v2386, %v2493
    %v2495 = vpop.f32.mrb[0].mxu0
    %2496 = vdwg.mxu0
    %2497 = vmatprep.subr.mxu0 0.0
    %v2498 = vand.u32 %v112, 4294901760
    %v2499 = vsub.f32 %v112, %v2498
    %v2500 = vand.u32 %v2499, 4294901760
    %2501 = vmatpush1.msra.mxu0 %v2500
    %2502 = vmatprep.subr.mxu0 0.0
    %v2503 = vand.u32 %v113, 4294901760
    %v2504 = vsub.f32 %v113, %v2503
    %v2505 = vand.u32 %v2504, 4294901760
    %2506 = vmatpush1.msra.mxu0 %v2505
    %2507 = vmatprep.subr.mxu0 0.0
    %v2508 = vand.u32 %v114, 4294901760
    %v2509 = vsub.f32 %v114, %v2508
    %v2510 = vand.u32 %v2509, 4294901760
    %2511 = vmatpush1.msra.mxu0 %v2510
    %2512 = vmatprep.subr.mxu0 0.0
    %v2513 = vand.u32 %v115, 4294901760
    %v2514 = vsub.f32 %v115, %v2513
    %v2515 = vand.u32 %v2514, 4294901760
    %2516 = vmatpush1.msra.mxu0 %v2515
    %2517 = vmatprep.subr.mxu0 0.0
    %v2518 = vand.u32 %v116, 4294901760
    %v2519 = vsub.f32 %v116, %v2518
    %v2520 = vand.u32 %v2519, 4294901760
    %2521 = vmatpush1.msra.mxu0 %v2520
    %2522 = vmatprep.subr.mxu0 0.0
    %v2523 = vand.u32 %v117, 4294901760
    %v2524 = vsub.f32 %v117, %v2523
    %v2525 = vand.u32 %v2524, 4294901760
    %2526 = vmatpush1.msra.mxu0 %v2525
    %2527 = vmatprep.subr.mxu0 0.0
    %v2528 = vand.u32 %v118, 4294901760
    %v2529 = vsub.f32 %v118, %v2528
    %v2530 = vand.u32 %v2529, 4294901760
    %2531 = vmatpush1.msra.mxu0 %v2530
    %2532 = vmatprep.subr.mxu0 0.0
    %v2533 = vand.u32 %v119, 4294901760
    %v2534 = vsub.f32 %v119, %v2533
    %v2535 = vand.u32 %v2534, 4294901760
    %2536 = vmatpush1.msra.mxu0 %v2535
    %2537 = vmatprep.subr.mxu0 0.0
    %v2538 = vand.u32 %v120, 4294901760
    %v2539 = vsub.f32 %v120, %v2538
    %v2540 = vand.u32 %v2539, 4294901760
    %2541 = vmatpush1.msra.mxu0 %v2540
    %2542 = vmatprep.subr.mxu0 0.0
    %v2543 = vand.u32 %v121, 4294901760
    %v2544 = vsub.f32 %v121, %v2543
    %v2545 = vand.u32 %v2544, 4294901760
    %2546 = vmatpush1.msra.mxu0 %v2545
    %2547 = vmatprep.subr.mxu0 0.0
    %v2548 = vand.u32 %v122, 4294901760
    %v2549 = vsub.f32 %v122, %v2548
    %v2550 = vand.u32 %v2549, 4294901760
    %2551 = vmatpush1.msra.mxu0 %v2550
    %2552 = vmatprep.subr.mxu0 0.0
    %v2553 = vand.u32 %v123, 4294901760
    %v2554 = vsub.f32 %v123, %v2553
    %v2555 = vand.u32 %v2554, 4294901760
    %2556 = vmatpush1.msra.mxu0 %v2555
    %2557 = vmatprep.subr.mxu0 0.0
    %v2558 = vand.u32 %v124, 4294901760
    %v2559 = vsub.f32 %v124, %v2558
    %v2560 = vand.u32 %v2559, 4294901760
    %2561 = vmatpush1.msra.mxu0 %v2560
    %2562 = vmatprep.subr.mxu0 0.0
    %v2563 = vand.u32 %v125, 4294901760
    %v2564 = vsub.f32 %v125, %v2563
    %v2565 = vand.u32 %v2564, 4294901760
    %2566 = vmatpush1.msra.mxu0 %v2565
    %2567 = vmatprep.subr.mxu0 0.0
    %v2568 = vand.u32 %v126, 4294901760
    %v2569 = vsub.f32 %v126, %v2568
    %v2570 = vand.u32 %v2569, 4294901760
    %2571 = vmatpush1.msra.mxu0 %v2570
    %2572 = vmatprep.subr.mxu0 0.0
    %v2573 = vand.u32 %v127, 4294901760
    %v2574 = vsub.f32 %v127, %v2573
    %v2575 = vand.u32 %v2574, 4294901760
    %2576 = vmatpush1.msra.mxu0 %v2575
    %2577 = vmatprep.subr.mxu0 0.0
    %v2578 = vand.u32 %v128, 4294901760
    %v2579 = vsub.f32 %v128, %v2578
    %v2580 = vand.u32 %v2579, 4294901760
    %2581 = vmatpush1.msra.mxu0 %v2580
    %2582 = vmatprep.subr.mxu0 0.0
    %v2583 = vand.u32 %v129, 4294901760
    %v2584 = vsub.f32 %v129, %v2583
    %v2585 = vand.u32 %v2584, 4294901760
    %2586 = vmatpush1.msra.mxu0 %v2585
    %2587 = vmatprep.subr.mxu0 0.0
    %v2588 = vand.u32 %v130, 4294901760
    %v2589 = vsub.f32 %v130, %v2588
    %v2590 = vand.u32 %v2589, 4294901760
    %2591 = vmatpush1.msra.mxu0 %v2590
    %2592 = vmatprep.subr.mxu0 0.0
    %v2593 = vand.u32 %v131, 4294901760
    %v2594 = vsub.f32 %v131, %v2593
    %v2595 = vand.u32 %v2594, 4294901760
    %2596 = vmatpush1.msra.mxu0 %v2595
    %2597 = vmatprep.subr.mxu0 0.0
    %v2598 = vand.u32 %v132, 4294901760
    %v2599 = vsub.f32 %v132, %v2598
    %v2600 = vand.u32 %v2599, 4294901760
    %2601 = vmatpush1.msra.mxu0 %v2600
    %2602 = vmatprep.subr.mxu0 0.0
    %v2603 = vand.u32 %v133, 4294901760
    %v2604 = vsub.f32 %v133, %v2603
    %v2605 = vand.u32 %v2604, 4294901760
    %2606 = vmatpush1.msra.mxu0 %v2605
    %2607 = vmatprep.subr.mxu0 0.0
    %v2608 = vand.u32 %v134, 4294901760
    %v2609 = vsub.f32 %v134, %v2608
    %v2610 = vand.u32 %v2609, 4294901760
    %2611 = vmatpush1.msra.mxu0 %v2610
    %2612 = vmatprep.subr.mxu0 0.0
    %v2613 = vand.u32 %v135, 4294901760
    %v2614 = vsub.f32 %v135, %v2613
    %v2615 = vand.u32 %v2614, 4294901760
    %2616 = vmatpush1.msra.mxu0 %v2615
    %2617 = vmatprep.subr.mxu0 0.0
    %v2618 = vand.u32 %v136, 4294901760
    %v2619 = vsub.f32 %v136, %v2618
    %v2620 = vand.u32 %v2619, 4294901760
    %2621 = vmatpush1.msra.mxu0 %v2620
    %2622 = vmatprep.subr.mxu0 0.0
    %v2623 = vand.u32 %v137, 4294901760
    %v2624 = vsub.f32 %v137, %v2623
    %v2625 = vand.u32 %v2624, 4294901760
    %2626 = vmatpush1.msra.mxu0 %v2625
    %2627 = vmatprep.subr.mxu0 0.0
    %v2628 = vand.u32 %v138, 4294901760
    %v2629 = vsub.f32 %v138, %v2628
    %v2630 = vand.u32 %v2629, 4294901760
    %2631 = vmatpush1.msra.mxu0 %v2630
    %2632 = vmatprep.subr.mxu0 0.0
    %v2633 = vand.u32 %v139, 4294901760
    %v2634 = vsub.f32 %v139, %v2633
    %v2635 = vand.u32 %v2634, 4294901760
    %2636 = vmatpush1.msra.mxu0 %v2635
    %2637 = vmatprep.subr.mxu0 0.0
    %v2638 = vand.u32 %v140, 4294901760
    %v2639 = vsub.f32 %v140, %v2638
    %v2640 = vand.u32 %v2639, 4294901760
    %2641 = vmatpush1.msra.mxu0 %v2640
    %2642 = vmatprep.subr.mxu0 0.0
    %v2643 = vand.u32 %v141, 4294901760
    %v2644 = vsub.f32 %v141, %v2643
    %v2645 = vand.u32 %v2644, 4294901760
    %2646 = vmatpush1.msra.mxu0 %v2645
    %2647 = vmatprep.subr.mxu0 0.0
    %v2648 = vand.u32 %v142, 4294901760
    %v2649 = vsub.f32 %v142, %v2648
    %v2650 = vand.u32 %v2649, 4294901760
    %2651 = vmatpush1.msra.mxu0 %v2650
    %2652 = vmatprep.subr.mxu0 0.0
    %v2653 = vand.u32 %v143, 4294901760
    %v2654 = vsub.f32 %v143, %v2653
    %v2655 = vand.u32 %v2654, 4294901760
    %2656 = vmatpush1.msra.mxu0 %v2655
    %v2657 = vand.u32 %v45, 4294901760
    %2658 = vmatprep.mubr.f32.mxu0 %v2657
    %v2659 = vand.u32 %v44, 4294901760
    %2660 = vmatmul.mubr.f32.gmra.mrb[0].mxu0 %v2659
    %v2661 = vpop.f32.mrb[0].mxu0
    %v2662 = vadd.f32 %v2494, %v2661
    %v2663 = vpop.f32.mrb[0].mxu0
    %2664 = vdwg.mxu0
    %2665 = vmatprep.subr.mxu0 0.0
    %v2666 = vand.u32 %v112, 4294901760
    %2667 = vmatpush1.msra.mxu0 %v2666
    %2668 = vmatprep.subr.mxu0 0.0
    %v2669 = vand.u32 %v113, 4294901760
    %2670 = vmatpush1.msra.mxu0 %v2669
    %2671 = vmatprep.subr.mxu0 0.0
    %v2672 = vand.u32 %v114, 4294901760
    %2673 = vmatpush1.msra.mxu0 %v2672
    %2674 = vmatprep.subr.mxu0 0.0
    %v2675 = vand.u32 %v115, 4294901760
    %2676 = vmatpush1.msra.mxu0 %v2675
    %2677 = vmatprep.subr.mxu0 0.0
    %v2678 = vand.u32 %v116, 4294901760
    %2679 = vmatpush1.msra.mxu0 %v2678
    %2680 = vmatprep.subr.mxu0 0.0
    %v2681 = vand.u32 %v117, 4294901760
    %2682 = vmatpush1.msra.mxu0 %v2681
    %2683 = vmatprep.subr.mxu0 0.0
    %v2684 = vand.u32 %v118, 4294901760
    %2685 = vmatpush1.msra.mxu0 %v2684
    %2686 = vmatprep.subr.mxu0 0.0
    %v2687 = vand.u32 %v119, 4294901760
    %2688 = vmatpush1.msra.mxu0 %v2687
    %2689 = vmatprep.subr.mxu0 0.0
    %v2690 = vand.u32 %v120, 4294901760
    %2691 = vmatpush1.msra.mxu0 %v2690
    %2692 = vmatprep.subr.mxu0 0.0
    %v2693 = vand.u32 %v121, 4294901760
    %2694 = vmatpush1.msra.mxu0 %v2693
    %2695 = vmatprep.subr.mxu0 0.0
    %v2696 = vand.u32 %v122, 4294901760
    %2697 = vmatpush1.msra.mxu0 %v2696
    %2698 = vmatprep.subr.mxu0 0.0
    %v2699 = vand.u32 %v123, 4294901760
    %2700 = vmatpush1.msra.mxu0 %v2699
    %2701 = vmatprep.subr.mxu0 0.0
    %v2702 = vand.u32 %v124, 4294901760
    %2703 = vmatpush1.msra.mxu0 %v2702
    %2704 = vmatprep.subr.mxu0 0.0
    %v2705 = vand.u32 %v125, 4294901760
    %2706 = vmatpush1.msra.mxu0 %v2705
    %2707 = vmatprep.subr.mxu0 0.0
    %v2708 = vand.u32 %v126, 4294901760
    %2709 = vmatpush1.msra.mxu0 %v2708
    %2710 = vmatprep.subr.mxu0 0.0
    %v2711 = vand.u32 %v127, 4294901760
    %2712 = vmatpush1.msra.mxu0 %v2711
    %2713 = vmatprep.subr.mxu0 0.0
    %v2714 = vand.u32 %v128, 4294901760
    %2715 = vmatpush1.msra.mxu0 %v2714
    %2716 = vmatprep.subr.mxu0 0.0
    %v2717 = vand.u32 %v129, 4294901760
    %2718 = vmatpush1.msra.mxu0 %v2717
    %2719 = vmatprep.subr.mxu0 0.0
    %v2720 = vand.u32 %v130, 4294901760
    %2721 = vmatpush1.msra.mxu0 %v2720
    %2722 = vmatprep.subr.mxu0 0.0
    %v2723 = vand.u32 %v131, 4294901760
    %2724 = vmatpush1.msra.mxu0 %v2723
    %2725 = vmatprep.subr.mxu0 0.0
    %v2726 = vand.u32 %v132, 4294901760
    %2727 = vmatpush1.msra.mxu0 %v2726
    %2728 = vmatprep.subr.mxu0 0.0
    %v2729 = vand.u32 %v133, 4294901760
    %2730 = vmatpush1.msra.mxu0 %v2729
    %2731 = vmatprep.subr.mxu0 0.0
    %v2732 = vand.u32 %v134, 4294901760
    %2733 = vmatpush1.msra.mxu0 %v2732
    %2734 = vmatprep.subr.mxu0 0.0
    %v2735 = vand.u32 %v135, 4294901760
    %2736 = vmatpush1.msra.mxu0 %v2735
    %2737 = vmatprep.subr.mxu0 0.0
    %v2738 = vand.u32 %v136, 4294901760
    %2739 = vmatpush1.msra.mxu0 %v2738
    %2740 = vmatprep.subr.mxu0 0.0
    %v2741 = vand.u32 %v137, 4294901760
    %2742 = vmatpush1.msra.mxu0 %v2741
    %2743 = vmatprep.subr.mxu0 0.0
    %v2744 = vand.u32 %v138, 4294901760
    %2745 = vmatpush1.msra.mxu0 %v2744
    %2746 = vmatprep.subr.mxu0 0.0
    %v2747 = vand.u32 %v139, 4294901760
    %2748 = vmatpush1.msra.mxu0 %v2747
    %2749 = vmatprep.subr.mxu0 0.0
    %v2750 = vand.u32 %v140, 4294901760
    %2751 = vmatpush1.msra.mxu0 %v2750
    %2752 = vmatprep.subr.mxu0 0.0
    %v2753 = vand.u32 %v141, 4294901760
    %2754 = vmatpush1.msra.mxu0 %v2753
    %2755 = vmatprep.subr.mxu0 0.0
    %v2756 = vand.u32 %v142, 4294901760
    %2757 = vmatpush1.msra.mxu0 %v2756
    %2758 = vmatprep.subr.mxu0 0.0
    %v2759 = vand.u32 %v143, 4294901760
    %2760 = vmatpush1.msra.mxu0 %v2759
    %v2761 = vand.u32 %v45, 4294901760
    %2762 = vmatprep.mubr.f32.mxu0 %v2761
    %v2763 = vand.u32 %v44, 4294901760
    %2764 = vmatmul.mubr.f32.gmra.mrb[0].mxu0 %v2763
    %v2765 = vpop.f32.mrb[0].mxu0
    %v2766 = vadd.f32 %v2662, %v2765
    %v2767 = vpop.f32.mrb[0].mxu0
    %2768 = vdwg.mxu0
    %2769 = vmatprep.subr.mxu0 0.0
    %v2770 = vand.u32 %v144, 4294901760
    %2771 = vmatpush1.msra.mxu0 %v2770
    %2772 = vmatprep.subr.mxu0 0.0
    %v2773 = vand.u32 %v145, 4294901760
    %2774 = vmatpush1.msra.mxu0 %v2773
    %2775 = vmatprep.subr.mxu0 0.0
    %v2776 = vand.u32 %v146, 4294901760
    %2777 = vmatpush1.msra.mxu0 %v2776
    %2778 = vmatprep.subr.mxu0 0.0
    %v2779 = vand.u32 %v147, 4294901760
    %2780 = vmatpush1.msra.mxu0 %v2779
    %2781 = vmatprep.subr.mxu0 0.0
    %v2782 = vand.u32 %v148, 4294901760
    %2783 = vmatpush1.msra.mxu0 %v2782
    %2784 = vmatprep.subr.mxu0 0.0
    %v2785 = vand.u32 %v149, 4294901760
    %2786 = vmatpush1.msra.mxu0 %v2785
    %2787 = vmatprep.subr.mxu0 0.0
    %v2788 = vand.u32 %v150, 4294901760
    %2789 = vmatpush1.msra.mxu0 %v2788
    %2790 = vmatprep.subr.mxu0 0.0
    %v2791 = vand.u32 %v151, 4294901760
    %2792 = vmatpush1.msra.mxu0 %v2791
    %2793 = vmatprep.subr.mxu0 0.0
    %v2794 = vand.u32 %v152, 4294901760
    %2795 = vmatpush1.msra.mxu0 %v2794
    %2796 = vmatprep.subr.mxu0 0.0
    %v2797 = vand.u32 %v153, 4294901760
    %2798 = vmatpush1.msra.mxu0 %v2797
    %2799 = vmatprep.subr.mxu0 0.0
    %v2800 = vand.u32 %v154, 4294901760
    %2801 = vmatpush1.msra.mxu0 %v2800
    %2802 = vmatprep.subr.mxu0 0.0
    %v2803 = vand.u32 %v155, 4294901760
    %2804 = vmatpush1.msra.mxu0 %v2803
    %2805 = vmatprep.subr.mxu0 0.0
    %v2806 = vand.u32 %v156, 4294901760
    %2807 = vmatpush1.msra.mxu0 %v2806
    %2808 = vmatprep.subr.mxu0 0.0
    %v2809 = vand.u32 %v157, 4294901760
    %2810 = vmatpush1.msra.mxu0 %v2809
    %2811 = vmatprep.subr.mxu0 0.0
    %v2812 = vand.u32 %v158, 4294901760
    %2813 = vmatpush1.msra.mxu0 %v2812
    %2814 = vmatprep.subr.mxu0 0.0
    %v2815 = vand.u32 %v159, 4294901760
    %2816 = vmatpush1.msra.mxu0 %v2815
    %2817 = vmatprep.subr.mxu0 0.0
    %v2818 = vand.u32 %v160, 4294901760
    %2819 = vmatpush1.msra.mxu0 %v2818
    %2820 = vmatprep.subr.mxu0 0.0
    %v2821 = vand.u32 %v161, 4294901760
    %2822 = vmatpush1.msra.mxu0 %v2821
    %2823 = vmatprep.subr.mxu0 0.0
    %v2824 = vand.u32 %v162, 4294901760
    %2825 = vmatpush1.msra.mxu0 %v2824
    %2826 = vmatprep.subr.mxu0 0.0
    %v2827 = vand.u32 %v163, 4294901760
    %2828 = vmatpush1.msra.mxu0 %v2827
    %2829 = vmatprep.subr.mxu0 0.0
    %v2830 = vand.u32 %v164, 4294901760
    %2831 = vmatpush1.msra.mxu0 %v2830
    %2832 = vmatprep.subr.mxu0 0.0
    %v2833 = vand.u32 %v165, 4294901760
    %2834 = vmatpush1.msra.mxu0 %v2833
    %2835 = vmatprep.subr.mxu0 0.0
    %v2836 = vand.u32 %v166, 4294901760
    %2837 = vmatpush1.msra.mxu0 %v2836
    %2838 = vmatprep.subr.mxu0 0.0
    %v2839 = vand.u32 %v167, 4294901760
    %2840 = vmatpush1.msra.mxu0 %v2839
    %2841 = vmatprep.subr.mxu0 0.0
    %v2842 = vand.u32 %v168, 4294901760
    %2843 = vmatpush1.msra.mxu0 %v2842
    %2844 = vmatprep.subr.mxu0 0.0
    %v2845 = vand.u32 %v169, 4294901760
    %2846 = vmatpush1.msra.mxu0 %v2845
    %2847 = vmatprep.subr.mxu0 0.0
    %v2848 = vand.u32 %v170, 4294901760
    %2849 = vmatpush1.msra.mxu0 %v2848
    %2850 = vmatprep.subr.mxu0 0.0
    %v2851 = vand.u32 %v171, 4294901760
    %2852 = vmatpush1.msra.mxu0 %v2851
    %2853 = vmatprep.subr.mxu0 0.0
    %v2854 = vand.u32 %v172, 4294901760
    %2855 = vmatpush1.msra.mxu0 %v2854
    %2856 = vmatprep.subr.mxu0 0.0
    %v2857 = vand.u32 %v173, 4294901760
    %2858 = vmatpush1.msra.mxu0 %v2857
    %2859 = vmatprep.subr.mxu0 0.0
    %v2860 = vand.u32 %v174, 4294901760
    %2861 = vmatpush1.msra.mxu0 %v2860
    %2862 = vmatprep.subr.mxu0 0.0
    %v2863 = vand.u32 %v175, 4294901760
    %2864 = vmatpush1.msra.mxu0 %v2863
    %v2865 = vand.u32 %v47, 4294901760
    %v2866 = vsub.f32 %v47, %v2865
    %v2867 = vand.u32 %v2866, 4294901760
    %v2868 = vsub.f32 %v2866, %v2867
    %v2869 = vand.u32 %v2868, 4294901760
    %2870 = vmatprep.mubr.f32.mxu0 %v2869
    %v2871 = vand.u32 %v46, 4294901760
    %v2872 = vsub.f32 %v46, %v2871
    %v2873 = vand.u32 %v2872, 4294901760
    %v2874 = vsub.f32 %v2872, %v2873
    %v2875 = vand.u32 %v2874, 4294901760
    %2876 = vmatmul.mubr.f32.gmra.mrb[0].mxu0 %v2875
    %v2877 = vpop.f32.mrb[0].mxu0
    %v2878 = vadd.f32 %v2766, %v2877
    %v2879 = vpop.f32.mrb[0].mxu0
    %2880 = vdwg.mxu0
    %2881 = vmatprep.subr.mxu0 0.0
    %v2882 = vand.u32 %v144, 4294901760
    %v2883 = vsub.f32 %v144, %v2882
    %v2884 = vand.u32 %v2883, 4294901760
    %v2885 = vsub.f32 %v2883, %v2884
    %v2886 = vand.u32 %v2885, 4294901760
    %2887 = vmatpush1.msra.mxu0 %v2886
    %2888 = vmatprep.subr.mxu0 0.0
    %v2889 = vand.u32 %v145, 4294901760
    %v2890 = vsub.f32 %v145, %v2889
    %v2891 = vand.u32 %v2890, 4294901760
    %v2892 = vsub.f32 %v2890, %v2891
    %v2893 = vand.u32 %v2892, 4294901760
    %2894 = vmatpush1.msra.mxu0 %v2893
    %2895 = vmatprep.subr.mxu0 0.0
    %v2896 = vand.u32 %v146, 4294901760
    %v2897 = vsub.f32 %v146, %v2896
    %v2898 = vand.u32 %v2897, 4294901760
    %v2899 = vsub.f32 %v2897, %v2898
    %v2900 = vand.u32 %v2899, 4294901760
    %2901 = vmatpush1.msra.mxu0 %v2900
    %2902 = vmatprep.subr.mxu0 0.0
    %v2903 = vand.u32 %v147, 4294901760
    %v2904 = vsub.f32 %v147, %v2903
    %v2905 = vand.u32 %v2904, 4294901760
    %v2906 = vsub.f32 %v2904, %v2905
    %v2907 = vand.u32 %v2906, 4294901760
    %2908 = vmatpush1.msra.mxu0 %v2907
    %2909 = vmatprep.subr.mxu0 0.0
    %v2910 = vand.u32 %v148, 4294901760
    %v2911 = vsub.f32 %v148, %v2910
    %v2912 = vand.u32 %v2911, 4294901760
    %v2913 = vsub.f32 %v2911, %v2912
    %v2914 = vand.u32 %v2913, 4294901760
    %2915 = vmatpush1.msra.mxu0 %v2914
    %2916 = vmatprep.subr.mxu0 0.0
    %v2917 = vand.u32 %v149, 4294901760
    %v2918 = vsub.f32 %v149, %v2917
    %v2919 = vand.u32 %v2918, 4294901760
    %v2920 = vsub.f32 %v2918, %v2919
    %v2921 = vand.u32 %v2920, 4294901760
    %2922 = vmatpush1.msra.mxu0 %v2921
    %2923 = vmatprep.subr.mxu0 0.0
    %v2924 = vand.u32 %v150, 4294901760
    %v2925 = vsub.f32 %v150, %v2924
    %v2926 = vand.u32 %v2925, 4294901760
    %v2927 = vsub.f32 %v2925, %v2926
    %v2928 = vand.u32 %v2927, 4294901760
    %2929 = vmatpush1.msra.mxu0 %v2928
    %2930 = vmatprep.subr.mxu0 0.0
    %v2931 = vand.u32 %v151, 4294901760
    %v2932 = vsub.f32 %v151, %v2931
    %v2933 = vand.u32 %v2932, 4294901760
    %v2934 = vsub.f32 %v2932, %v2933
    %v2935 = vand.u32 %v2934, 4294901760
    %2936 = vmatpush1.msra.mxu0 %v2935
    %2937 = vmatprep.subr.mxu0 0.0
    %v2938 = vand.u32 %v152, 4294901760
    %v2939 = vsub.f32 %v152, %v2938
    %v2940 = vand.u32 %v2939, 4294901760
    %v2941 = vsub.f32 %v2939, %v2940
    %v2942 = vand.u32 %v2941, 4294901760
    %2943 = vmatpush1.msra.mxu0 %v2942
    %2944 = vmatprep.subr.mxu0 0.0
    %v2945 = vand.u32 %v153, 4294901760
    %v2946 = vsub.f32 %v153, %v2945
    %v2947 = vand.u32 %v2946, 4294901760
    %v2948 = vsub.f32 %v2946, %v2947
    %v2949 = vand.u32 %v2948, 4294901760
    %2950 = vmatpush1.msra.mxu0 %v2949
    %2951 = vmatprep.subr.mxu0 0.0
    %v2952 = vand.u32 %v154, 4294901760
    %v2953 = vsub.f32 %v154, %v2952
    %v2954 = vand.u32 %v2953, 4294901760
    %v2955 = vsub.f32 %v2953, %v2954
    %v2956 = vand.u32 %v2955, 4294901760
    %2957 = vmatpush1.msra.mxu0 %v2956
    %2958 = vmatprep.subr.mxu0 0.0
    %v2959 = vand.u32 %v155, 4294901760
    %v2960 = vsub.f32 %v155, %v2959
    %v2961 = vand.u32 %v2960, 4294901760
    %v2962 = vsub.f32 %v2960, %v2961
    %v2963 = vand.u32 %v2962, 4294901760
    %2964 = vmatpush1.msra.mxu0 %v2963
    %2965 = vmatprep.subr.mxu0 0.0
    %v2966 = vand.u32 %v156, 4294901760
    %v2967 = vsub.f32 %v156, %v2966
    %v2968 = vand.u32 %v2967, 4294901760
    %v2969 = vsub.f32 %v2967, %v2968
    %v2970 = vand.u32 %v2969, 4294901760
    %2971 = vmatpush1.msra.mxu0 %v2970
    %2972 = vmatprep.subr.mxu0 0.0
    %v2973 = vand.u32 %v157, 4294901760
    %v2974 = vsub.f32 %v157, %v2973
    %v2975 = vand.u32 %v2974, 4294901760
    %v2976 = vsub.f32 %v2974, %v2975
    %v2977 = vand.u32 %v2976, 4294901760
    %2978 = vmatpush1.msra.mxu0 %v2977
    %2979 = vmatprep.subr.mxu0 0.0
    %v2980 = vand.u32 %v158, 4294901760
    %v2981 = vsub.f32 %v158, %v2980
    %v2982 = vand.u32 %v2981, 4294901760
    %v2983 = vsub.f32 %v2981, %v2982
    %v2984 = vand.u32 %v2983, 4294901760
    %2985 = vmatpush1.msra.mxu0 %v2984
    %2986 = vmatprep.subr.mxu0 0.0
    %v2987 = vand.u32 %v159, 4294901760
    %v2988 = vsub.f32 %v159, %v2987
    %v2989 = vand.u32 %v2988, 4294901760
    %v2990 = vsub.f32 %v2988, %v2989
    %v2991 = vand.u32 %v2990, 4294901760
    %2992 = vmatpush1.msra.mxu0 %v2991
    %2993 = vmatprep.subr.mxu0 0.0
    %v2994 = vand.u32 %v160, 4294901760
    %v2995 = vsub.f32 %v160, %v2994
    %v2996 = vand.u32 %v2995, 4294901760
    %v2997 = vsub.f32 %v2995, %v2996
    %v2998 = vand.u32 %v2997, 4294901760
    %2999 = vmatpush1.msra.mxu0 %v2998
    %3000 = vmatprep.subr.mxu0 0.0
    %v3001 = vand.u32 %v161, 4294901760
    %v3002 = vsub.f32 %v161, %v3001
    %v3003 = vand.u32 %v3002, 4294901760
    %v3004 = vsub.f32 %v3002, %v3003
    %v3005 = vand.u32 %v3004, 4294901760
    %3006 = vmatpush1.msra.mxu0 %v3005
    %3007 = vmatprep.subr.mxu0 0.0
    %v3008 = vand.u32 %v162, 4294901760
    %v3009 = vsub.f32 %v162, %v3008
    %v3010 = vand.u32 %v3009, 4294901760
    %v3011 = vsub.f32 %v3009, %v3010
    %v3012 = vand.u32 %v3011, 4294901760
    %3013 = vmatpush1.msra.mxu0 %v3012
    %3014 = vmatprep.subr.mxu0 0.0
    %v3015 = vand.u32 %v163, 4294901760
    %v3016 = vsub.f32 %v163, %v3015
    %v3017 = vand.u32 %v3016, 4294901760
    %v3018 = vsub.f32 %v3016, %v3017
    %v3019 = vand.u32 %v3018, 4294901760
    %3020 = vmatpush1.msra.mxu0 %v3019
    %3021 = vmatprep.subr.mxu0 0.0
    %v3022 = vand.u32 %v164, 4294901760
    %v3023 = vsub.f32 %v164, %v3022
    %v3024 = vand.u32 %v3023, 4294901760
    %v3025 = vsub.f32 %v3023, %v3024
    %v3026 = vand.u32 %v3025, 4294901760
    %3027 = vmatpush1.msra.mxu0 %v3026
    %3028 = vmatprep.subr.mxu0 0.0
    %v3029 = vand.u32 %v165, 4294901760
    %v3030 = vsub.f32 %v165, %v3029
    %v3031 = vand.u32 %v3030, 4294901760
    %v3032 = vsub.f32 %v3030, %v3031
    %v3033 = vand.u32 %v3032, 4294901760
    %3034 = vmatpush1.msra.mxu0 %v3033
    %3035 = vmatprep.subr.mxu0 0.0
    %v3036 = vand.u32 %v166, 4294901760
    %v3037 = vsub.f32 %v166, %v3036
    %v3038 = vand.u32 %v3037, 4294901760
    %v3039 = vsub.f32 %v3037, %v3038
    %v3040 = vand.u32 %v3039, 4294901760
    %3041 = vmatpush1.msra.mxu0 %v3040
    %3042 = vmatprep.subr.mxu0 0.0
    %v3043 = vand.u32 %v167, 4294901760
    %v3044 = vsub.f32 %v167, %v3043
    %v3045 = vand.u32 %v3044, 4294901760
    %v3046 = vsub.f32 %v3044, %v3045
    %v3047 = vand.u32 %v3046, 4294901760
    %3048 = vmatpush1.msra.mxu0 %v3047
    %3049 = vmatprep.subr.mxu0 0.0
    %v3050 = vand.u32 %v168, 4294901760
    %v3051 = vsub.f32 %v168, %v3050
    %v3052 = vand.u32 %v3051, 4294901760
    %v3053 = vsub.f32 %v3051, %v3052
    %v3054 = vand.u32 %v3053, 4294901760
    %3055 = vmatpush1.msra.mxu0 %v3054
    %3056 = vmatprep.subr.mxu0 0.0
    %v3057 = vand.u32 %v169, 4294901760
    %v3058 = vsub.f32 %v169, %v3057
    %v3059 = vand.u32 %v3058, 4294901760
    %v3060 = vsub.f32 %v3058, %v3059
    %v3061 = vand.u32 %v3060, 4294901760
    %3062 = vmatpush1.msra.mxu0 %v3061
    %3063 = vmatprep.subr.mxu0 0.0
    %v3064 = vand.u32 %v170, 4294901760
    %v3065 = vsub.f32 %v170, %v3064
    %v3066 = vand.u32 %v3065, 4294901760
    %v3067 = vsub.f32 %v3065, %v3066
    %v3068 = vand.u32 %v3067, 4294901760
    %3069 = vmatpush1.msra.mxu0 %v3068
    %3070 = vmatprep.subr.mxu0 0.0
    %v3071 = vand.u32 %v171, 4294901760
    %v3072 = vsub.f32 %v171, %v3071
    %v3073 = vand.u32 %v3072, 4294901760
    %v3074 = vsub.f32 %v3072, %v3073
    %v3075 = vand.u32 %v3074, 4294901760
    %3076 = vmatpush1.msra.mxu0 %v3075
    %3077 = vmatprep.subr.mxu0 0.0
    %v3078 = vand.u32 %v172, 4294901760
    %v3079 = vsub.f32 %v172, %v3078
    %v3080 = vand.u32 %v3079, 4294901760
    %v3081 = vsub.f32 %v3079, %v3080
    %v3082 = vand.u32 %v3081, 4294901760
    %3083 = vmatpush1.msra.mxu0 %v3082
    %3084 = vmatprep.subr.mxu0 0.0
    %v3085 = vand.u32 %v173, 4294901760
    %v3086 = vsub.f32 %v173, %v3085
    %v3087 = vand.u32 %v3086, 4294901760
    %v3088 = vsub.f32 %v3086, %v3087
    %v3089 = vand.u32 %v3088, 4294901760
    %3090 = vmatpush1.msra.mxu0 %v3089
    %3091 = vmatprep.subr.mxu0 0.0
    %v3092 = vand.u32 %v174, 4294901760
    %v3093 = vsub.f32 %v174, %v3092
    %v3094 = vand.u32 %v3093, 4294901760
    %v3095 = vsub.f32 %v3093, %v3094
    %v3096 = vand.u32 %v3095, 4294901760
    %3097 = vmatpush1.msra.mxu0 %v3096
    %3098 = vmatprep.subr.mxu0 0.0
    %v3099 = vand.u32 %v175, 4294901760
    %v3100 = vsub.f32 %v175, %v3099
    %v3101 = vand.u32 %v3100, 4294901760
    %v3102 = vsub.f32 %v3100, %v3101
    %v3103 = vand.u32 %v3102, 4294901760
    %3104 = vmatpush1.msra.mxu0 %v3103
    %v3105 = vand.u32 %v47, 4294901760
    %3106 = vmatprep.mubr.f32.mxu0 %v3105
    %v3107 = vand.u32 %v46, 4294901760
    %3108 = vmatmul.mubr.f32.gmra.mrb[0].mxu0 %v3107
    %v3109 = vpop.f32.mrb[0].mxu0
    %v3110 = vadd.f32 %v2878, %v3109
    %v3111 = vpop.f32.mrb[0].mxu0
    %3112 = vdwg.mxu0
    %3113 = vmatprep.subr.mxu0 0.0
    %v3114 = vand.u32 %v144, 4294901760
    %v3115 = vsub.f32 %v144, %v3114
    %3116 = vmatpush1.msra.mxu0 %v3115
    %3117 = vmatprep.subr.mxu0 0.0
    %v3118 = vand.u32 %v145, 4294901760
    %v3119 = vsub.f32 %v145, %v3118
    %3120 = vmatpush1.msra.mxu0 %v3119
    %3121 = vmatprep.subr.mxu0 0.0
    %v3122 = vand.u32 %v146, 4294901760
    %v3123 = vsub.f32 %v146, %v3122
    %3124 = vmatpush1.msra.mxu0 %v3123
    %3125 = vmatprep.subr.mxu0 0.0
    %v3126 = vand.u32 %v147, 4294901760
    %v3127 = vsub.f32 %v147, %v3126
    %3128 = vmatpush1.msra.mxu0 %v3127
    %3129 = vmatprep.subr.mxu0 0.0
    %v3130 = vand.u32 %v148, 4294901760
    %v3131 = vsub.f32 %v148, %v3130
    %3132 = vmatpush1.msra.mxu0 %v3131
    %3133 = vmatprep.subr.mxu0 0.0
    %v3134 = vand.u32 %v149, 4294901760
    %v3135 = vsub.f32 %v149, %v3134
    %3136 = vmatpush1.msra.mxu0 %v3135
    %3137 = vmatprep.subr.mxu0 0.0
    %v3138 = vand.u32 %v150, 4294901760
    %v3139 = vsub.f32 %v150, %v3138
    %3140 = vmatpush1.msra.mxu0 %v3139
    %3141 = vmatprep.subr.mxu0 0.0
    %v3142 = vand.u32 %v151, 4294901760
    %v3143 = vsub.f32 %v151, %v3142
    %3144 = vmatpush1.msra.mxu0 %v3143
    %3145 = vmatprep.subr.mxu0 0.0
    %v3146 = vand.u32 %v152, 4294901760
    %v3147 = vsub.f32 %v152, %v3146
    %3148 = vmatpush1.msra.mxu0 %v3147
    %3149 = vmatprep.subr.mxu0 0.0
    %v3150 = vand.u32 %v153, 4294901760
    %v3151 = vsub.f32 %v153, %v3150
    %3152 = vmatpush1.msra.mxu0 %v3151
    %3153 = vmatprep.subr.mxu0 0.0
    %v3154 = vand.u32 %v154, 4294901760
    %v3155 = vsub.f32 %v154, %v3154
    %3156 = vmatpush1.msra.mxu0 %v3155
    %3157 = vmatprep.subr.mxu0 0.0
    %v3158 = vand.u32 %v155, 4294901760
    %v3159 = vsub.f32 %v155, %v3158
    %3160 = vmatpush1.msra.mxu0 %v3159
    %3161 = vmatprep.subr.mxu0 0.0
    %v3162 = vand.u32 %v156, 4294901760
    %v3163 = vsub.f32 %v156, %v3162
    %3164 = vmatpush1.msra.mxu0 %v3163
    %3165 = vmatprep.subr.mxu0 0.0
    %v3166 = vand.u32 %v157, 4294901760
    %v3167 = vsub.f32 %v157, %v3166
    %3168 = vmatpush1.msra.mxu0 %v3167
    %3169 = vmatprep.subr.mxu0 0.0
    %v3170 = vand.u32 %v158, 4294901760
    %v3171 = vsub.f32 %v158, %v3170
    %3172 = vmatpush1.msra.mxu0 %v3171
    %3173 = vmatprep.subr.mxu0 0.0
    %v3174 = vand.u32 %v159, 4294901760
    %v3175 = vsub.f32 %v159, %v3174
    %3176 = vmatpush1.msra.mxu0 %v3175
    %3177 = vmatprep.subr.mxu0 0.0
    %v3178 = vand.u32 %v160, 4294901760
    %v3179 = vsub.f32 %v160, %v3178
    %3180 = vmatpush1.msra.mxu0 %v3179
    %3181 = vmatprep.subr.mxu0 0.0
    %v3182 = vand.u32 %v161, 4294901760
    %v3183 = vsub.f32 %v161, %v3182
    %3184 = vmatpush1.msra.mxu0 %v3183
    %3185 = vmatprep.subr.mxu0 0.0
    %v3186 = vand.u32 %v162, 4294901760
    %v3187 = vsub.f32 %v162, %v3186
    %3188 = vmatpush1.msra.mxu0 %v3187
    %3189 = vmatprep.subr.mxu0 0.0
    %v3190 = vand.u32 %v163, 4294901760
    %v3191 = vsub.f32 %v163, %v3190
    %3192 = vmatpush1.msra.mxu0 %v3191
    %3193 = vmatprep.subr.mxu0 0.0
    %v3194 = vand.u32 %v164, 4294901760
    %v3195 = vsub.f32 %v164, %v3194
    %3196 = vmatpush1.msra.mxu0 %v3195
    %3197 = vmatprep.subr.mxu0 0.0
    %v3198 = vand.u32 %v165, 4294901760
    %v3199 = vsub.f32 %v165, %v3198
    %3200 = vmatpush1.msra.mxu0 %v3199
    %3201 = vmatprep.subr.mxu0 0.0
    %v3202 = vand.u32 %v166, 4294901760
    %v3203 = vsub.f32 %v166, %v3202
    %3204 = vmatpush1.msra.mxu0 %v3203
    %3205 = vmatprep.subr.mxu0 0.0
    %v3206 = vand.u32 %v167, 4294901760
    %v3207 = vsub.f32 %v167, %v3206
    %3208 = vmatpush1.msra.mxu0 %v3207
    %3209 = vmatprep.subr.mxu0 0.0
    %v3210 = vand.u32 %v168, 4294901760
    %v3211 = vsub.f32 %v168, %v3210
    %3212 = vmatpush1.msra.mxu0 %v3211
    %3213 = vmatprep.subr.mxu0 0.0
    %v3214 = vand.u32 %v169, 4294901760
    %v3215 = vsub.f32 %v169, %v3214
    %3216 = vmatpush1.msra.mxu0 %v3215
    %3217 = vmatprep.subr.mxu0 0.0
    %v3218 = vand.u32 %v170, 4294901760
    %v3219 = vsub.f32 %v170, %v3218
    %3220 = vmatpush1.msra.mxu0 %v3219
    %3221 = vmatprep.subr.mxu0 0.0
    %v3222 = vand.u32 %v171, 4294901760
    %v3223 = vsub.f32 %v171, %v3222
    %3224 = vmatpush1.msra.mxu0 %v3223
    %3225 = vmatprep.subr.mxu0 0.0
    %v3226 = vand.u32 %v172, 4294901760
    %v3227 = vsub.f32 %v172, %v3226
    %3228 = vmatpush1.msra.mxu0 %v3227
    %3229 = vmatprep.subr.mxu0 0.0
    %v3230 = vand.u32 %v173, 4294901760
    %v3231 = vsub.f32 %v173, %v3230
    %3232 = vmatpush1.msra.mxu0 %v3231
    %3233 = vmatprep.subr.mxu0 0.0
    %v3234 = vand.u32 %v174, 4294901760
    %v3235 = vsub.f32 %v174, %v3234
    %3236 = vmatpush1.msra.mxu0 %v3235
    %3237 = vmatprep.subr.mxu0 0.0
    %v3238 = vand.u32 %v175, 4294901760
    %v3239 = vsub.f32 %v175, %v3238
    %3240 = vmatpush1.msra.mxu0 %v3239
    %v3241 = vand.u32 %v47, 4294901760
    %v3242 = vsub.f32 %v47, %v3241
    %3243 = vmatprep.mubr.f32.mxu0 %v3242
    %v3244 = vand.u32 %v46, 4294901760
    %v3245 = vsub.f32 %v46, %v3244
    %3246 = vmatmul.mubr.f32.gmra.mrb[0].mxu0 %v3245
    %v3247 = vpop.f32.mrb[0].mxu0
    %v3248 = vadd.f32 %v3110, %v3247
    %v3249 = vpop.f32.mrb[0].mxu0
    %3250 = vdwg.mxu0
    %3251 = vmatprep.subr.mxu0 0.0
    %v3252 = vand.u32 %v144, 4294901760
    %3253 = vmatpush1.msra.mxu0 %v3252
    %3254 = vmatprep.subr.mxu0 0.0
    %v3255 = vand.u32 %v145, 4294901760
    %3256 = vmatpush1.msra.mxu0 %v3255
    %3257 = vmatprep.subr.mxu0 0.0
    %v3258 = vand.u32 %v146, 4294901760
    %3259 = vmatpush1.msra.mxu0 %v3258
    %3260 = vmatprep.subr.mxu0 0.0
    %v3261 = vand.u32 %v147, 4294901760
    %3262 = vmatpush1.msra.mxu0 %v3261
    %3263 = vmatprep.subr.mxu0 0.0
    %v3264 = vand.u32 %v148, 4294901760
    %3265 = vmatpush1.msra.mxu0 %v3264
    %3266 = vmatprep.subr.mxu0 0.0
    %v3267 = vand.u32 %v149, 4294901760
    %3268 = vmatpush1.msra.mxu0 %v3267
    %3269 = vmatprep.subr.mxu0 0.0
    %v3270 = vand.u32 %v150, 4294901760
    %3271 = vmatpush1.msra.mxu0 %v3270
    %3272 = vmatprep.subr.mxu0 0.0
    %v3273 = vand.u32 %v151, 4294901760
    %3274 = vmatpush1.msra.mxu0 %v3273
    %3275 = vmatprep.subr.mxu0 0.0
    %v3276 = vand.u32 %v152, 4294901760
    %3277 = vmatpush1.msra.mxu0 %v3276
    %3278 = vmatprep.subr.mxu0 0.0
    %v3279 = vand.u32 %v153, 4294901760
    %3280 = vmatpush1.msra.mxu0 %v3279
    %3281 = vmatprep.subr.mxu0 0.0
    %v3282 = vand.u32 %v154, 4294901760
    %3283 = vmatpush1.msra.mxu0 %v3282
    %3284 = vmatprep.subr.mxu0 0.0
    %v3285 = vand.u32 %v155, 4294901760
    %3286 = vmatpush1.msra.mxu0 %v3285
    %3287 = vmatprep.subr.mxu0 0.0
    %v3288 = vand.u32 %v156, 4294901760
    %3289 = vmatpush1.msra.mxu0 %v3288
    %3290 = vmatprep.subr.mxu0 0.0
    %v3291 = vand.u32 %v157, 4294901760
    %3292 = vmatpush1.msra.mxu0 %v3291
    %3293 = vmatprep.subr.mxu0 0.0
    %v3294 = vand.u32 %v158, 4294901760
    %3295 = vmatpush1.msra.mxu0 %v3294
    %3296 = vmatprep.subr.mxu0 0.0
    %v3297 = vand.u32 %v159, 4294901760
    %3298 = vmatpush1.msra.mxu0 %v3297
    %3299 = vmatprep.subr.mxu0 0.0
    %v3300 = vand.u32 %v160, 4294901760
    %3301 = vmatpush1.msra.mxu0 %v3300
    %3302 = vmatprep.subr.mxu0 0.0
    %v3303 = vand.u32 %v161, 4294901760
    %3304 = vmatpush1.msra.mxu0 %v3303
    %3305 = vmatprep.subr.mxu0 0.0
    %v3306 = vand.u32 %v162, 4294901760
    %3307 = vmatpush1.msra.mxu0 %v3306
    %3308 = vmatprep.subr.mxu0 0.0
    %v3309 = vand.u32 %v163, 4294901760
    %3310 = vmatpush1.msra.mxu0 %v3309
    %3311 = vmatprep.subr.mxu0 0.0
    %v3312 = vand.u32 %v164, 4294901760
    %3313 = vmatpush1.msra.mxu0 %v3312
    %3314 = vmatprep.subr.mxu0 0.0
    %v3315 = vand.u32 %v165, 4294901760
    %3316 = vmatpush1.msra.mxu0 %v3315
    %3317 = vmatprep.subr.mxu0 0.0
    %v3318 = vand.u32 %v166, 4294901760
    %3319 = vmatpush1.msra.mxu0 %v3318
    %3320 = vmatprep.subr.mxu0 0.0
    %v3321 = vand.u32 %v167, 4294901760
    %3322 = vmatpush1.msra.mxu0 %v3321
    %3323 = vmatprep.subr.mxu0 0.0
    %v3324 = vand.u32 %v168, 4294901760
    %3325 = vmatpush1.msra.mxu0 %v3324
    %3326 = vmatprep.subr.mxu0 0.0
    %v3327 = vand.u32 %v169, 4294901760
    %3328 = vmatpush1.msra.mxu0 %v3327
    %3329 = vmatprep.subr.mxu0 0.0
    %v3330 = vand.u32 %v170, 4294901760
    %3331 = vmatpush1.msra.mxu0 %v3330
    %3332 = vmatprep.subr.mxu0 0.0
    %v3333 = vand.u32 %v171, 4294901760
    %3334 = vmatpush1.msra.mxu0 %v3333
    %3335 = vmatprep.subr.mxu0 0.0
    %v3336 = vand.u32 %v172, 4294901760
    %3337 = vmatpush1.msra.mxu0 %v3336
    %3338 = vmatprep.subr.mxu0 0.0
    %v3339 = vand.u32 %v173, 4294901760
    %3340 = vmatpush1.msra.mxu0 %v3339
    %3341 = vmatprep.subr.mxu0 0.0
    %v3342 = vand.u32 %v174, 4294901760
    %3343 = vmatpush1.msra.mxu0 %v3342
    %3344 = vmatprep.subr.mxu0 0.0
    %v3345 = vand.u32 %v175, 4294901760
    %3346 = vmatpush1.msra.mxu0 %v3345
    %v3347 = vand.u32 %v47, 4294901760
    %v3348 = vsub.f32 %v47, %v3347
    %v3349 = vand.u32 %v3348, 4294901760
    %3350 = vmatprep.mubr.f32.mxu0 %v3349
    %v3351 = vand.u32 %v46, 4294901760
    %v3352 = vsub.f32 %v46, %v3351
    %v3353 = vand.u32 %v3352, 4294901760
    %3354 = vmatmul.mubr.f32.gmra.mrb[0].mxu0 %v3353
    %v3355 = vpop.f32.mrb[0].mxu0
    %v3356 = vadd.f32 %v3248, %v3355
    %v3357 = vpop.f32.mrb[0].mxu0
    %3358 = vdwg.mxu0
    %3359 = vmatprep.subr.mxu0 0.0
    %v3360 = vand.u32 %v144, 4294901760
    %v3361 = vsub.f32 %v144, %v3360
    %v3362 = vand.u32 %v3361, 4294901760
    %3363 = vmatpush1.msra.mxu0 %v3362
    %3364 = vmatprep.subr.mxu0 0.0
    %v3365 = vand.u32 %v145, 4294901760
    %v3366 = vsub.f32 %v145, %v3365
    %v3367 = vand.u32 %v3366, 4294901760
    %3368 = vmatpush1.msra.mxu0 %v3367
    %3369 = vmatprep.subr.mxu0 0.0
    %v3370 = vand.u32 %v146, 4294901760
    %v3371 = vsub.f32 %v146, %v3370
    %v3372 = vand.u32 %v3371, 4294901760
    %3373 = vmatpush1.msra.mxu0 %v3372
    %3374 = vmatprep.subr.mxu0 0.0
    %v3375 = vand.u32 %v147, 4294901760
    %v3376 = vsub.f32 %v147, %v3375
    %v3377 = vand.u32 %v3376, 4294901760
    %3378 = vmatpush1.msra.mxu0 %v3377
    %3379 = vmatprep.subr.mxu0 0.0
    %v3380 = vand.u32 %v148, 4294901760
    %v3381 = vsub.f32 %v148, %v3380
    %v3382 = vand.u32 %v3381, 4294901760
    %3383 = vmatpush1.msra.mxu0 %v3382
    %3384 = vmatprep.subr.mxu0 0.0
    %v3385 = vand.u32 %v149, 4294901760
    %v3386 = vsub.f32 %v149, %v3385
    %v3387 = vand.u32 %v3386, 4294901760
    %3388 = vmatpush1.msra.mxu0 %v3387
    %3389 = vmatprep.subr.mxu0 0.0
    %v3390 = vand.u32 %v150, 4294901760
    %v3391 = vsub.f32 %v150, %v3390
    %v3392 = vand.u32 %v3391, 4294901760
    %3393 = vmatpush1.msra.mxu0 %v3392
    %3394 = vmatprep.subr.mxu0 0.0
    %v3395 = vand.u32 %v151, 4294901760
    %v3396 = vsub.f32 %v151, %v3395
    %v3397 = vand.u32 %v3396, 4294901760
    %3398 = vmatpush1.msra.mxu0 %v3397
    %3399 = vmatprep.subr.mxu0 0.0
    %v3400 = vand.u32 %v152, 4294901760
    %v3401 = vsub.f32 %v152, %v3400
    %v3402 = vand.u32 %v3401, 4294901760
    %3403 = vmatpush1.msra.mxu0 %v3402
    %3404 = vmatprep.subr.mxu0 0.0
    %v3405 = vand.u32 %v153, 4294901760
    %v3406 = vsub.f32 %v153, %v3405
    %v3407 = vand.u32 %v3406, 4294901760
    %3408 = vmatpush1.msra.mxu0 %v3407
    %3409 = vmatprep.subr.mxu0 0.0
    %v3410 = vand.u32 %v154, 4294901760
    %v3411 = vsub.f32 %v154, %v3410
    %v3412 = vand.u32 %v3411, 4294901760
    %3413 = vmatpush1.msra.mxu0 %v3412
    %3414 = vmatprep.subr.mxu0 0.0
    %v3415 = vand.u32 %v155, 4294901760
    %v3416 = vsub.f32 %v155, %v3415
    %v3417 = vand.u32 %v3416, 4294901760
    %3418 = vmatpush1.msra.mxu0 %v3417
    %3419 = vmatprep.subr.mxu0 0.0
    %v3420 = vand.u32 %v156, 4294901760
    %v3421 = vsub.f32 %v156, %v3420
    %v3422 = vand.u32 %v3421, 4294901760
    %3423 = vmatpush1.msra.mxu0 %v3422
    %3424 = vmatprep.subr.mxu0 0.0
    %v3425 = vand.u32 %v157, 4294901760
    %v3426 = vsub.f32 %v157, %v3425
    %v3427 = vand.u32 %v3426, 4294901760
    %3428 = vmatpush1.msra.mxu0 %v3427
    %3429 = vmatprep.subr.mxu0 0.0
    %v3430 = vand.u32 %v158, 4294901760
    %v3431 = vsub.f32 %v158, %v3430
    %v3432 = vand.u32 %v3431, 4294901760
    %3433 = vmatpush1.msra.mxu0 %v3432
    %3434 = vmatprep.subr.mxu0 0.0
    %v3435 = vand.u32 %v159, 4294901760
    %v3436 = vsub.f32 %v159, %v3435
    %v3437 = vand.u32 %v3436, 4294901760
    %3438 = vmatpush1.msra.mxu0 %v3437
    %3439 = vmatprep.subr.mxu0 0.0
    %v3440 = vand.u32 %v160, 4294901760
    %v3441 = vsub.f32 %v160, %v3440
    %v3442 = vand.u32 %v3441, 4294901760
    %3443 = vmatpush1.msra.mxu0 %v3442
    %3444 = vmatprep.subr.mxu0 0.0
    %v3445 = vand.u32 %v161, 4294901760
    %v3446 = vsub.f32 %v161, %v3445
    %v3447 = vand.u32 %v3446, 4294901760
    %3448 = vmatpush1.msra.mxu0 %v3447
    %3449 = vmatprep.subr.mxu0 0.0
    %v3450 = vand.u32 %v162, 4294901760
    %v3451 = vsub.f32 %v162, %v3450
    %v3452 = vand.u32 %v3451, 4294901760
    %3453 = vmatpush1.msra.mxu0 %v3452
    %3454 = vmatprep.subr.mxu0 0.0
    %v3455 = vand.u32 %v163, 4294901760
    %v3456 = vsub.f32 %v163, %v3455
    %v3457 = vand.u32 %v3456, 4294901760
    %3458 = vmatpush1.msra.mxu0 %v3457
    %3459 = vmatprep.subr.mxu0 0.0
    %v3460 = vand.u32 %v164, 4294901760
    %v3461 = vsub.f32 %v164, %v3460
    %v3462 = vand.u32 %v3461, 4294901760
    %3463 = vmatpush1.msra.mxu0 %v3462
    %3464 = vmatprep.subr.mxu0 0.0
    %v3465 = vand.u32 %v165, 4294901760
    %v3466 = vsub.f32 %v165, %v3465
    %v3467 = vand.u32 %v3466, 4294901760
    %3468 = vmatpush1.msra.mxu0 %v3467
    %3469 = vmatprep.subr.mxu0 0.0
    %v3470 = vand.u32 %v166, 4294901760
    %v3471 = vsub.f32 %v166, %v3470
    %v3472 = vand.u32 %v3471, 4294901760
    %3473 = vmatpush1.msra.mxu0 %v3472
    %3474 = vmatprep.subr.mxu0 0.0
    %v3475 = vand.u32 %v167, 4294901760
    %v3476 = vsub.f32 %v167, %v3475
    %v3477 = vand.u32 %v3476, 4294901760
    %3478 = vmatpush1.msra.mxu0 %v3477
    %3479 = vmatprep.subr.mxu0 0.0
    %v3480 = vand.u32 %v168, 4294901760
    %v3481 = vsub.f32 %v168, %v3480
    %v3482 = vand.u32 %v3481, 4294901760
    %3483 = vmatpush1.msra.mxu0 %v3482
    %3484 = vmatprep.subr.mxu0 0.0
    %v3485 = vand.u32 %v169, 4294901760
    %v3486 = vsub.f32 %v169, %v3485
    %v3487 = vand.u32 %v3486, 4294901760
    %3488 = vmatpush1.msra.mxu0 %v3487
    %3489 = vmatprep.subr.mxu0 0.0
    %v3490 = vand.u32 %v170, 4294901760
    %v3491 = vsub.f32 %v170, %v3490
    %v3492 = vand.u32 %v3491, 4294901760
    %3493 = vmatpush1.msra.mxu0 %v3492
    %3494 = vmatprep.subr.mxu0 0.0
    %v3495 = vand.u32 %v171, 4294901760
    %v3496 = vsub.f32 %v171, %v3495
    %v3497 = vand.u32 %v3496, 4294901760
    %3498 = vmatpush1.msra.mxu0 %v3497
    %3499 = vmatprep.subr.mxu0 0.0
    %v3500 = vand.u32 %v172, 4294901760
    %v3501 = vsub.f32 %v172, %v3500
    %v3502 = vand.u32 %v3501, 4294901760
    %3503 = vmatpush1.msra.mxu0 %v3502
    %3504 = vmatprep.subr.mxu0 0.0
    %v3505 = vand.u32 %v173, 4294901760
    %v3506 = vsub.f32 %v173, %v3505
    %v3507 = vand.u32 %v3506, 4294901760
    %3508 = vmatpush1.msra.mxu0 %v3507
    %3509 = vmatprep.subr.mxu0 0.0
    %v3510 = vand.u32 %v174, 4294901760
    %v3511 = vsub.f32 %v174, %v3510
    %v3512 = vand.u32 %v3511, 4294901760
    %3513 = vmatpush1.msra.mxu0 %v3512
    %3514 = vmatprep.subr.mxu0 0.0
    %v3515 = vand.u32 %v175, 4294901760
    %v3516 = vsub.f32 %v175, %v3515
    %v3517 = vand.u32 %v3516, 4294901760
    %3518 = vmatpush1.msra.mxu0 %v3517
    %v3519 = vand.u32 %v47, 4294901760
    %3520 = vmatprep.mubr.f32.mxu0 %v3519
    %v3521 = vand.u32 %v46, 4294901760
    %3522 = vmatmul.mubr.f32.gmra.mrb[0].mxu0 %v3521
    %v3523 = vpop.f32.mrb[0].mxu0
    %v3524 = vadd.f32 %v3356, %v3523
    %v3525 = vpop.f32.mrb[0].mxu0
    %3526 = vdwg.mxu0
    %3527 = vmatprep.subr.mxu0 0.0
    %v3528 = vand.u32 %v144, 4294901760
    %3529 = vmatpush1.msra.mxu0 %v3528
    %3530 = vmatprep.subr.mxu0 0.0
    %v3531 = vand.u32 %v145, 4294901760
    %3532 = vmatpush1.msra.mxu0 %v3531
    %3533 = vmatprep.subr.mxu0 0.0
    %v3534 = vand.u32 %v146, 4294901760
    %3535 = vmatpush1.msra.mxu0 %v3534
    %3536 = vmatprep.subr.mxu0 0.0
    %v3537 = vand.u32 %v147, 4294901760
    %3538 = vmatpush1.msra.mxu0 %v3537
    %3539 = vmatprep.subr.mxu0 0.0
    %v3540 = vand.u32 %v148, 4294901760
    %3541 = vmatpush1.msra.mxu0 %v3540
    %3542 = vmatprep.subr.mxu0 0.0
    %v3543 = vand.u32 %v149, 4294901760
    %3544 = vmatpush1.msra.mxu0 %v3543
    %3545 = vmatprep.subr.mxu0 0.0
    %v3546 = vand.u32 %v150, 4294901760
    %3547 = vmatpush1.msra.mxu0 %v3546
    %3548 = vmatprep.subr.mxu0 0.0
    %v3549 = vand.u32 %v151, 4294901760
    %3550 = vmatpush1.msra.mxu0 %v3549
    %3551 = vmatprep.subr.mxu0 0.0
    %v3552 = vand.u32 %v152, 4294901760
    %3553 = vmatpush1.msra.mxu0 %v3552
    %3554 = vmatprep.subr.mxu0 0.0
    %v3555 = vand.u32 %v153, 4294901760
    %3556 = vmatpush1.msra.mxu0 %v3555
    %3557 = vmatprep.subr.mxu0 0.0
    %v3558 = vand.u32 %v154, 4294901760
    %3559 = vmatpush1.msra.mxu0 %v3558
    %3560 = vmatprep.subr.mxu0 0.0
    %v3561 = vand.u32 %v155, 4294901760
    %3562 = vmatpush1.msra.mxu0 %v3561
    %3563 = vmatprep.subr.mxu0 0.0
    %v3564 = vand.u32 %v156, 4294901760
    %3565 = vmatpush1.msra.mxu0 %v3564
    %3566 = vmatprep.subr.mxu0 0.0
    %v3567 = vand.u32 %v157, 4294901760
    %3568 = vmatpush1.msra.mxu0 %v3567
    %3569 = vmatprep.subr.mxu0 0.0
    %v3570 = vand.u32 %v158, 4294901760
    %3571 = vmatpush1.msra.mxu0 %v3570
    %3572 = vmatprep.subr.mxu0 0.0
    %v3573 = vand.u32 %v159, 4294901760
    %3574 = vmatpush1.msra.mxu0 %v3573
    %3575 = vmatprep.subr.mxu0 0.0
    %v3576 = vand.u32 %v160, 4294901760
    %3577 = vmatpush1.msra.mxu0 %v3576
    %3578 = vmatprep.subr.mxu0 0.0
    %v3579 = vand.u32 %v161, 4294901760
    %3580 = vmatpush1.msra.mxu0 %v3579
    %3581 = vmatprep.subr.mxu0 0.0
    %v3582 = vand.u32 %v162, 4294901760
    %3583 = vmatpush1.msra.mxu0 %v3582
    %3584 = vmatprep.subr.mxu0 0.0
    %v3585 = vand.u32 %v163, 4294901760
    %3586 = vmatpush1.msra.mxu0 %v3585
    %3587 = vmatprep.subr.mxu0 0.0
    %v3588 = vand.u32 %v164, 4294901760
    %3589 = vmatpush1.msra.mxu0 %v3588
    %3590 = vmatprep.subr.mxu0 0.0
    %v3591 = vand.u32 %v165, 4294901760
    %3592 = vmatpush1.msra.mxu0 %v3591
    %3593 = vmatprep.subr.mxu0 0.0
    %v3594 = vand.u32 %v166, 4294901760
    %3595 = vmatpush1.msra.mxu0 %v3594
    %3596 = vmatprep.subr.mxu0 0.0
    %v3597 = vand.u32 %v167, 4294901760
    %3598 = vmatpush1.msra.mxu0 %v3597
    %3599 = vmatprep.subr.mxu0 0.0
    %v3600 = vand.u32 %v168, 4294901760
    %3601 = vmatpush1.msra.mxu0 %v3600
    %3602 = vmatprep.subr.mxu0 0.0
    %v3603 = vand.u32 %v169, 4294901760
    %3604 = vmatpush1.msra.mxu0 %v3603
    %3605 = vmatprep.subr.mxu0 0.0
    %v3606 = vand.u32 %v170, 4294901760
    %3607 = vmatpush1.msra.mxu0 %v3606
    %3608 = vmatprep.subr.mxu0 0.0
    %v3609 = vand.u32 %v171, 4294901760
    %3610 = vmatpush1.msra.mxu0 %v3609
    %3611 = vmatprep.subr.mxu0 0.0
    %v3612 = vand.u32 %v172, 4294901760
    %3613 = vmatpush1.msra.mxu0 %v3612
    %3614 = vmatprep.subr.mxu0 0.0
    %v3615 = vand.u32 %v173, 4294901760
    %3616 = vmatpush1.msra.mxu0 %v3615
    %3617 = vmatprep.subr.mxu0 0.0
    %v3618 = vand.u32 %v174, 4294901760
    %3619 = vmatpush1.msra.mxu0 %v3618
    %3620 = vmatprep.subr.mxu0 0.0
    %v3621 = vand.u32 %v175, 4294901760
    %3622 = vmatpush1.msra.mxu0 %v3621
    %v3623 = vand.u32 %v47, 4294901760
    %3624 = vmatprep.mubr.f32.mxu0 %v3623
    %v3625 = vand.u32 %v46, 4294901760
    %3626 = vmatmul.mubr.f32.gmra.mrb[0].mxu0 %v3625
    %v3627 = vpop.f32.mrb[0].mxu0
    %v3628 = vadd.f32 %v3524, %v3627
    %v3629 = vpop.f32.mrb[0].mxu0
    %3630 = vdwg.mxu0
    %v3631 = vmax.f32 %v3628, 0.0
    %vm3632 = vcmask 31744
    %3633 = vst.msk [vmem:[%s3] sm:$0xff] %vm3632, %v3631
    // Predicated region
    $region22: #{tpu_custom_call.1} parent=1 // pred_check
      _
    $region23: #{tpu_custom_call.1} parent=1 // pred_check_branch
      %3635 = sbr.rel (0) target = $region25
    $region24: #{tpu_custom_call.1} parent=1 // pred_region
      _
    $region25: #{tpu_custom_call.1} parent=1 // pred_fallthru
      _
    // Predicated region
    $region26: #{tpu_custom_call.1} parent=1 // pred_check
      _
    $region27: #{tpu_custom_call.1} parent=1 // pred_check_branch
      %3637 = sbr.rel (0) target = $region29
    $region28: #{tpu_custom_call.1} parent=1 // pred_region
      _
    $region29: #{tpu_custom_call.1} parent=1 // pred_fallthru
      _
    %3638 = vsyncpa [#allocation3], 1
    %3639 = vsyncpa [#allocation5], 1

</llo_original>
